<compile_context>
chip_gen: v7x
topology: tpu7x:2x2x1
jax: 0.10.0
libtpu: 0.0.40
codegen_flags: <defaults>
</compile_context>

<pallas_src>
from functools import partial

import jax
import jax.numpy as jnp
from jax.experimental import pallas as pl
from jax.experimental.pallas import tpu as pltpu


def sam_kernel(h_ref, m_ref,
               w_hqkv_ref, b_hqkv_ref,          # [2*hid+C, C], [2*hid+C, 1]
               w_mkv_ref, b_mkv_ref,            # [hid+C, C],   [hid+C, 1]
               wz_h_ref, wz_m_ref, bz_ref,      # [2C, C], [2C, C], [2C, 1]
               wm_z_ref, wm_h_ref, bm_ref,      # [3C, 2C], [3C, C], [3C, 1]
               newh_ref, newm_ref,
               *, C, N, hid, mxu_dtype):
    f32 = jnp.float32
    h = h_ref[...]                               # [C, N] f32, channels-major
    m = m_ref[...]
    h_x = h.astype(mxu_dtype)
    m_x = m.astype(mxu_dtype)

    # --- fused 1x1-conv projections: W[Cout,Cin] @ X[Cin,N] (weights as stored) ---
    ph = jnp.dot(w_hqkv_ref[...], h_x, preferred_element_type=f32) + b_hqkv_ref[...]
    pm = jnp.dot(w_mkv_ref[...], m_x, preferred_element_type=f32) + b_mkv_ref[...]

    # Sublane-aligned row splits (hid, C are multiples of 8).
    q = ph[0:hid, :]                             # [hid, N]
    k = ph[hid:2 * hid, :]                       # [hid, N]
    v = ph[2 * hid:, :]                          # [C, N]
    k2 = pm[0:hid, :]                            # [hid, N]
    v2 = pm[hid:, :]                             # [C, N]

    # --- fused attention scores: q^T @ [k | k2] -> [N, 2N] (shared-q fusion) ---
    kk = jnp.concatenate([k, k2], axis=1).astype(mxu_dtype)     # [hid, 2N]
    s = jax.lax.dot_general(q.astype(mxu_dtype), kk,
                            (((0,), (0,)), ((), ())),
                            preferred_element_type=f32)         # [N, 2N]

    def softmax_last(x):
        x = x - jnp.max(x, axis=-1, keepdims=True)
        e = jnp.exp(x)
        return e * pl.reciprocal(jnp.sum(e, axis=-1, keepdims=True))  # exact

    p_h = softmax_last(s[:, :N]).astype(mxu_dtype)              # [N, N]
    p_m = softmax_last(s[:, N:]).astype(mxu_dtype)              # [N, N]

    # --- PV with channels-major output: V[C,Nk] . P[Nq,Nk] (contract Nk) -> [C,Nq] ---
    z_h = jax.lax.dot_general(v.astype(mxu_dtype), p_h,
                              (((1,), (1,)), ((), ())),
                              preferred_element_type=f32)       # [C, N]
    z_m = jax.lax.dot_general(v2.astype(mxu_dtype), p_m,
                              (((1,), (1,)), ((), ())),
                              preferred_element_type=f32)       # [C, N]

    # --- layer_z without concat: Wz @ [z_h; z_m] as an accumulating matmul pair ---
    z = (jnp.dot(wz_h_ref[...], z_h.astype(mxu_dtype), preferred_element_type=f32)
         + jnp.dot(wz_m_ref[...], z_m.astype(mxu_dtype), preferred_element_type=f32)
         + bz_ref[...])                                          # [2C, N]

    # --- layer_m: all three gates in ONE accumulating matmul pair -> [3C, N] ---
    comb = (jnp.dot(wm_z_ref[...], z.astype(mxu_dtype), preferred_element_type=f32)
            + jnp.dot(wm_h_ref[...], h_x, preferred_element_type=f32)
            + bm_ref[...])                                       # [3C, N]

    mo = comb[0:C, :]
    mg = comb[C:2 * C, :]
    mi = jax.nn.sigmoid(comb[2 * C:, :])

    new_m = (1.0 - mi) * m + mi * jnp.tanh(mg)                   # f32 gate math
    new_h = jax.nn.sigmoid(mo) * new_m

    newm_ref[...] = new_m.astype(newm_ref.dtype)
    newh_ref[...] = new_h.astype(newh_ref.dtype)


def self_attention_memory(h_nchw, m_nchw, params, *, mxu_dtype=jnp.bfloat16):
    """h_nchw, m_nchw: [B, C, H, W] float32. Returns (new_h, new_m) in NCHW."""
    B, C, H, W = h_nchw.shape
    N = H * W
    hid = params["wq"].shape[0]

    # NCHW is already channels-major: [B, C, H, W] -> [B, C, N] is a free reshape.
    h_cm = h_nchw.reshape(B, C, N)
    m_cm = m_nchw.reshape(B, C, N)

    wd = mxu_dtype
    # 1x1 conv weights are stored [out, in] == exactly what channels-major wants.
    w_hqkv = jnp.concatenate([params["wq"], params["wk"], params["wv"]], axis=0).astype(wd)
    b_hqkv = jnp.concatenate([params["bq"], params["bk"], params["bv"]], axis=1).reshape(-1, 1)
    w_mkv = jnp.concatenate([params["wk2"], params["wv2"]], axis=0).astype(wd)
    b_mkv = jnp.concatenate([params["bk2"], params["bv2"]], axis=1).reshape(-1, 1)

    wz = params["wz"]                                  # [2C, 2C]
    wz_h = wz[:, :C].astype(wd)                        # acts on z_h rows
    wz_m = wz[:, C:].astype(wd)                        # acts on z_m rows
    bz = params["bz"].reshape(-1, 1)                   # [2C, 1]

    wm = params["wm"]                                  # [3C, 3C]
    wm_z = wm[:, :2 * C].astype(wd)                    # acts on z rows
    wm_h = wm[:, 2 * C:].astype(wd)                    # acts on h rows
    bm = params["bm"].reshape(-1, 1)                   # [3C, 1]

    weights = [w_hqkv, b_hqkv, w_mkv, b_mkv, wz_h, wz_m, bz, wm_z, wm_h, bm]

    # Per-batch state blocks (squeezed batch dim); weights fetched once (constant idx).
    state_spec = pl.BlockSpec((None, C, N), lambda b: (b, 0, 0))

    def wspec(a):
        return pl.BlockSpec(a.shape, lambda b, _nd=a.ndim: (0,) * _nd)

    kern = partial(sam_kernel, C=C, N=N, hid=hid, mxu_dtype=mxu_dtype)

    new_h, new_m = pl.pallas_call(
        kern,
        out_shape=(jax.ShapeDtypeStruct((B, C, N), h_nchw.dtype),
                   jax.ShapeDtypeStruct((B, C, N), m_nchw.dtype)),
        grid=(B,),
        in_specs=[state_spec, state_spec] + [wspec(w) for w in weights],
        out_specs=(state_spec, state_spec),
        compiler_params=pltpu.CompilerParams(
            dimension_semantics=("parallel",),
            vmem_limit_bytes=64 * 1024 * 1024),
    )(h_cm, m_cm, *weights)

    return new_h.reshape(B, C, H, W), new_m.reshape(B, C, H, W)


def reference_jax(h_nchw, m_nchw, params):
    """Pure-JAX f32 reference mirroring the PyTorch forward (HIGHEST precision)."""
    hp = jax.lax.Precision.HIGHEST
    B, C, H, W = h_nchw.shape
    N = H * W
    h = jnp.transpose(h_nchw.reshape(B, C, N), (0, 2, 1))
    m = jnp.transpose(m_nchw.reshape(B, C, N), (0, 2, 1))

    def lin(x, w, b):
        return jnp.einsum("bnc,oc->bno", x, w, precision=hp) + b

    q = lin(h, params["wq"], params["bq"])
    k = lin(h, params["wk"], params["bk"])
    v = lin(h, params["wv"], params["bv"])
    a_h = jax.nn.softmax(jnp.einsum("bnd,bmd->bnm", q, k, precision=hp), axis=-1)
    z_h = jnp.einsum("bnm,bmc->bnc", a_h, v, precision=hp)

    k2 = lin(m, params["wk2"], params["bk2"])
    v2 = lin(m, params["wv2"], params["bv2"])
    a_m = jax.nn.softmax(jnp.einsum("bnd,bmd->bnm", q, k2, precision=hp), axis=-1)
    z_m = jnp.einsum("bnm,bmc->bnc", a_m, v2, precision=hp)

    z = lin(jnp.concatenate([z_h, z_m], axis=-1), params["wz"], params["bz"])
    comb = lin(jnp.concatenate([z, h], axis=-1), params["wm"], params["bm"])
    mo, mg, mi = comb[..., :C], comb[..., C:2 * C], comb[..., 2 * C:]
    mi = jax.nn.sigmoid(mi)
    new_m = (1 - mi) * m + mi * jnp.tanh(mg)
    new_h = jax.nn.sigmoid(mo) * new_m
    to_nchw = lambda x: jnp.transpose(x, (0, 2, 1)).reshape(B, C, H, W)
    return to_nchw(new_h), to_nchw(new_m)


def init_params(key, input_dim, hidden_dim):
    """Deterministic init; 1x1 Conv2d weights stored as [out, in] matrices."""
    shapes = {
        "wq": (hidden_dim, input_dim), "bq": (1, hidden_dim),
        "wk": (hidden_dim, input_dim), "bk": (1, hidden_dim),
        "wv": (input_dim, input_dim), "bv": (1, input_dim),
        "wk2": (hidden_dim, input_dim), "bk2": (1, hidden_dim),
        "wv2": (input_dim, input_dim), "bv2": (1, input_dim),
        "wz": (2 * input_dim, 2 * input_dim), "bz": (1, 2 * input_dim),
        "wm": (3 * input_dim, 3 * input_dim), "bm": (1, 3 * input_dim),
    }
    params = {}
    keys = jax.random.split(key, len(shapes))
    for kk, (name, shp) in zip(keys, shapes.items()):
        params[name] = 0.1 * jax.random.normal(kk, shp, dtype=jnp.float32)
    return params


if __name__ == "__main__":
    # H*W = 256 -> lane-dense [C, 256] tiles; C=16, hid=8 -> sublane-aligned splits.
    B, input_dim, hidden_dim, H, W = 2, 16, 8, 16, 16

    key = jax.random.PRNGKey(0)
    kh, km, kp = jax.random.split(key, 3)
    h = jax.random.normal(kh, (B, input_dim, H, W), dtype=jnp.float32)
    m = jax.random.normal(km, (B, input_dim, H, W), dtype=jnp.float32)
    params = init_params(kp, input_dim, hidden_dim)

    new_h, new_m = self_attention_memory(h, m, params)   # bf16 MXU path
    jax.block_until_ready((new_h, new_m))

    ref_h, ref_m = reference_jax(h, m, params)
    # bf16 MXU inputs (f32 accumulation) => loose-ish tolerance; structural bugs
    # would show up as O(0.1 .. 1) errors, far above this.
    assert jnp.allclose(new_h, ref_h, atol=5e-2, rtol=5e-2), float(jnp.max(jnp.abs(new_h - ref_h)))
    assert jnp.allclose(new_m, ref_m, atol=5e-2, rtol=5e-2), float(jnp.max(jnp.abs(new_m - ref_m)))

    print("KERNEL_OK")
</pallas_src>

<mosaic_0001>
module attributes {stable_mosaic.version = 11 : i64} {
  func.func @sam_kernel(%arg0: i32, %arg1: memref<1x16x256xf32, #tpu.memory_space<vmem>>, %arg2: memref<1x16x256xf32, #tpu.memory_space<vmem>>, %arg3: memref<32x16xbf16, #tpu.memory_space<vmem>>, %arg4: memref<32x1xf32, #tpu.memory_space<vmem>>, %arg5: memref<24x16xbf16, #tpu.memory_space<vmem>>, %arg6: memref<24x1xf32, #tpu.memory_space<vmem>>, %arg7: memref<32x16xbf16, #tpu.memory_space<vmem>>, %arg8: memref<32x16xbf16, #tpu.memory_space<vmem>>, %arg9: memref<32x1xf32, #tpu.memory_space<vmem>>, %arg10: memref<48x32xbf16, #tpu.memory_space<vmem>>, %arg11: memref<48x16xbf16, #tpu.memory_space<vmem>>, %arg12: memref<48x1xf32, #tpu.memory_space<vmem>>, %arg13: memref<1x16x256xf32, #tpu.memory_space<vmem>>, %arg14: memref<1x16x256xf32, #tpu.memory_space<vmem>>) attributes {dimension_semantics = [#tpu.dimension_semantics<parallel>], iteration_bounds = array<i64: 2>, scalar_prefetch = 0 : i64, scratch_operands = 0 : i64, tpu.core_type = #tpu.core_type<tc>, window_params = [{transform_indices = @transform_0, window_bounds = array<i64: 1, 16, 256>}, {transform_indices = @transform_1, window_bounds = array<i64: 1, 16, 256>}, {pipeline_mode = #tpu.pipeline_mode<synchronous>, transform_indices = @transform_2, window_bounds = array<i64: 32, 16>}, {pipeline_mode = #tpu.pipeline_mode<synchronous>, transform_indices = @transform_3, window_bounds = array<i64: 32, 1>}, {pipeline_mode = #tpu.pipeline_mode<synchronous>, transform_indices = @transform_4, window_bounds = array<i64: 24, 16>}, {pipeline_mode = #tpu.pipeline_mode<synchronous>, transform_indices = @transform_5, window_bounds = array<i64: 24, 1>}, {pipeline_mode = #tpu.pipeline_mode<synchronous>, transform_indices = @transform_6, window_bounds = array<i64: 32, 16>}, {pipeline_mode = #tpu.pipeline_mode<synchronous>, transform_indices = @transform_7, window_bounds = array<i64: 32, 16>}, {pipeline_mode = #tpu.pipeline_mode<synchronous>, transform_indices = @transform_8, window_bounds = array<i64: 32, 1>}, {pipeline_mode = #tpu.pipeline_mode<synchronous>, transform_indices = @transform_9, window_bounds = array<i64: 48, 32>}, {pipeline_mode = #tpu.pipeline_mode<synchronous>, transform_indices = @transform_10, window_bounds = array<i64: 48, 16>}, {pipeline_mode = #tpu.pipeline_mode<synchronous>, transform_indices = @transform_11, window_bounds = array<i64: 48, 1>}, {transform_indices = @transform_12, window_bounds = array<i64: 1, 16, 256>}, {transform_indices = @transform_13, window_bounds = array<i64: 1, 16, 256>}]} {
    %c0 = arith.constant 0 : index
    %c0_0 = arith.constant 0 : index
    %c0_1 = arith.constant 0 : index
    %0 = vector.load %arg1[%c0, %c0_0, %c0_1] : memref<1x16x256xf32, #tpu.memory_space<vmem>>, vector<1x16x256xf32>
    %1 = vector.shape_cast %0 : vector<1x16x256xf32> to vector<16x256xf32>
    %c0_2 = arith.constant 0 : index
    %c0_3 = arith.constant 0 : index
    %c0_4 = arith.constant 0 : index
    %2 = vector.load %arg2[%c0_2, %c0_3, %c0_4] : memref<1x16x256xf32, #tpu.memory_space<vmem>>, vector<1x16x256xf32>
    %3 = vector.shape_cast %2 : vector<1x16x256xf32> to vector<16x256xf32>
    %4 = arith.truncf %1 : vector<16x256xf32> to vector<16x256xbf16>
    %5 = arith.truncf %3 : vector<16x256xf32> to vector<16x256xbf16>
    %c0_5 = arith.constant 0 : index
    %c0_6 = arith.constant 0 : index
    %6 = vector.load %arg3[%c0_5, %c0_6] : memref<32x16xbf16, #tpu.memory_space<vmem>>, vector<32x16xbf16>
    %cst = arith.constant dense<0.000000e+00> : vector<32x256xf32>
    %7 = tpu.matmul %6, %4, %cst {dimension_numbers = #tpu.dot_dimension_numbers<[1], [0], [0], [1], [0, 0, 1, 1], [], []>} : vector<32x16xbf16>, vector<16x256xbf16>, vector<32x256xf32> -> vector<32x256xf32>
    %c0_7 = arith.constant 0 : index
    %c0_8 = arith.constant 0 : index
    %8 = vector.load %arg4[%c0_7, %c0_8] : memref<32x1xf32, #tpu.memory_space<vmem>>, vector<32x1xf32>
    %9 = vector.broadcast %8 : vector<32x1xf32> to vector<32x256xf32>
    %10 = arith.addf %7, %9 : vector<32x256xf32>
    %c0_9 = arith.constant 0 : index
    %c0_10 = arith.constant 0 : index
    %11 = vector.load %arg5[%c0_9, %c0_10] : memref<24x16xbf16, #tpu.memory_space<vmem>>, vector<24x16xbf16>
    %cst_11 = arith.constant dense<0.000000e+00> : vector<24x256xf32>
    %12 = tpu.matmul %11, %5, %cst_11 {dimension_numbers = #tpu.dot_dimension_numbers<[1], [0], [0], [1], [0, 0, 1, 1], [], []>} : vector<24x16xbf16>, vector<16x256xbf16>, vector<24x256xf32> -> vector<24x256xf32>
    %c0_12 = arith.constant 0 : index
    %c0_13 = arith.constant 0 : index
    %13 = vector.load %arg6[%c0_12, %c0_13] : memref<24x1xf32, #tpu.memory_space<vmem>>, vector<24x1xf32>
    %14 = vector.broadcast %13 : vector<24x1xf32> to vector<24x256xf32>
    %15 = arith.addf %12, %14 : vector<24x256xf32>
    %16 = vector.extract_strided_slice %10 {offsets = [0, 0], sizes = [8, 256], strides = [1, 1]} : vector<32x256xf32> to vector<8x256xf32>
    %17 = vector.extract_strided_slice %10 {offsets = [8, 0], sizes = [8, 256], strides = [1, 1]} : vector<32x256xf32> to vector<8x256xf32>
    %18 = vector.extract_strided_slice %10 {offsets = [16, 0], sizes = [16, 256], strides = [1, 1]} : vector<32x256xf32> to vector<16x256xf32>
    %19 = vector.extract_strided_slice %15 {offsets = [0, 0], sizes = [8, 256], strides = [1, 1]} : vector<24x256xf32> to vector<8x256xf32>
    %20 = vector.extract_strided_slice %15 {offsets = [8, 0], sizes = [16, 256], strides = [1, 1]} : vector<24x256xf32> to vector<16x256xf32>
    %21 = tpu.concatenate %17, %19 in 1 : vector<8x256xf32>, vector<8x256xf32> -> vector<8x512xf32>
    %22 = arith.truncf %21 : vector<8x512xf32> to vector<8x512xbf16>
    %23 = arith.truncf %16 : vector<8x256xf32> to vector<8x256xbf16>
    %cst_14 = arith.constant dense<0.000000e+00> : vector<256x512xf32>
    %24 = tpu.matmul %23, %22, %cst_14 {dimension_numbers = #tpu.dot_dimension_numbers<[0], [0], [1], [1], [0, 1, 1, 1], [], []>} : vector<8x256xbf16>, vector<8x512xbf16>, vector<256x512xf32> -> vector<256x512xf32>
    %25 = vector.extract_strided_slice %24 {offsets = [0, 0], sizes = [256, 256], strides = [1, 1]} : vector<256x512xf32> to vector<256x256xf32>
    %cst_15 = arith.constant dense<0xFF800000> : vector<256xf32>
    %26 = vector.multi_reduction <maximumf>, %25, %cst_15 [1] : vector<256x256xf32> to vector<256xf32>
    %27 = vector.shape_cast %26 : vector<256xf32> to vector<256x1xf32>
    %28 = vector.broadcast %27 : vector<256x1xf32> to vector<256x256xf32>
    %29 = arith.subf %25, %28 : vector<256x256xf32>
    %30 = math.exp %29 : vector<256x256xf32>
    %cst_16 = arith.constant dense<0.000000e+00> : vector<256xf32>
    %31 = vector.multi_reduction <add>, %30, %cst_16 [1] : vector<256x256xf32> to vector<256xf32>
    %32 = vector.shape_cast %31 : vector<256xf32> to vector<256x1xf32>
    %33 = tpu.reciprocal %32 : vector<256x1xf32> -> vector<256x1xf32>
    %34 = vector.broadcast %33 : vector<256x1xf32> to vector<256x256xf32>
    %35 = arith.mulf %30, %34 : vector<256x256xf32>
    %36 = arith.truncf %35 : vector<256x256xf32> to vector<256x256xbf16>
    %37 = vector.extract_strided_slice %24 {offsets = [0, 256], sizes = [256, 256], strides = [1, 1]} : vector<256x512xf32> to vector<256x256xf32>
    %cst_17 = arith.constant dense<0xFF800000> : vector<256xf32>
    %38 = vector.multi_reduction <maximumf>, %37, %cst_17 [1] : vector<256x256xf32> to vector<256xf32>
    %39 = vector.shape_cast %38 : vector<256xf32> to vector<256x1xf32>
    %40 = vector.broadcast %39 : vector<256x1xf32> to vector<256x256xf32>
    %41 = arith.subf %37, %40 : vector<256x256xf32>
    %42 = math.exp %41 : vector<256x256xf32>
    %cst_18 = arith.constant dense<0.000000e+00> : vector<256xf32>
    %43 = vector.multi_reduction <add>, %42, %cst_18 [1] : vector<256x256xf32> to vector<256xf32>
    %44 = vector.shape_cast %43 : vector<256xf32> to vector<256x1xf32>
    %45 = tpu.reciprocal %44 : vector<256x1xf32> -> vector<256x1xf32>
    %46 = vector.broadcast %45 : vector<256x1xf32> to vector<256x256xf32>
    %47 = arith.mulf %42, %46 : vector<256x256xf32>
    %48 = arith.truncf %47 : vector<256x256xf32> to vector<256x256xbf16>
    %49 = arith.truncf %18 : vector<16x256xf32> to vector<16x256xbf16>
    %cst_19 = arith.constant dense<0.000000e+00> : vector<16x256xf32>
    %50 = tpu.matmul %49, %36, %cst_19 {dimension_numbers = #tpu.dot_dimension_numbers<[1], [1], [0], [0], [0, 0, 1, 0], [], []>} : vector<16x256xbf16>, vector<256x256xbf16>, vector<16x256xf32> -> vector<16x256xf32>
    %51 = arith.truncf %20 : vector<16x256xf32> to vector<16x256xbf16>
    %cst_20 = arith.constant dense<0.000000e+00> : vector<16x256xf32>
    %52 = tpu.matmul %51, %48, %cst_20 {dimension_numbers = #tpu.dot_dimension_numbers<[1], [1], [0], [0], [0, 0, 1, 0], [], []>} : vector<16x256xbf16>, vector<256x256xbf16>, vector<16x256xf32> -> vector<16x256xf32>
    %c0_21 = arith.constant 0 : index
    %c0_22 = arith.constant 0 : index
    %53 = vector.load %arg7[%c0_21, %c0_22] : memref<32x16xbf16, #tpu.memory_space<vmem>>, vector<32x16xbf16>
    %54 = arith.truncf %50 : vector<16x256xf32> to vector<16x256xbf16>
    %cst_23 = arith.constant dense<0.000000e+00> : vector<32x256xf32>
    %55 = tpu.matmul %53, %54, %cst_23 {dimension_numbers = #tpu.dot_dimension_numbers<[1], [0], [0], [1], [0, 0, 1, 1], [], []>} : vector<32x16xbf16>, vector<16x256xbf16>, vector<32x256xf32> -> vector<32x256xf32>
    %c0_24 = arith.constant 0 : index
    %c0_25 = arith.constant 0 : index
    %56 = vector.load %arg8[%c0_24, %c0_25] : memref<32x16xbf16, #tpu.memory_space<vmem>>, vector<32x16xbf16>
    %57 = arith.truncf %52 : vector<16x256xf32> to vector<16x256xbf16>
    %cst_26 = arith.constant dense<0.000000e+00> : vector<32x256xf32>
    %58 = tpu.matmul %56, %57, %cst_26 {dimension_numbers = #tpu.dot_dimension_numbers<[1], [0], [0], [1], [0, 0, 1, 1], [], []>} : vector<32x16xbf16>, vector<16x256xbf16>, vector<32x256xf32> -> vector<32x256xf32>
    %59 = arith.addf %55, %58 : vector<32x256xf32>
    %c0_27 = arith.constant 0 : index
    %c0_28 = arith.constant 0 : index
    %60 = vector.load %arg9[%c0_27, %c0_28] : memref<32x1xf32, #tpu.memory_space<vmem>>, vector<32x1xf32>
    %61 = vector.broadcast %60 : vector<32x1xf32> to vector<32x256xf32>
    %62 = arith.addf %59, %61 : vector<32x256xf32>
    %c0_29 = arith.constant 0 : index
    %c0_30 = arith.constant 0 : index
    %63 = vector.load %arg10[%c0_29, %c0_30] : memref<48x32xbf16, #tpu.memory_space<vmem>>, vector<48x32xbf16>
    %64 = arith.truncf %62 : vector<32x256xf32> to vector<32x256xbf16>
    %cst_31 = arith.constant dense<0.000000e+00> : vector<48x256xf32>
    %65 = tpu.matmul %63, %64, %cst_31 {dimension_numbers = #tpu.dot_dimension_numbers<[1], [0], [0], [1], [0, 0, 1, 1], [], []>} : vector<48x32xbf16>, vector<32x256xbf16>, vector<48x256xf32> -> vector<48x256xf32>
    %c0_32 = arith.constant 0 : index
    %c0_33 = arith.constant 0 : index
    %66 = vector.load %arg11[%c0_32, %c0_33] : memref<48x16xbf16, #tpu.memory_space<vmem>>, vector<48x16xbf16>
    %cst_34 = arith.constant dense<0.000000e+00> : vector<48x256xf32>
    %67 = tpu.matmul %66, %4, %cst_34 {dimension_numbers = #tpu.dot_dimension_numbers<[1], [0], [0], [1], [0, 0, 1, 1], [], []>} : vector<48x16xbf16>, vector<16x256xbf16>, vector<48x256xf32> -> vector<48x256xf32>
    %68 = arith.addf %65, %67 : vector<48x256xf32>
    %c0_35 = arith.constant 0 : index
    %c0_36 = arith.constant 0 : index
    %69 = vector.load %arg12[%c0_35, %c0_36] : memref<48x1xf32, #tpu.memory_space<vmem>>, vector<48x1xf32>
    %70 = vector.broadcast %69 : vector<48x1xf32> to vector<48x256xf32>
    %71 = arith.addf %68, %70 : vector<48x256xf32>
    %72 = vector.extract_strided_slice %71 {offsets = [0, 0], sizes = [16, 256], strides = [1, 1]} : vector<48x256xf32> to vector<16x256xf32>
    %73 = vector.extract_strided_slice %71 {offsets = [16, 0], sizes = [16, 256], strides = [1, 1]} : vector<48x256xf32> to vector<16x256xf32>
    %74 = vector.extract_strided_slice %71 {offsets = [32, 0], sizes = [16, 256], strides = [1, 1]} : vector<48x256xf32> to vector<16x256xf32>
    %75 = arith.negf %74 : vector<16x256xf32>
    %76 = math.exp %75 : vector<16x256xf32>
    %cst_37 = arith.constant 1.000000e+00 : f32
    %77 = vector.broadcast %cst_37 : f32 to vector<16x256xf32>
    %78 = arith.addf %77, %76 : vector<16x256xf32>
    %79 = arith.divf %77, %78 : vector<16x256xf32>
    %cst_38 = arith.constant 1.000000e+00 : f32
    %80 = vector.broadcast %cst_38 : f32 to vector<16x256xf32>
    %81 = arith.subf %80, %79 : vector<16x256xf32>
    %82 = arith.mulf %81, %3 : vector<16x256xf32>
    %83 = math.tanh %73 : vector<16x256xf32>
    %84 = arith.mulf %79, %83 : vector<16x256xf32>
    %85 = arith.addf %82, %84 : vector<16x256xf32>
    %86 = arith.negf %72 : vector<16x256xf32>
    %87 = math.exp %86 : vector<16x256xf32>
    %cst_39 = arith.constant 1.000000e+00 : f32
    %88 = vector.broadcast %cst_39 : f32 to vector<16x256xf32>
    %89 = arith.addf %88, %87 : vector<16x256xf32>
    %90 = arith.divf %88, %89 : vector<16x256xf32>
    %91 = arith.mulf %90, %85 : vector<16x256xf32>
    %c0_40 = arith.constant 0 : index
    %c0_41 = arith.constant 0 : index
    %c0_42 = arith.constant 0 : index
    %92 = vector.load %arg14[%c0_40, %c0_41, %c0_42] : memref<1x16x256xf32, #tpu.memory_space<vmem>>, vector<1x16x256xf32>
    %93 = vector.shape_cast %92 : vector<1x16x256xf32> to vector<16x256xf32>
    %94 = vector.shape_cast %85 : vector<16x256xf32> to vector<1x16x256xf32>
    tpu.vector_store %arg14[%c0_40, %c0_41, %c0_42], %94 {strides = array<i32>} : memref<1x16x256xf32, #tpu.memory_space<vmem>>, vector<1x16x256xf32>,
    %c0_43 = arith.constant 0 : index
    %c0_44 = arith.constant 0 : index
    %c0_45 = arith.constant 0 : index
    %95 = vector.load %arg13[%c0_43, %c0_44, %c0_45] : memref<1x16x256xf32, #tpu.memory_space<vmem>>, vector<1x16x256xf32>
    %96 = vector.shape_cast %95 : vector<1x16x256xf32> to vector<16x256xf32>
    %97 = vector.shape_cast %91 : vector<16x256xf32> to vector<1x16x256xf32>
    tpu.vector_store %arg13[%c0_43, %c0_44, %c0_45], %97 {strides = array<i32>} : memref<1x16x256xf32, #tpu.memory_space<vmem>>, vector<1x16x256xf32>,
    return
  }
  func.func @transform_0(%arg0: i32) -> (i32, i32, i32) {
    %c0_i32 = arith.constant 0 : i32
    %c0_i32_0 = arith.constant 0 : i32
    %c0_i32_1 = arith.constant 0 : i32
    return %arg0, %c0_i32, %c0_i32_0 : i32, i32, i32
  }
  func.func @transform_1(%arg0: i32) -> (i32, i32, i32) {
    %c0_i32 = arith.constant 0 : i32
    %c0_i32_0 = arith.constant 0 : i32
    %c0_i32_1 = arith.constant 0 : i32
    return %arg0, %c0_i32, %c0_i32_0 : i32, i32, i32
  }
  func.func @transform_2(%arg0: i32) -> (i32, i32) {
    %c0_i32 = arith.constant 0 : i32
    %c0_i32_0 = arith.constant 0 : i32
    %c0_i32_1 = arith.constant 0 : i32
    return %c0_i32, %c0_i32_0 : i32, i32
  }
  func.func @transform_3(%arg0: i32) -> (i32, i32) {
    %c0_i32 = arith.constant 0 : i32
    %c0_i32_0 = arith.constant 0 : i32
    %c0_i32_1 = arith.constant 0 : i32
    return %c0_i32, %c0_i32_0 : i32, i32
  }
  func.func @transform_4(%arg0: i32) -> (i32, i32) {
    %c0_i32 = arith.constant 0 : i32
    %c0_i32_0 = arith.constant 0 : i32
    %c0_i32_1 = arith.constant 0 : i32
    return %c0_i32, %c0_i32_0 : i32, i32
  }
  func.func @transform_5(%arg0: i32) -> (i32, i32) {
    %c0_i32 = arith.constant 0 : i32
    %c0_i32_0 = arith.constant 0 : i32
    %c0_i32_1 = arith.constant 0 : i32
    return %c0_i32, %c0_i32_0 : i32, i32
  }
  func.func @transform_6(%arg0: i32) -> (i32, i32) {
    %c0_i32 = arith.constant 0 : i32
    %c0_i32_0 = arith.constant 0 : i32
    %c0_i32_1 = arith.constant 0 : i32
    return %c0_i32, %c0_i32_0 : i32, i32
  }
  func.func @transform_7(%arg0: i32) -> (i32, i32) {
    %c0_i32 = arith.constant 0 : i32
    %c0_i32_0 = arith.constant 0 : i32
    %c0_i32_1 = arith.constant 0 : i32
    return %c0_i32, %c0_i32_0 : i32, i32
  }
  func.func @transform_8(%arg0: i32) -> (i32, i32) {
    %c0_i32 = arith.constant 0 : i32
    %c0_i32_0 = arith.constant 0 : i32
    %c0_i32_1 = arith.constant 0 : i32
    return %c0_i32, %c0_i32_0 : i32, i32
  }
  func.func @transform_9(%arg0: i32) -> (i32, i32) {
    %c0_i32 = arith.constant 0 : i32
    %c0_i32_0 = arith.constant 0 : i32
    %c0_i32_1 = arith.constant 0 : i32
    return %c0_i32, %c0_i32_0 : i32, i32
  }
  func.func @transform_10(%arg0: i32) -> (i32, i32) {
    %c0_i32 = arith.constant 0 : i32
    %c0_i32_0 = arith.constant 0 : i32
    %c0_i32_1 = arith.constant 0 : i32
    return %c0_i32, %c0_i32_0 : i32, i32
  }
  func.func @transform_11(%arg0: i32) -> (i32, i32) {
    %c0_i32 = arith.constant 0 : i32
    %c0_i32_0 = arith.constant 0 : i32
    %c0_i32_1 = arith.constant 0 : i32
    return %c0_i32, %c0_i32_0 : i32, i32
  }
  func.func @transform_12(%arg0: i32) -> (i32, i32, i32) {
    %c0_i32 = arith.constant 0 : i32
    %c0_i32_0 = arith.constant 0 : i32
    %c0_i32_1 = arith.constant 0 : i32
    return %arg0, %c0_i32, %c0_i32_0 : i32, i32, i32
  }
  func.func @transform_13(%arg0: i32) -> (i32, i32, i32) {
    %c0_i32 = arith.constant 0 : i32
    %c0_i32_0 = arith.constant 0 : i32
    %c0_i32_1 = arith.constant 0 : i32
    return %arg0, %c0_i32, %c0_i32_0 : i32, i32, i32
  }
}

</mosaic_0001>

<llo_original>
// kernel: tpu_custom_call.1
$region0: #{tpu_custom_call.1}
  #allocation0 [shape = 'u32[]', space=smem, size = 0x4, offset = 0x4, fixed_abs, tag = 'smem constant byte address 0x4 - core index']
  #allocation1 [shape = 'u32[144,128]{1,0:T(1,128)}', space=vmem, size = 0x12000, scoped, tag = 'internal scratch']
  %s0 = inlined_call_operand.hbm [shape: f32[2,16,256], index: 0, kind: input, shape index: {}]
  %s1 = inlined_call_operand.hbm [shape: f32[2,16,256], index: 1, kind: input, shape index: {}]
  %s2 = inlined_call_operand.hbm [shape: bf16[32,16], index: 2, kind: input, shape index: {}]
  %s3 = inlined_call_operand.hbm [shape: f32[32,1], index: 3, kind: input, shape index: {}]
  %s4 = inlined_call_operand.hbm [shape: bf16[24,16], index: 4, kind: input, shape index: {}]
  %s5 = inlined_call_operand.hbm [shape: f32[24,1], index: 5, kind: input, shape index: {}]
  %s6 = inlined_call_operand.hbm [shape: bf16[32,16], index: 6, kind: input, shape index: {}]
  %s7 = inlined_call_operand.hbm [shape: bf16[32,16], index: 7, kind: input, shape index: {}]
  %s8 = inlined_call_operand.hbm [shape: f32[32,1], index: 8, kind: input, shape index: {}]
  %s9 = inlined_call_operand.hbm [shape: bf16[48,32], index: 9, kind: input, shape index: {}]
  %s10 = inlined_call_operand.hbm [shape: bf16[48,16], index: 10, kind: input, shape index: {}]
  %s11 = inlined_call_operand.hbm [shape: f32[48,1], index: 11, kind: input, shape index: {}]
  %s12 = inlined_call_operand.hbm [shape: f32[2,16,256], index: 12, kind: output, shape index: {0}]
  %s13 = inlined_call_operand.hbm [shape: f32[2,16,256], index: 13, kind: output, shape index: {1}]
  %14 = xla_tuple %s12, %s13
  %s15 = sld [smem:[#allocation0]]
  $region137: #{tpu_custom_call.1} parent=0
    _
  %s17 = ssub.s32 1, %s15
  %s18 = scalar_select 0, %s17, %s15
  $region1: #{tpu_custom_call.1} parent=0
    #allocation2 [shape = 'u8[32768]{0}', space=vmem, size = 0x8000, scoped, tag = 'input window, operand 0']
    #allocation3 [shape = 's32[2]{0}', space=sflag, size = 0x8, scoped, tag = 'scoped memory for tpu_custom_call.1']
    #allocation4 [shape = 's32[2]{0}', space=sflag, size = 0x8, scoped, tag = 'scoped memory for tpu_custom_call.1']
    #allocation5 [shape = 'u8[32768]{0}', space=vmem, size = 0x8000, scoped, tag = 'input window, operand 1']
    #allocation6 [shape = 's32[2]{0}', space=sflag, size = 0x8, scoped, tag = 'scoped memory for tpu_custom_call.1']
    #allocation7 [shape = 'u8[8192]{0}', space=vmem, size = 0x2000, scoped, tag = 'input window, operand 2, single buffered']
    #allocation8 [shape = 'u8[16384]{0}', space=vmem, size = 0x4000, scoped, tag = 'input window, operand 3, single buffered']
    #allocation9 [shape = 's32[1]{0}', space=sflag, size = 0x4, scoped, tag = 'scoped memory for tpu_custom_call.1']
    #allocation10 [shape = 'u8[6144]{0}', space=vmem, size = 0x1800, scoped, tag = 'input window, operand 4, single buffered']
    #allocation11 [shape = 'u8[12288]{0}', space=vmem, size = 0x3000, scoped, tag = 'input window, operand 5, single buffered']
    #allocation12 [shape = 's32[1]{0}', space=sflag, size = 0x4, scoped, tag = 'scoped memory for tpu_custom_call.1']
    #allocation13 [shape = 'u8[8192]{0}', space=vmem, size = 0x2000, scoped, tag = 'input window, operand 6, single buffered']
    #allocation14 [shape = 'u8[8192]{0}', space=vmem, size = 0x2000, scoped, tag = 'input window, operand 7, single buffered']
    #allocation15 [shape = 's32[1]{0}', space=sflag, size = 0x4, scoped, tag = 'scoped memory for tpu_custom_call.1']
    #allocation16 [shape = 'u8[16384]{0}', space=vmem, size = 0x4000, scoped, tag = 'input window, operand 8, single buffered']
    #allocation17 [shape = 'u8[12288]{0}', space=vmem, size = 0x3000, scoped, tag = 'input window, operand 9, single buffered']
    #allocation18 [shape = 's32[1]{0}', space=sflag, size = 0x4, scoped, tag = 'scoped memory for tpu_custom_call.1']
    #allocation19 [shape = 'u8[12288]{0}', space=vmem, size = 0x3000, scoped, tag = 'input window, operand 10, single buffered']
    #allocation20 [shape = 'u8[24576]{0}', space=vmem, size = 0x6000, scoped, tag = 'input window, operand 11, single buffered']
    #allocation21 [shape = 's32[1]{0}', space=sflag, size = 0x4, scoped, tag = 'scoped memory for tpu_custom_call.1']
    #allocation22 [shape = 'u8[32768]{0}', space=vmem, size = 0x8000, scoped, tag = 'output window, operand 0']
    #allocation23 [shape = 'u8[32768]{0}', space=vmem, size = 0x8000, scoped, tag = 'output window, operand 1']
    #allocation24 [shape = 's32[2]{0}', space=sflag, size = 0x8, scoped, tag = 'scoped memory for tpu_custom_call.1']
    %19 = vsyncpa [#allocation3], 0
    %s20 = scalar_lea.sflag [#allocation3], 1
    %21 = vsyncpa %s20, 0
    %22 = vsyncpa [#allocation6], 0
    %s23 = scalar_lea.sflag [#allocation6], 1
    %24 = vsyncpa %s23, 0
    %25 = vsyncpa [#allocation9], 0
    %26 = vsyncpa [#allocation12], 0
    %27 = vsyncpa [#allocation15], 0
    %28 = vsyncpa [#allocation18], 0
    %29 = vsyncpa [#allocation21], 0
    %30 = vsyncpa [#allocation4], 0
    %s31 = scalar_lea.sflag [#allocation4], 1
    %32 = vsyncpa %s31, 0
    %33 = vsyncpa [#allocation24], 0
    %s34 = scalar_lea.sflag [#allocation24], 1
    %35 = vsyncpa %s34, 0
    loop: start=0, step=1, limit=4
    $region2: #{tpu_custom_call.1} parent=1 // loop_pre_header
      _
    $region3: #{tpu_custom_call.1} parent=1 // loop_header
      %s37 = sphi 0, %s41
      %p38 = scmp.ge.s32.totalorder %s37, 4
      %s47 = sphi 0, %s49
      %s50 = sphi 0, %s47
      %s51 = sphi 0, %s50
      %s67 = sphi 0, %s51
      %s73 = sphi 0, %s75
      %s76 = sphi 0, %s73
      %s77 = sphi 0, %s76
      %s93 = sphi 0, %s77
      %s97 = sphi 0, %s97
      %s99 = sphi 0, %s97
      %s100 = sphi 0, %s99
      %s114 = sphi 0, %s100
      %s118 = sphi 0, %s118
      %s120 = sphi 0, %s118
      %s121 = sphi 0, %s120
      %s135 = sphi 0, %s121
      %s139 = sphi 0, %s139
      %s141 = sphi 0, %s139
      %s142 = sphi 0, %s141
      %s156 = sphi 0, %s142
      %s160 = sphi 0, %s160
      %s162 = sphi 0, %s160
      %s163 = sphi 0, %s162
      %s177 = sphi 0, %s163
      %s181 = sphi 0, %s181
      %s183 = sphi 0, %s181
      %s184 = sphi 0, %s183
      %s198 = sphi 0, %s184
      %s202 = sphi 0, %s202
      %s204 = sphi 0, %s202
      %s205 = sphi 0, %s204
      %s219 = sphi 0, %s205
      %s223 = sphi 0, %s223
      %s225 = sphi 0, %s223
      %s226 = sphi 0, %s225
      %s240 = sphi 0, %s226
      %s244 = sphi 0, %s244
      %s246 = sphi 0, %s244
      %s247 = sphi 0, %s246
      %s261 = sphi 0, %s247
      %s265 = sphi 0, %s265
      %s267 = sphi 0, %s265
      %s268 = sphi 0, %s267
      %s282 = sphi 0, %s268
      %s286 = sphi 0, %s286
      %s288 = sphi 0, %s286
      %s289 = sphi 0, %s288
      %s303 = sphi 0, %s289
      %s309 = sphi 0, %s311
      %s312 = sphi 0, %s309
      %s313 = sphi 0, %s312
      %s329 = sphi 0, %s313
      %s335 = sphi 0, %s337
      %s338 = sphi 0, %s335
      %s339 = sphi 0, %s338
      %s355 = sphi 0, %s339
    $region4: #{tpu_custom_call.1} parent=1 // loop_header_branch
      %40 = sbr.rel (%p38) target = $region8
    $region5: #{tpu_custom_call.1} parent=1 // loop_body
      %s42 = ssub.s32 %s37, 1
      %s43 = ssub.s32 %s37, 2
      %s44 = sadd.s32 %s37, 1
      %s45 = ssub.s32 %s37, %s44
      %p46 = scmp.eq.s32.totalorder %s45, 0
      %s48 = sadd.s32 %s47, 1
      %s49 = scalar_select %p46, %s47, %s48
      %p52 = pneg %p46
      %p53 = scmp.eq.s32.totalorder %s37, 1
      %p54 = por %p52, %p53
      %p55 = scmp.ne.s32.totalorder %s47, %s50
      %p56 = scmp.eq.s32.totalorder %s37, 0
      %p57 = por %p55, %p56
      %p58 = scmp.ne.s32.totalorder %s47, %s50
      %p59 = scmp.eq.s32.totalorder %s42, 1
      %p60 = por %p58, %p59
      %p61 = scmp.ne.s32.totalorder %s50, %s51
      %p62 = scmp.eq.s32.totalorder %s42, 0
      %p63 = por %p61, %p62
      %p64 = scmp.ne.s32.totalorder %s50, %s51
      %p65 = scmp.eq.s32.totalorder %s43, 1
      %p66 = por %p64, %p65
      %p68 = scmp.ne.s32.totalorder %s51, %s67
      %p69 = scmp.eq.s32.totalorder %s43, 0
      %p70 = por %p68, %p69
      %s71 = ssub.s32 %s37, %s44
      %p72 = scmp.eq.s32.totalorder %s71, 0
      %s74 = sadd.s32 %s73, 1
      %s75 = scalar_select %p72, %s73, %s74
      %p78 = pneg %p72
      %p79 = scmp.eq.s32.totalorder %s37, 1
      %p80 = por %p78, %p79
      %p81 = scmp.ne.s32.totalorder %s73, %s76
      %p82 = scmp.eq.s32.totalorder %s37, 0
      %p83 = por %p81, %p82
      %p84 = scmp.ne.s32.totalorder %s73, %s76
      %p85 = scmp.eq.s32.totalorder %s42, 1
      %p86 = por %p84, %p85
      %p87 = scmp.ne.s32.totalorder %s76, %s77
      %p88 = scmp.eq.s32.totalorder %s42, 0
      %p89 = por %p87, %p88
      %p90 = scmp.ne.s32.totalorder %s76, %s77
      %p91 = scmp.eq.s32.totalorder %s43, 1
      %p92 = por %p90, %p91
      %p94 = scmp.ne.s32.totalorder %s77, %s93
      %p95 = scmp.eq.s32.totalorder %s43, 0
      %p96 = por %p94, %p95
      %s98 = sadd.s32 %s97, 1
      %p101 = scmp.eq.s32.totalorder %s37, 1
      %p102 = scmp.ne.s32.totalorder %s97, %s99
      %p103 = scmp.eq.s32.totalorder %s37, 0
      %p104 = por %p102, %p103
      %p105 = scmp.ne.s32.totalorder %s97, %s99
      %p106 = scmp.eq.s32.totalorder %s42, 1
      %p107 = por %p105, %p106
      %p108 = scmp.ne.s32.totalorder %s99, %s100
      %p109 = scmp.eq.s32.totalorder %s42, 0
      %p110 = por %p108, %p109
      %p111 = scmp.ne.s32.totalorder %s99, %s100
      %p112 = scmp.eq.s32.totalorder %s43, 1
      %p113 = por %p111, %p112
      %p115 = scmp.ne.s32.totalorder %s100, %s114
      %p116 = scmp.eq.s32.totalorder %s43, 0
      %p117 = por %p115, %p116
      %s119 = sadd.s32 %s118, 1
      %p122 = scmp.eq.s32.totalorder %s37, 1
      %p123 = scmp.ne.s32.totalorder %s118, %s120
      %p124 = scmp.eq.s32.totalorder %s37, 0
      %p125 = por %p123, %p124
      %p126 = scmp.ne.s32.totalorder %s118, %s120
      %p127 = scmp.eq.s32.totalorder %s42, 1
      %p128 = por %p126, %p127
      %p129 = scmp.ne.s32.totalorder %s120, %s121
      %p130 = scmp.eq.s32.totalorder %s42, 0
      %p131 = por %p129, %p130
      %p132 = scmp.ne.s32.totalorder %s120, %s121
      %p133 = scmp.eq.s32.totalorder %s43, 1
      %p134 = por %p132, %p133
      %p136 = scmp.ne.s32.totalorder %s121, %s135
      %p137 = scmp.eq.s32.totalorder %s43, 0
      %p138 = por %p136, %p137
      %s140 = sadd.s32 %s139, 1
      %p143 = scmp.eq.s32.totalorder %s37, 1
      %p144 = scmp.ne.s32.totalorder %s139, %s141
      %p145 = scmp.eq.s32.totalorder %s37, 0
      %p146 = por %p144, %p145
      %p147 = scmp.ne.s32.totalorder %s139, %s141
      %p148 = scmp.eq.s32.totalorder %s42, 1
      %p149 = por %p147, %p148
      %p150 = scmp.ne.s32.totalorder %s141, %s142
      %p151 = scmp.eq.s32.totalorder %s42, 0
      %p152 = por %p150, %p151
      %p153 = scmp.ne.s32.totalorder %s141, %s142
      %p154 = scmp.eq.s32.totalorder %s43, 1
      %p155 = por %p153, %p154
      %p157 = scmp.ne.s32.totalorder %s142, %s156
      %p158 = scmp.eq.s32.totalorder %s43, 0
      %p159 = por %p157, %p158
      %s161 = sadd.s32 %s160, 1
      %p164 = scmp.eq.s32.totalorder %s37, 1
      %p165 = scmp.ne.s32.totalorder %s160, %s162
      %p166 = scmp.eq.s32.totalorder %s37, 0
      %p167 = por %p165, %p166
      %p168 = scmp.ne.s32.totalorder %s160, %s162
      %p169 = scmp.eq.s32.totalorder %s42, 1
      %p170 = por %p168, %p169
      %p171 = scmp.ne.s32.totalorder %s162, %s163
      %p172 = scmp.eq.s32.totalorder %s42, 0
      %p173 = por %p171, %p172
      %p174 = scmp.ne.s32.totalorder %s162, %s163
      %p175 = scmp.eq.s32.totalorder %s43, 1
      %p176 = por %p174, %p175
      %p178 = scmp.ne.s32.totalorder %s163, %s177
      %p179 = scmp.eq.s32.totalorder %s43, 0
      %p180 = por %p178, %p179
      %s182 = sadd.s32 %s181, 1
      %p185 = scmp.eq.s32.totalorder %s37, 1
      %p186 = scmp.ne.s32.totalorder %s181, %s183
      %p187 = scmp.eq.s32.totalorder %s37, 0
      %p188 = por %p186, %p187
      %p189 = scmp.ne.s32.totalorder %s181, %s183
      %p190 = scmp.eq.s32.totalorder %s42, 1
      %p191 = por %p189, %p190
      %p192 = scmp.ne.s32.totalorder %s183, %s184
      %p193 = scmp.eq.s32.totalorder %s42, 0
      %p194 = por %p192, %p193
      %p195 = scmp.ne.s32.totalorder %s183, %s184
      %p196 = scmp.eq.s32.totalorder %s43, 1
      %p197 = por %p195, %p196
      %p199 = scmp.ne.s32.totalorder %s184, %s198
      %p200 = scmp.eq.s32.totalorder %s43, 0
      %p201 = por %p199, %p200
      %s203 = sadd.s32 %s202, 1
      %p206 = scmp.eq.s32.totalorder %s37, 1
      %p207 = scmp.ne.s32.totalorder %s202, %s204
      %p208 = scmp.eq.s32.totalorder %s37, 0
      %p209 = por %p207, %p208
      %p210 = scmp.ne.s32.totalorder %s202, %s204
      %p211 = scmp.eq.s32.totalorder %s42, 1
      %p212 = por %p210, %p211
      %p213 = scmp.ne.s32.totalorder %s204, %s205
      %p214 = scmp.eq.s32.totalorder %s42, 0
      %p215 = por %p213, %p214
      %p216 = scmp.ne.s32.totalorder %s204, %s205
      %p217 = scmp.eq.s32.totalorder %s43, 1
      %p218 = por %p216, %p217
      %p220 = scmp.ne.s32.totalorder %s205, %s219
      %p221 = scmp.eq.s32.totalorder %s43, 0
      %p222 = por %p220, %p221
      %s224 = sadd.s32 %s223, 1
      %p227 = scmp.eq.s32.totalorder %s37, 1
      %p228 = scmp.ne.s32.totalorder %s223, %s225
      %p229 = scmp.eq.s32.totalorder %s37, 0
      %p230 = por %p228, %p229
      %p231 = scmp.ne.s32.totalorder %s223, %s225
      %p232 = scmp.eq.s32.totalorder %s42, 1
      %p233 = por %p231, %p232
      %p234 = scmp.ne.s32.totalorder %s225, %s226
      %p235 = scmp.eq.s32.totalorder %s42, 0
      %p236 = por %p234, %p235
      %p237 = scmp.ne.s32.totalorder %s225, %s226
      %p238 = scmp.eq.s32.totalorder %s43, 1
      %p239 = por %p237, %p238
      %p241 = scmp.ne.s32.totalorder %s226, %s240
      %p242 = scmp.eq.s32.totalorder %s43, 0
      %p243 = por %p241, %p242
      %s245 = sadd.s32 %s244, 1
      %p248 = scmp.eq.s32.totalorder %s37, 1
      %p249 = scmp.ne.s32.totalorder %s244, %s246
      %p250 = scmp.eq.s32.totalorder %s37, 0
      %p251 = por %p249, %p250
      %p252 = scmp.ne.s32.totalorder %s244, %s246
      %p253 = scmp.eq.s32.totalorder %s42, 1
      %p254 = por %p252, %p253
      %p255 = scmp.ne.s32.totalorder %s246, %s247
      %p256 = scmp.eq.s32.totalorder %s42, 0
      %p257 = por %p255, %p256
      %p258 = scmp.ne.s32.totalorder %s246, %s247
      %p259 = scmp.eq.s32.totalorder %s43, 1
      %p260 = por %p258, %p259
      %p262 = scmp.ne.s32.totalorder %s247, %s261
      %p263 = scmp.eq.s32.totalorder %s43, 0
      %p264 = por %p262, %p263
      %s266 = sadd.s32 %s265, 1
      %p269 = scmp.eq.s32.totalorder %s37, 1
      %p270 = scmp.ne.s32.totalorder %s265, %s267
      %p271 = scmp.eq.s32.totalorder %s37, 0
      %p272 = por %p270, %p271
      %p273 = scmp.ne.s32.totalorder %s265, %s267
      %p274 = scmp.eq.s32.totalorder %s42, 1
      %p275 = por %p273, %p274
      %p276 = scmp.ne.s32.totalorder %s267, %s268
      %p277 = scmp.eq.s32.totalorder %s42, 0
      %p278 = por %p276, %p277
      %p279 = scmp.ne.s32.totalorder %s267, %s268
      %p280 = scmp.eq.s32.totalorder %s43, 1
      %p281 = por %p279, %p280
      %p283 = scmp.ne.s32.totalorder %s268, %s282
      %p284 = scmp.eq.s32.totalorder %s43, 0
      %p285 = por %p283, %p284
      %s287 = sadd.s32 %s286, 1
      %p290 = scmp.eq.s32.totalorder %s37, 1
      %p291 = scmp.ne.s32.totalorder %s286, %s288
      %p292 = scmp.eq.s32.totalorder %s37, 0
      %p293 = por %p291, %p292
      %p294 = scmp.ne.s32.totalorder %s286, %s288
      %p295 = scmp.eq.s32.totalorder %s42, 1
      %p296 = por %p294, %p295
      %p297 = scmp.ne.s32.totalorder %s288, %s289
      %p298 = scmp.eq.s32.totalorder %s42, 0
      %p299 = por %p297, %p298
      %p300 = scmp.ne.s32.totalorder %s288, %s289
      %p301 = scmp.eq.s32.totalorder %s43, 1
      %p302 = por %p300, %p301
      %p304 = scmp.ne.s32.totalorder %s289, %s303
      %p305 = scmp.eq.s32.totalorder %s43, 0
      %p306 = por %p304, %p305
      %s307 = ssub.s32 %s37, %s44
      %p308 = scmp.eq.s32.totalorder %s307, 0
      %s310 = sadd.s32 %s309, 1
      %s311 = scalar_select %p308, %s309, %s310
      %p314 = pneg %p308
      %p315 = scmp.eq.s32.totalorder %s37, 1
      %p316 = por %p314, %p315
      %p317 = scmp.ne.s32.totalorder %s309, %s312
      %p318 = scmp.eq.s32.totalorder %s37, 0
      %p319 = por %p317, %p318
      %p320 = scmp.ne.s32.totalorder %s309, %s312
      %p321 = scmp.eq.s32.totalorder %s42, 1
      %p322 = por %p320, %p321
      %p323 = scmp.ne.s32.totalorder %s312, %s313
      %p324 = scmp.eq.s32.totalorder %s42, 0
      %p325 = por %p323, %p324
      %p326 = scmp.ne.s32.totalorder %s312, %s313
      %p327 = scmp.eq.s32.totalorder %s43, 1
      %p328 = por %p326, %p327
      %p330 = scmp.ne.s32.totalorder %s313, %s329
      %p331 = scmp.eq.s32.totalorder %s43, 0
      %p332 = por %p330, %p331
      %s333 = ssub.s32 %s37, %s44
      %p334 = scmp.eq.s32.totalorder %s333, 0
      %s336 = sadd.s32 %s335, 1
      %s337 = scalar_select %p334, %s335, %s336
      %p340 = pneg %p334
      %p341 = scmp.eq.s32.totalorder %s37, 1
      %p342 = por %p340, %p341
      %p343 = scmp.ne.s32.totalorder %s335, %s338
      %p344 = scmp.eq.s32.totalorder %s37, 0
      %p345 = por %p343, %p344
      %p346 = scmp.ne.s32.totalorder %s335, %s338
      %p347 = scmp.eq.s32.totalorder %s42, 1
      %p348 = por %p346, %p347
      %p349 = scmp.ne.s32.totalorder %s338, %s339
      %p350 = scmp.eq.s32.totalorder %s42, 0
      %p351 = por %p349, %p350
      %p352 = scmp.ne.s32.totalorder %s338, %s339
      %p353 = scmp.eq.s32.totalorder %s43, 1
      %p354 = por %p352, %p353
      %p356 = scmp.ne.s32.totalorder %s339, %s355
      %p357 = scmp.eq.s32.totalorder %s43, 0
      %p358 = por %p356, %p357
      %p359 = scmp.le.s32.totalorder 1, %s37
      %p360 = scmp.lt.s32.totalorder %s37, 3
      %p361 = pnand %p359, %p360
      %p362 = pneg %p361
      // Predicated region
      $region9: #{tpu_custom_call.1} parent=5 // pred_check
        _
      $region10: #{tpu_custom_call.1} parent=5 // pred_check_branch
        %364 = sbr.rel (%p361) target = $region12
      $region11: #{tpu_custom_call.1} parent=5 // pred_region
        %s365 = ssub.s32 %s37, 1
        // Predicated region
        $region13: #{tpu_custom_call.1} parent=11 // pred_check
          %p366 = pneg %p110
        $region14: #{tpu_custom_call.1} parent=11 // pred_check_branch
          %368 = sbr.rel (%p366) target = $region16
        $region15: #{tpu_custom_call.1} parent=11 // pred_region
          %s370 = ssub.s32 256, 256
          %371 = vsyncadd [#allocation6], %s370
          %s372 = sshll.u32 [#allocation7], 4
          %s373 = int_to_ptr.vmem [resolvable:$true] %s372
          %378 = dma.hbm_to_vmem [thread:$0]  %s2, 256, %s373, [#allocation6], 64, 64, 4
        $region16: #{tpu_custom_call.1} parent=11 // pred_fallthru
          _
        // Predicated region
        $region17: #{tpu_custom_call.1} parent=11 // pred_check
          %p379 = pneg %p131
        $region18: #{tpu_custom_call.1} parent=11 // pred_check_branch
          %381 = sbr.rel (%p379) target = $region20
        $region19: #{tpu_custom_call.1} parent=11 // pred_region
          %s383 = ssub.s32 512, 512
          %384 = vsyncadd [#allocation9], %s383
          %s385 = sshll.u32 [#allocation8], 4
          %s386 = int_to_ptr.vmem [resolvable:$true] %s385
          %391 = dma.hbm_to_vmem [thread:$0]  %s3, 512, %s386, [#allocation9], 128, 128, 8
        $region20: #{tpu_custom_call.1} parent=11 // pred_fallthru
          _
        // Predicated region
        $region21: #{tpu_custom_call.1} parent=11 // pred_check
          %p392 = pneg %p152
        $region22: #{tpu_custom_call.1} parent=11 // pred_check_branch
          %394 = sbr.rel (%p392) target = $region24
        $region23: #{tpu_custom_call.1} parent=11 // pred_region
          %s396 = ssub.s32 192, 192
          %397 = vsyncadd [#allocation9], %s396
          %s398 = sshll.u32 [#allocation10], 4
          %s399 = int_to_ptr.vmem [resolvable:$true] %s398
          %404 = dma.hbm_to_vmem [thread:$0]  %s4, 192, %s399, [#allocation9], 64, 64, 4
        $region24: #{tpu_custom_call.1} parent=11 // pred_fallthru
          _
        // Predicated region
        $region25: #{tpu_custom_call.1} parent=11 // pred_check
          %p405 = pneg %p173
        $region26: #{tpu_custom_call.1} parent=11 // pred_check_branch
          %407 = sbr.rel (%p405) target = $region28
        $region27: #{tpu_custom_call.1} parent=11 // pred_region
          %s409 = ssub.s32 384, 384
          %410 = vsyncadd [#allocation12], %s409
          %s411 = sshll.u32 [#allocation11], 4
          %s412 = int_to_ptr.vmem [resolvable:$true] %s411
          %417 = dma.hbm_to_vmem [thread:$0]  %s5, 384, %s412, [#allocation12], 128, 128, 8
        $region28: #{tpu_custom_call.1} parent=11 // pred_fallthru
          _
        // Predicated region
        $region29: #{tpu_custom_call.1} parent=11 // pred_check
          %p418 = pneg %p194
        $region30: #{tpu_custom_call.1} parent=11 // pred_check_branch
          %420 = sbr.rel (%p418) target = $region32
        $region31: #{tpu_custom_call.1} parent=11 // pred_region
          %s422 = ssub.s32 256, 256
          %423 = vsyncadd [#allocation12], %s422
          %s424 = sshll.u32 [#allocation13], 4
          %s425 = int_to_ptr.vmem [resolvable:$true] %s424
          %430 = dma.hbm_to_vmem [thread:$0]  %s6, 256, %s425, [#allocation12], 64, 64, 4
        $region32: #{tpu_custom_call.1} parent=11 // pred_fallthru
          _
        // Predicated region
        $region33: #{tpu_custom_call.1} parent=11 // pred_check
          %p431 = pneg %p215
        $region34: #{tpu_custom_call.1} parent=11 // pred_check_branch
          %433 = sbr.rel (%p431) target = $region36
        $region35: #{tpu_custom_call.1} parent=11 // pred_region
          %s435 = ssub.s32 256, 256
          %436 = vsyncadd [#allocation15], %s435
          %s437 = sshll.u32 [#allocation14], 4
          %s438 = int_to_ptr.vmem [resolvable:$true] %s437
          %443 = dma.hbm_to_vmem [thread:$0]  %s7, 256, %s438, [#allocation15], 64, 64, 4
        $region36: #{tpu_custom_call.1} parent=11 // pred_fallthru
          _
        // Predicated region
        $region37: #{tpu_custom_call.1} parent=11 // pred_check
          %p444 = pneg %p236
        $region38: #{tpu_custom_call.1} parent=11 // pred_check_branch
          %446 = sbr.rel (%p444) target = $region40
        $region39: #{tpu_custom_call.1} parent=11 // pred_region
          %s448 = ssub.s32 512, 512
          %449 = vsyncadd [#allocation15], %s448
          %s450 = sshll.u32 [#allocation16], 4
          %s451 = int_to_ptr.vmem [resolvable:$true] %s450
          %456 = dma.hbm_to_vmem [thread:$0]  %s8, 512, %s451, [#allocation15], 128, 128, 8
        $region40: #{tpu_custom_call.1} parent=11 // pred_fallthru
          _
        // Predicated region
        $region41: #{tpu_custom_call.1} parent=11 // pred_check
          %p457 = pneg %p257
        $region42: #{tpu_custom_call.1} parent=11 // pred_check_branch
          %459 = sbr.rel (%p457) target = $region44
        $region43: #{tpu_custom_call.1} parent=11 // pred_region
          %s461 = ssub.s32 384, 384
          %462 = vsyncadd [#allocation18], %s461
          %s463 = sshll.u32 [#allocation17], 4
          %s464 = int_to_ptr.vmem [resolvable:$true] %s463
          %469 = dma.hbm_to_vmem [thread:$0]  %s9, 384, %s464, [#allocation18], 64, 64, 4
        $region44: #{tpu_custom_call.1} parent=11 // pred_fallthru
          _
        // Predicated region
        $region45: #{tpu_custom_call.1} parent=11 // pred_check
          %p470 = pneg %p278
        $region46: #{tpu_custom_call.1} parent=11 // pred_check_branch
          %472 = sbr.rel (%p470) target = $region48
        $region47: #{tpu_custom_call.1} parent=11 // pred_region
          %s474 = ssub.s32 384, 384
          %475 = vsyncadd [#allocation18], %s474
          %s476 = sshll.u32 [#allocation19], 4
          %s477 = int_to_ptr.vmem [resolvable:$true] %s476
          %482 = dma.hbm_to_vmem [thread:$0]  %s10, 384, %s477, [#allocation18], 64, 64, 4
        $region48: #{tpu_custom_call.1} parent=11 // pred_fallthru
          _
        // Predicated region
        $region49: #{tpu_custom_call.1} parent=11 // pred_check
          %p483 = pneg %p299
        $region50: #{tpu_custom_call.1} parent=11 // pred_check_branch
          %485 = sbr.rel (%p483) target = $region52
        $region51: #{tpu_custom_call.1} parent=11 // pred_region
          %s487 = ssub.s32 768, 768
          %488 = vsyncadd [#allocation21], %s487
          %s489 = sshll.u32 [#allocation20], 4
          %s490 = int_to_ptr.vmem [resolvable:$true] %s489
          %495 = dma.hbm_to_vmem [thread:$0]  %s11, 768, %s490, [#allocation21], 128, 128, 8
        $region52: #{tpu_custom_call.1} parent=11 // pred_fallthru
          _
      $region12: #{tpu_custom_call.1} parent=5 // pred_fallthru
        _
      %p496 = scmp.lt.s32.totalorder %s37, 2
      // Predicated region
      $region53: #{tpu_custom_call.1} parent=5 // pred_check
        %p497 = pneg %p496
      $region54: #{tpu_custom_call.1} parent=5 // pred_check_branch
        %499 = sbr.rel (%p497) target = $region56
      $region55: #{tpu_custom_call.1} parent=5 // pred_region
        // Predicated region
        $region57: #{tpu_custom_call.1} parent=55 // pred_check
          %p500 = pneg %p57
        $region58: #{tpu_custom_call.1} parent=55 // pred_check_branch
          %502 = sbr.rel (%p500) target = $region60
        $region59: #{tpu_custom_call.1} parent=55 // pred_region
          %s503 = sand.u32 %s47, 1
          %s504 = scalar_lea.sflag [#allocation3], %s503
          %s505 = sand.u32 %s47, 1
          %s506 = smul.addr %s505, 32
          %s507 = scalar_lea.vmem [#allocation2], %s506
          %s509 = ssub.s32 512, 512
          %510 = vsyncadd %s504, %s509
          %s511 = smul.addr %s37, 4
          %s512 = smul.addr %s511, 128
          %s513 = scalar_lea.hbm %s0, %s512
          %s514 = sshll.u32 %s507, 4
          %s515 = int_to_ptr.vmem [resolvable:$true] %s514
          %520 = dma.hbm_to_vmem [thread:$0]  %s513, 512, %s515, %s504, 256, 256, 16
        $region60: #{tpu_custom_call.1} parent=55 // pred_fallthru
          _
        // Predicated region
        $region61: #{tpu_custom_call.1} parent=55 // pred_check
          %p521 = pneg %p83
        $region62: #{tpu_custom_call.1} parent=55 // pred_check_branch
          %523 = sbr.rel (%p521) target = $region64
        $region63: #{tpu_custom_call.1} parent=55 // pred_region
          %s524 = sand.u32 %s37, 1
          %s525 = scalar_lea.sflag [#allocation6], %s524
          %s526 = sand.u32 %s73, 1
          %s527 = smul.addr %s526, 32
          %s528 = scalar_lea.vmem [#allocation5], %s527
          %s530 = ssub.s32 512, 512
          %531 = vsyncadd %s525, %s530
          %s532 = smul.addr %s37, 4
          %s533 = smul.addr %s532, 128
          %s534 = scalar_lea.hbm %s1, %s533
          %s535 = sshll.u32 %s528, 4
          %s536 = int_to_ptr.vmem [resolvable:$true] %s535
          %541 = dma.hbm_to_vmem [thread:$0]  %s534, 512, %s536, %s525, 256, 256, 16
        $region64: #{tpu_custom_call.1} parent=55 // pred_fallthru
          _
      $region56: #{tpu_custom_call.1} parent=5 // pred_fallthru
        _
      %p542 = scmp.le.s32.totalorder 1, %s37
      %p543 = scmp.lt.s32.totalorder %s37, 3
      %p544 = pnand %p542, %p543
      %p545 = pneg %p544
      // Predicated region
      $region65: #{tpu_custom_call.1} parent=5 // pred_check
        _
      $region66: #{tpu_custom_call.1} parent=5 // pred_check_branch
        %547 = sbr.rel (%p544) target = $region68
      $region67: #{tpu_custom_call.1} parent=5 // pred_region
        %s548 = ssub.s32 %s37, 1
        %s549 = sand.u32 %s50, 1
        %s550 = scalar_lea.sflag [#allocation3], %s549
        %s551 = sand.u32 %s50, 1
        %s552 = smul.addr %s551, 32
        %s553 = scalar_lea.vmem [#allocation2], %s552
        // Predicated region
        $region69: #{tpu_custom_call.1} parent=67 // pred_check
          %p554 = pneg %p63
        $region70: #{tpu_custom_call.1} parent=67 // pred_check_branch
          %556 = sbr.rel (%p554) target = $region72
        $region71: #{tpu_custom_call.1} parent=67 // pred_region
          %557 = dma.done %s550, 512
        $region72: #{tpu_custom_call.1} parent=67 // pred_fallthru
          _
        %s558 = sand.u32 %s42, 1
        %s559 = scalar_lea.sflag [#allocation6], %s558
        %s560 = sand.u32 %s76, 1
        %s561 = smul.addr %s560, 32
        %s562 = scalar_lea.vmem [#allocation5], %s561
        // Predicated region
        $region73: #{tpu_custom_call.1} parent=67 // pred_check
          %p563 = pneg %p89
        $region74: #{tpu_custom_call.1} parent=67 // pred_check_branch
          %565 = sbr.rel (%p563) target = $region76
        $region75: #{tpu_custom_call.1} parent=67 // pred_region
          %566 = dma.done %s559, 512
        $region76: #{tpu_custom_call.1} parent=67 // pred_fallthru
          _
        // Predicated region
        $region77: #{tpu_custom_call.1} parent=67 // pred_check
          %p567 = pneg %p110
        $region78: #{tpu_custom_call.1} parent=67 // pred_check_branch
          %569 = sbr.rel (%p567) target = $region80
        $region79: #{tpu_custom_call.1} parent=67 // pred_region
          %570 = dma.done [#allocation6], 256
        $region80: #{tpu_custom_call.1} parent=67 // pred_fallthru
          _
        // Predicated region
        $region81: #{tpu_custom_call.1} parent=67 // pred_check
          %p571 = pneg %p131
        $region82: #{tpu_custom_call.1} parent=67 // pred_check_branch
          %573 = sbr.rel (%p571) target = $region84
        $region83: #{tpu_custom_call.1} parent=67 // pred_region
          %574 = dma.done [#allocation9], 512
        $region84: #{tpu_custom_call.1} parent=67 // pred_fallthru
          _
        // Predicated region
        $region85: #{tpu_custom_call.1} parent=67 // pred_check
          %p575 = pneg %p152
        $region86: #{tpu_custom_call.1} parent=67 // pred_check_branch
          %577 = sbr.rel (%p575) target = $region88
        $region87: #{tpu_custom_call.1} parent=67 // pred_region
          %578 = dma.done [#allocation9], 192
        $region88: #{tpu_custom_call.1} parent=67 // pred_fallthru
          _
        // Predicated region
        $region89: #{tpu_custom_call.1} parent=67 // pred_check
          %p579 = pneg %p173
        $region90: #{tpu_custom_call.1} parent=67 // pred_check_branch
          %581 = sbr.rel (%p579) target = $region92
        $region91: #{tpu_custom_call.1} parent=67 // pred_region
          %582 = dma.done [#allocation12], 384
        $region92: #{tpu_custom_call.1} parent=67 // pred_fallthru
          _
        // Predicated region
        $region93: #{tpu_custom_call.1} parent=67 // pred_check
          %p583 = pneg %p194
        $region94: #{tpu_custom_call.1} parent=67 // pred_check_branch
          %585 = sbr.rel (%p583) target = $region96
        $region95: #{tpu_custom_call.1} parent=67 // pred_region
          %586 = dma.done [#allocation12], 256
        $region96: #{tpu_custom_call.1} parent=67 // pred_fallthru
          _
        // Predicated region
        $region97: #{tpu_custom_call.1} parent=67 // pred_check
          %p587 = pneg %p215
        $region98: #{tpu_custom_call.1} parent=67 // pred_check_branch
          %589 = sbr.rel (%p587) target = $region100
        $region99: #{tpu_custom_call.1} parent=67 // pred_region
          %590 = dma.done [#allocation15], 256
        $region100: #{tpu_custom_call.1} parent=67 // pred_fallthru
          _
        // Predicated region
        $region101: #{tpu_custom_call.1} parent=67 // pred_check
          %p591 = pneg %p236
        $region102: #{tpu_custom_call.1} parent=67 // pred_check_branch
          %593 = sbr.rel (%p591) target = $region104
        $region103: #{tpu_custom_call.1} parent=67 // pred_region
          %594 = dma.done [#allocation15], 512
        $region104: #{tpu_custom_call.1} parent=67 // pred_fallthru
          _
        // Predicated region
        $region105: #{tpu_custom_call.1} parent=67 // pred_check
          %p595 = pneg %p257
        $region106: #{tpu_custom_call.1} parent=67 // pred_check_branch
          %597 = sbr.rel (%p595) target = $region108
        $region107: #{tpu_custom_call.1} parent=67 // pred_region
          %598 = dma.done [#allocation18], 384
        $region108: #{tpu_custom_call.1} parent=67 // pred_fallthru
          _
        // Predicated region
        $region109: #{tpu_custom_call.1} parent=67 // pred_check
          %p599 = pneg %p278
        $region110: #{tpu_custom_call.1} parent=67 // pred_check_branch
          %601 = sbr.rel (%p599) target = $region112
        $region111: #{tpu_custom_call.1} parent=67 // pred_region
          %602 = dma.done [#allocation18], 384
        $region112: #{tpu_custom_call.1} parent=67 // pred_fallthru
          _
        // Predicated region
        $region113: #{tpu_custom_call.1} parent=67 // pred_check
          %p603 = pneg %p299
        $region114: #{tpu_custom_call.1} parent=67 // pred_check_branch
          %605 = sbr.rel (%p603) target = $region116
        $region115: #{tpu_custom_call.1} parent=67 // pred_region
          %606 = dma.done [#allocation21], 768
        $region116: #{tpu_custom_call.1} parent=67 // pred_fallthru
          _
        %s607 = sand.u32 %s50, 1
        %s608 = scalar_lea.sflag [#allocation3], %s607
        %s609 = sand.u32 %s50, 1
        %s610 = smul.addr %s609, 32
        %s611 = scalar_lea.vmem [#allocation2], %s610
        %p612 = pneg %p63
        %p613 = pneg %p60
        %s614 = sand.u32 %s42, 1
        %s615 = scalar_lea.sflag [#allocation6], %s614
        %s616 = sand.u32 %s76, 1
        %s617 = smul.addr %s616, 32
        %s618 = scalar_lea.vmem [#allocation5], %s617
        %p619 = pneg %p89
        %p620 = pneg %p86
        %p621 = pneg %p110
        %p622 = pneg %p107
        %p623 = pneg %p131
        %p624 = pneg %p128
        %p625 = pneg %p152
        %p626 = pneg %p149
        %p627 = pneg %p173
        %p628 = pneg %p170
        %p629 = pneg %p194
        %p630 = pneg %p191
        %p631 = pneg %p215
        %p632 = pneg %p212
        %p633 = pneg %p236
        %p634 = pneg %p233
        %p635 = pneg %p257
        %p636 = pneg %p254
        %p637 = pneg %p278
        %p638 = pneg %p275
        %p639 = pneg %p299
        %p640 = pneg %p296
        %p641 = pneg %p325
        %p642 = pneg %p322
        %s643 = sand.u32 %s312, 1
        %s644 = scalar_lea.sflag [#allocation4], %s643
        %s645 = sand.u32 %s312, 1
        %s646 = smul.addr %s645, 32
        %s647 = scalar_lea.vmem [#allocation22], %s646
        %p648 = pneg %p351
        %p649 = pneg %p348
        %s650 = sand.u32 %s338, 1
        %s651 = scalar_lea.sflag [#allocation24], %s650
        %s652 = sand.u32 %s338, 1
        %s653 = smul.addr %s652, 32
        %s654 = scalar_lea.vmem [#allocation23], %s653
        %v656 = vld [vmem:[%s553] sm:$0xff]
        %v657 = vld [vmem:[%s553 + $0x8] sm:$0xff]
        %v658 = vld [vmem:[%s553 + $0x10] sm:$0xff]
        %v659 = vld [vmem:[%s553 + $0x18] sm:$0xff]
        %v660 = vld [vmem:[%s562] sm:$0xff]
        %v661 = vld [vmem:[%s562 + $0x8] sm:$0xff]
        %v662 = vld [vmem:[%s562 + $0x10] sm:$0xff]
        %v663 = vld [vmem:[%s562 + $0x18] sm:$0xff]
        %v664 = vpack.c.bf16 %v658, %v656
        %v665 = vpack.c.bf16 %v659, %v657
        %v666 = vpack.c.bf16 %v662, %v660
        %v667 = vpack.c.bf16 %v663, %v661
        %v668 = vld [vmem:[#allocation7] sm:$0xf]
        %v669 = vld [vmem:[#allocation7 + $0x4] sm:$0xf]
        %v670 = vld [vmem:[#allocation7 + $0x8] sm:$0xf]
        %v671 = vld [vmem:[#allocation7 + $0xc] sm:$0xf]
        %v672 = vld [vmem:[#allocation8] sm:$0xff]
        %v673 = vld [vmem:[#allocation8 + $0x8] sm:$0xff]
        %v674 = vld [vmem:[#allocation8 + $0x10] sm:$0xff]
        %v675 = vld [vmem:[#allocation8 + $0x18] sm:$0xff]
        %677 = vset.pattern.permute.xlu0 0
        %678 = vperm.xlu0 %677, %v672
        %v679 = vpop.permute.xlu0 %678
        %682 = vset.pattern.permute.xlu0 0
        %683 = vperm.xlu0 %682, %v673
        %v684 = vpop.permute.xlu0 %683
        %687 = vset.pattern.permute.xlu0 0
        %688 = vperm.xlu0 %687, %v674
        %v689 = vpop.permute.xlu0 %688
        %692 = vset.pattern.permute.xlu0 0
        %693 = vperm.xlu0 %692, %v675
        %v694 = vpop.permute.xlu0 %693
        %v700 = vunpack.c.l.b16 %v668
        %v701 = vunpack.c.l.b16 %v669
        %v702 = vunpack.c.l.b16 %v670
        %v703 = vunpack.c.l.b16 %v671
        %v704 = vpack.c.b16 %v701, %v700
        %v705 = vpack.c.b16 %v703, %v702
        %vm706 = vcmask 130048
        %v708 = vsel %vm706, %v704, 0
        %v711 = vsel %vm706, %v705, 0
        %713 = vmatprep.subr.bf16.mxu0 %v665
        %714 = vmatpush1.bf16.msra.mxu0 %v664
        %715 = vmatprep.subr.bf16.mxu0 0
        %716 = vmatpush1.bf16.msra.mxu0 0
        %717 = vmatprep.subr.bf16.mxu0 0
        %718 = vmatpush1.bf16.msra.mxu0 0
        %719 = vmatprep.subr.bf16.mxu0 0
        %720 = vmatpush1.bf16.msra.mxu0 0
        %721 = vmatprep.subr.bf16.mxu0 0
        %722 = vmatpush1.bf16.msra.mxu0 0
        %723 = vmatprep.subr.bf16.mxu0 0
        %724 = vmatpush1.bf16.msra.mxu0 0
        %725 = vmatprep.subr.bf16.mxu0 0
        %726 = vmatpush1.bf16.msra.mxu0 0
        %727 = vmatprep.subr.bf16.mxu0 0
        %728 = vmatpush1.bf16.msra.mxu0 0
        %729 = vmatprep.subr.bf16.mxu0 0
        %730 = vmatpush1.bf16.msra.mxu0 0
        %731 = vmatprep.subr.bf16.mxu0 0
        %732 = vmatpush1.bf16.msra.mxu0 0
        %733 = vmatprep.subr.bf16.mxu0 0
        %734 = vmatpush1.bf16.msra.mxu0 0
        %735 = vmatprep.subr.bf16.mxu0 0
        %736 = vmatpush1.bf16.msra.mxu0 0
        %737 = vmatprep.subr.bf16.mxu0 0
        %738 = vmatpush1.bf16.msra.mxu0 0
        %739 = vmatprep.subr.bf16.mxu0 0
        %740 = vmatpush1.bf16.msra.mxu0 0
        %741 = vmatprep.subr.bf16.mxu0 0
        %742 = vmatpush1.bf16.msra.mxu0 0
        %743 = vmatprep.subr.bf16.mxu0 0
        %744 = vmatpush1.bf16.msra.mxu0 0
        %745 = vmatprep.mubr.bf16.mxu0 0
        %746 = vmatmul.mubr.bf16.gmra.mrb[0].mxu0 %v708
        %v747 = vpop.f32.mrb[0].mxu0
        %v748 = vadd.f32 %v679, %v747
        %v749 = vpop.f32.mrb[0].mxu0
        %v750 = vadd.f32 %v679, %v749
        %v751 = vpop.f32.mrb[0].mxu0
        %v752 = vadd.f32 %v684, %v751
        %v753 = vpop.f32.mrb[0].mxu0
        %v754 = vadd.f32 %v684, %v753
        %755 = vmatprep.mubr.bf16.mxu0 0
        %756 = vmatmul.mubr.bf16.gmra.mrb[0].mxu0 %v711
        %v757 = vpop.f32.mrb[0].mxu0
        %v758 = vadd.f32 %v689, %v757
        %v759 = vpop.f32.mrb[0].mxu0
        %v760 = vadd.f32 %v689, %v759
        %v761 = vpop.f32.mrb[0].mxu0
        %v762 = vadd.f32 %v694, %v761
        %v763 = vpop.f32.mrb[0].mxu0
        %v764 = vadd.f32 %v694, %v763
        %765 = vdwg.mxu0
        %v766 = vld [vmem:[#allocation10] sm:$0xf]
        %v767 = vld [vmem:[#allocation10 + $0x4] sm:$0xf]
        %v768 = vld [vmem:[#allocation10 + $0x8] sm:$0xf]
        %v769 = vld [vmem:[#allocation11] sm:$0xff]
        %v770 = vld [vmem:[#allocation11 + $0x8] sm:$0xff]
        %v771 = vld [vmem:[#allocation11 + $0x10] sm:$0xff]
        %773 = vset.pattern.permute.xlu0 0
        %774 = vperm.xlu0 %773, %v769
        %v775 = vpop.permute.xlu0 %774
        %778 = vset.pattern.permute.xlu0 0
        %779 = vperm.xlu0 %778, %v770
        %v780 = vpop.permute.xlu0 %779
        %783 = vset.pattern.permute.xlu0 0
        %784 = vperm.xlu0 %783, %v771
        %v785 = vpop.permute.xlu0 %784
        %v790 = vunpack.c.l.b16 %v766
        %v791 = vunpack.c.l.b16 %v767
        %v792 = vunpack.c.l.b16 %v768
        %v793 = vpack.c.b16 %v791, %v790
        %v794 = vpack.c.b16 %v792, %v792
        %v796 = vsel %vm706, %v793, 0
        %v799 = vsel %vm706, %v794, 0
        %801 = vmatprep.subr.bf16.mxu0 %v667
        %802 = vmatpush1.bf16.msra.mxu0 %v666
        %803 = vmatprep.subr.bf16.mxu0 0
        %804 = vmatpush1.bf16.msra.mxu0 0
        %805 = vmatprep.subr.bf16.mxu0 0
        %806 = vmatpush1.bf16.msra.mxu0 0
        %807 = vmatprep.subr.bf16.mxu0 0
        %808 = vmatpush1.bf16.msra.mxu0 0
        %809 = vmatprep.subr.bf16.mxu0 0
        %810 = vmatpush1.bf16.msra.mxu0 0
        %811 = vmatprep.subr.bf16.mxu0 0
        %812 = vmatpush1.bf16.msra.mxu0 0
        %813 = vmatprep.subr.bf16.mxu0 0
        %814 = vmatpush1.bf16.msra.mxu0 0
        %815 = vmatprep.subr.bf16.mxu0 0
        %816 = vmatpush1.bf16.msra.mxu0 0
        %817 = vmatprep.subr.bf16.mxu0 0
        %818 = vmatpush1.bf16.msra.mxu0 0
        %819 = vmatprep.subr.bf16.mxu0 0
        %820 = vmatpush1.bf16.msra.mxu0 0
        %821 = vmatprep.subr.bf16.mxu0 0
        %822 = vmatpush1.bf16.msra.mxu0 0
        %823 = vmatprep.subr.bf16.mxu0 0
        %824 = vmatpush1.bf16.msra.mxu0 0
        %825 = vmatprep.subr.bf16.mxu0 0
        %826 = vmatpush1.bf16.msra.mxu0 0
        %827 = vmatprep.subr.bf16.mxu0 0
        %828 = vmatpush1.bf16.msra.mxu0 0
        %829 = vmatprep.subr.bf16.mxu0 0
        %830 = vmatpush1.bf16.msra.mxu0 0
        %831 = vmatprep.subr.bf16.mxu0 0
        %832 = vmatpush1.bf16.msra.mxu0 0
        %833 = vmatprep.mubr.bf16.mxu0 0
        %834 = vmatmul.mubr.bf16.gmra.mrb[0].mxu0 %v796
        %v835 = vpop.f32.mrb[0].mxu0
        %v836 = vadd.f32 %v775, %v835
        %v837 = vpop.f32.mrb[0].mxu0
        %v838 = vadd.f32 %v775, %v837
        %v839 = vpop.f32.mrb[0].mxu0
        %v840 = vadd.f32 %v780, %v839
        %v841 = vpop.f32.mrb[0].mxu0
        %v842 = vadd.f32 %v780, %v841
        %843 = vmatprep.mubr.bf16.mxu0 0
        %844 = vmatmul.mubr.bf16.gmra.mrb[0].mxu0 %v799
        %v845 = vpop.f32.mrb[0].mxu0
        %v846 = vadd.f32 %v785, %v845
        %v847 = vpop.f32.mrb[0].mxu0
        %v848 = vadd.f32 %v785, %v847
        %v849 = vpop.f32.mrb[0].mxu0
        %v850 = vpop.f32.mrb[0].mxu0
        %851 = vdwg.mxu0
        %v852 = vpack.c.bf16 %v752, %v752
        %v853 = vpack.c.bf16 %v754, %v754
        %v854 = vpack.c.bf16 %v836, %v836
        %v855 = vpack.c.bf16 %v838, %v838
        %v856 = vpack.c.bf16 %v748, %v748
        %v857 = vpack.c.bf16 %v750, %v750
        %858 = vxpose.xlu0.c.b16.start [1/8] %v856, 128
        %859 = vxpose.xlu0.c.b16.cont [2/8] 0, 128
        %860 = vxpose.xlu0.c.b16.cont [3/8] 0, 128
        %861 = vxpose.xlu0.c.b16.cont [4/8] 0, 128
        %862 = vxpose.xlu0.c.b16.cont [5/8] 0, 128
        %863 = vxpose.xlu0.c.b16.cont [6/8] 0, 128
        %864 = vxpose.xlu0.c.b16.cont [7/8] 0, 128
        %865 = vxpose.xlu0.c.b16.end [8/8] 0, 128
        %v866 = vpop.trf.xlu0
        %v867 = vpop.trf.xlu0
        %v868 = vpop.trf.xlu0
        %v869 = vpop.trf.xlu0
        %v870 = vpop.trf.xlu0
        %v871 = vpop.trf.xlu0
        %v872 = vpop.trf.xlu0
        %v873 = vpop.trf.xlu0
        %874 = vxpose.xlu0.c.b16.start [1/8] %v857, 128
        %875 = vxpose.xlu0.c.b16.cont [2/8] 0, 128
        %876 = vxpose.xlu0.c.b16.cont [3/8] 0, 128
        %877 = vxpose.xlu0.c.b16.cont [4/8] 0, 128
        %878 = vxpose.xlu0.c.b16.cont [5/8] 0, 128
        %879 = vxpose.xlu0.c.b16.cont [6/8] 0, 128
        %880 = vxpose.xlu0.c.b16.cont [7/8] 0, 128
        %881 = vxpose.xlu0.c.b16.end [8/8] 0, 128
        %v882 = vpop.trf.xlu0
        %v883 = vpop.trf.xlu0
        %v884 = vpop.trf.xlu0
        %v885 = vpop.trf.xlu0
        %v886 = vpop.trf.xlu0
        %v887 = vpop.trf.xlu0
        %v888 = vpop.trf.xlu0
        %v889 = vpop.trf.xlu0
        %vm890 = vcmask 64512
        %v892 = vsel %vm890, %v866, 0
        %v895 = vsel %vm890, %v867, 0
        %v898 = vsel %vm890, %v868, 0
        %v901 = vsel %vm890, %v869, 0
        %v904 = vsel %vm890, %v870, 0
        %v907 = vsel %vm890, %v871, 0
        %v910 = vsel %vm890, %v872, 0
        %v913 = vsel %vm890, %v873, 0
        %v916 = vsel %vm890, %v882, 0
        %v919 = vsel %vm890, %v883, 0
        %v922 = vsel %vm890, %v884, 0
        %v925 = vsel %vm890, %v885, 0
        %v928 = vsel %vm890, %v886, 0
        %v931 = vsel %vm890, %v887, 0
        %v934 = vsel %vm890, %v888, 0
        %v937 = vsel %vm890, %v889, 0
        %vm939 = vcmask 1043456
        %v941 = vsel %vm939, %v852, 0
        %v944 = vsel %vm939, %v853, 0
        %v947 = vsel %vm939, %v854, 0
        %v950 = vsel %vm939, %v855, 0
        %952 = vmatprep.subr.bf16.mxu0 %v944
        %953 = vmatpush1.bf16.msra.mxu0 %v941
        %954 = vmatprep.subr.bf16.mxu0 0
        %955 = vmatpush1.bf16.msra.mxu0 0
        %956 = vmatprep.subr.bf16.mxu0 0
        %957 = vmatpush1.bf16.msra.mxu0 0
        %958 = vmatprep.subr.bf16.mxu0 0
        %959 = vmatpush1.bf16.msra.mxu0 0
        %960 = vmatprep.subr.bf16.mxu0 0
        %961 = vmatpush1.bf16.msra.mxu0 0
        %962 = vmatprep.subr.bf16.mxu0 0
        %963 = vmatpush1.bf16.msra.mxu0 0
        %964 = vmatprep.subr.bf16.mxu0 0
        %965 = vmatpush1.bf16.msra.mxu0 0
        %966 = vmatprep.subr.bf16.mxu0 0
        %967 = vmatpush1.bf16.msra.mxu0 0
        %968 = vmatprep.subr.bf16.mxu0 0
        %969 = vmatpush1.bf16.msra.mxu0 0
        %970 = vmatprep.subr.bf16.mxu0 0
        %971 = vmatpush1.bf16.msra.mxu0 0
        %972 = vmatprep.subr.bf16.mxu0 0
        %973 = vmatpush1.bf16.msra.mxu0 0
        %974 = vmatprep.subr.bf16.mxu0 0
        %975 = vmatpush1.bf16.msra.mxu0 0
        %976 = vmatprep.subr.bf16.mxu0 0
        %977 = vmatpush1.bf16.msra.mxu0 0
        %978 = vmatprep.subr.bf16.mxu0 0
        %979 = vmatpush1.bf16.msra.mxu0 0
        %980 = vmatprep.subr.bf16.mxu0 0
        %981 = vmatpush1.bf16.msra.mxu0 0
        %982 = vmatprep.subr.bf16.mxu0 0
        %983 = vmatpush1.bf16.msra.mxu0 0
        %984 = vmatprep.mubr.bf16.mxu0 0
        %985 = vmatmul.mubr.bf16.gmra.mrb[0].mxu0 %v892
        %v986 = vpop.f32.mrb[0].mxu0
        %v987 = vadd.f32 0.0, %v986
        %v988 = vpop.f32.mrb[0].mxu0
        %v989 = vadd.f32 0.0, %v988
        %v990 = vpop.f32.mrb[0].mxu0
        %v991 = vadd.f32 0.0, %v990
        %v992 = vpop.f32.mrb[0].mxu0
        %v993 = vadd.f32 0.0, %v992
        %994 = vmatprep.mubr.bf16.mxu0 0
        %995 = vmatmul.mubr.bf16.gmra.mrb[0].mxu0 %v895
        %v996 = vpop.f32.mrb[0].mxu0
        %v997 = vadd.f32 0.0, %v996
        %v998 = vpop.f32.mrb[0].mxu0
        %v999 = vadd.f32 0.0, %v998
        %v1000 = vpop.f32.mrb[0].mxu0
        %v1001 = vadd.f32 0.0, %v1000
        %v1002 = vpop.f32.mrb[0].mxu0
        %v1003 = vadd.f32 0.0, %v1002
        %1004 = vmatprep.mubr.bf16.mxu0 0
        %1005 = vmatmul.mubr.bf16.gmra.mrb[0].mxu0 %v898
        %v1006 = vpop.f32.mrb[0].mxu0
        %v1007 = vadd.f32 0.0, %v1006
        %v1008 = vpop.f32.mrb[0].mxu0
        %v1009 = vadd.f32 0.0, %v1008
        %v1010 = vpop.f32.mrb[0].mxu0
        %v1011 = vadd.f32 0.0, %v1010
        %v1012 = vpop.f32.mrb[0].mxu0
        %v1013 = vadd.f32 0.0, %v1012
        %1014 = vmatprep.mubr.bf16.mxu0 0
        %1015 = vmatmul.mubr.bf16.gmra.mrb[0].mxu0 %v901
        %v1016 = vpop.f32.mrb[0].mxu0
        %v1017 = vadd.f32 0.0, %v1016
        %v1018 = vpop.f32.mrb[0].mxu0
        %v1019 = vadd.f32 0.0, %v1018
        %v1020 = vpop.f32.mrb[0].mxu0
        %v1021 = vadd.f32 0.0, %v1020
        %v1022 = vpop.f32.mrb[0].mxu0
        %v1023 = vadd.f32 0.0, %v1022
        %1024 = vmatprep.mubr.bf16.mxu0 0
        %1025 = vmatmul.mubr.bf16.gmra.mrb[0].mxu0 %v904
        %v1026 = vpop.f32.mrb[0].mxu0
        %v1027 = vadd.f32 0.0, %v1026
        %v1028 = vpop.f32.mrb[0].mxu0
        %v1029 = vadd.f32 0.0, %v1028
        %v1030 = vpop.f32.mrb[0].mxu0
        %v1031 = vadd.f32 0.0, %v1030
        %v1032 = vpop.f32.mrb[0].mxu0
        %v1033 = vadd.f32 0.0, %v1032
        %1034 = vmatprep.mubr.bf16.mxu0 0
        %1035 = vmatmul.mubr.bf16.gmra.mrb[0].mxu0 %v907
        %v1036 = vpop.f32.mrb[0].mxu0
        %v1037 = vadd.f32 0.0, %v1036
        %v1038 = vpop.f32.mrb[0].mxu0
        %v1039 = vadd.f32 0.0, %v1038
        %v1040 = vpop.f32.mrb[0].mxu0
        %v1041 = vadd.f32 0.0, %v1040
        %v1042 = vpop.f32.mrb[0].mxu0
        %v1043 = vadd.f32 0.0, %v1042
        %1044 = vmatprep.mubr.bf16.mxu0 0
        %1045 = vmatmul.mubr.bf16.gmra.mrb[0].mxu0 %v910
        %v1046 = vpop.f32.mrb[0].mxu0
        %v1047 = vadd.f32 0.0, %v1046
        %v1048 = vpop.f32.mrb[0].mxu0
        %v1049 = vadd.f32 0.0, %v1048
        %v1050 = vpop.f32.mrb[0].mxu0
        %v1051 = vadd.f32 0.0, %v1050
        %v1052 = vpop.f32.mrb[0].mxu0
        %v1053 = vadd.f32 0.0, %v1052
        %1054 = vmatprep.mubr.bf16.mxu0 0
        %1055 = vmatmul.mubr.bf16.gmra.mrb[0].mxu0 %v913
        %v1056 = vpop.f32.mrb[0].mxu0
        %v1057 = vadd.f32 0.0, %v1056
        %v1058 = vpop.f32.mrb[0].mxu0
        %v1059 = vadd.f32 0.0, %v1058
        %v1060 = vpop.f32.mrb[0].mxu0
        %v1061 = vadd.f32 0.0, %v1060
        %v1062 = vpop.f32.mrb[0].mxu0
        %v1063 = vadd.f32 0.0, %v1062
        %1064 = vmatprep.mubr.bf16.mxu0 0
        %1065 = vmatmul.mubr.bf16.gmra.mrb[0].mxu0 %v916
        %v1066 = vpop.f32.mrb[0].mxu0
        %v1067 = vadd.f32 0.0, %v1066
        %v1068 = vpop.f32.mrb[0].mxu0
        %v1069 = vadd.f32 0.0, %v1068
        %v1070 = vpop.f32.mrb[0].mxu0
        %v1071 = vadd.f32 0.0, %v1070
        %v1072 = vpop.f32.mrb[0].mxu0
        %v1073 = vadd.f32 0.0, %v1072
        %1074 = vmatprep.mubr.bf16.mxu0 0
        %1075 = vmatmul.mubr.bf16.gmra.mrb[0].mxu0 %v919
        %v1076 = vpop.f32.mrb[0].mxu0
        %v1077 = vadd.f32 0.0, %v1076
        %v1078 = vpop.f32.mrb[0].mxu0
        %v1079 = vadd.f32 0.0, %v1078
        %v1080 = vpop.f32.mrb[0].mxu0
        %v1081 = vadd.f32 0.0, %v1080
        %v1082 = vpop.f32.mrb[0].mxu0
        %v1083 = vadd.f32 0.0, %v1082
        %1084 = vmatprep.mubr.bf16.mxu0 0
        %1085 = vmatmul.mubr.bf16.gmra.mrb[0].mxu0 %v922
        %v1086 = vpop.f32.mrb[0].mxu0
        %v1087 = vadd.f32 0.0, %v1086
        %v1088 = vpop.f32.mrb[0].mxu0
        %v1089 = vadd.f32 0.0, %v1088
        %v1090 = vpop.f32.mrb[0].mxu0
        %v1091 = vadd.f32 0.0, %v1090
        %v1092 = vpop.f32.mrb[0].mxu0
        %v1093 = vadd.f32 0.0, %v1092
        %1094 = vmatprep.mubr.bf16.mxu0 0
        %1095 = vmatmul.mubr.bf16.gmra.mrb[0].mxu0 %v925
        %v1096 = vpop.f32.mrb[0].mxu0
        %v1097 = vadd.f32 0.0, %v1096
        %v1098 = vpop.f32.mrb[0].mxu0
        %v1099 = vadd.f32 0.0, %v1098
        %v1100 = vpop.f32.mrb[0].mxu0
        %v1101 = vadd.f32 0.0, %v1100
        %v1102 = vpop.f32.mrb[0].mxu0
        %v1103 = vadd.f32 0.0, %v1102
        %1104 = vmatprep.mubr.bf16.mxu0 0
        %1105 = vmatmul.mubr.bf16.gmra.mrb[0].mxu0 %v928
        %v1106 = vpop.f32.mrb[0].mxu0
        %v1107 = vadd.f32 0.0, %v1106
        %v1108 = vpop.f32.mrb[0].mxu0
        %v1109 = vadd.f32 0.0, %v1108
        %v1110 = vpop.f32.mrb[0].mxu0
        %v1111 = vadd.f32 0.0, %v1110
        %v1112 = vpop.f32.mrb[0].mxu0
        %v1113 = vadd.f32 0.0, %v1112
        %1114 = vmatprep.mubr.bf16.mxu0 0
        %1115 = vmatmul.mubr.bf16.gmra.mrb[0].mxu0 %v931
        %v1116 = vpop.f32.mrb[0].mxu0
        %v1117 = vadd.f32 0.0, %v1116
        %v1118 = vpop.f32.mrb[0].mxu0
        %v1119 = vadd.f32 0.0, %v1118
        %v1120 = vpop.f32.mrb[0].mxu0
        %v1121 = vadd.f32 0.0, %v1120
        %v1122 = vpop.f32.mrb[0].mxu0
        %v1123 = vadd.f32 0.0, %v1122
        %1124 = vmatprep.mubr.bf16.mxu0 0
        %1125 = vmatmul.mubr.bf16.gmra.mrb[0].mxu0 %v934
        %v1126 = vpop.f32.mrb[0].mxu0
        %v1127 = vadd.f32 0.0, %v1126
        %v1128 = vpop.f32.mrb[0].mxu0
        %v1129 = vadd.f32 0.0, %v1128
        %v1130 = vpop.f32.mrb[0].mxu0
        %v1131 = vadd.f32 0.0, %v1130
        %v1132 = vpop.f32.mrb[0].mxu0
        %v1133 = vadd.f32 0.0, %v1132
        %1134 = vmatprep.mubr.bf16.mxu0 0
        %1135 = vmatmul.mubr.bf16.gmra.mrb[0].mxu0 %v937
        %v1136 = vpop.f32.mrb[0].mxu0
        %v1137 = vadd.f32 0.0, %v1136
        %v1138 = vpop.f32.mrb[0].mxu0
        %v1139 = vadd.f32 0.0, %v1138
        %v1140 = vpop.f32.mrb[0].mxu0
        %v1141 = vadd.f32 0.0, %v1140
        %v1142 = vpop.f32.mrb[0].mxu0
        %v1143 = vadd.f32 0.0, %v1142
        %1144 = vdwg.mxu0
        %1145 = vmatprep.subr.bf16.mxu0 %v950
        %1146 = vmatpush1.bf16.msra.mxu0 %v947
        %1147 = vmatprep.subr.bf16.mxu0 0
        %1148 = vmatpush1.bf16.msra.mxu0 0
        %1149 = vmatprep.subr.bf16.mxu0 0
        %1150 = vmatpush1.bf16.msra.mxu0 0
        %1151 = vmatprep.subr.bf16.mxu0 0
        %1152 = vmatpush1.bf16.msra.mxu0 0
        %1153 = vmatprep.subr.bf16.mxu0 0
        %1154 = vmatpush1.bf16.msra.mxu0 0
        %1155 = vmatprep.subr.bf16.mxu0 0
        %1156 = vmatpush1.bf16.msra.mxu0 0
        %1157 = vmatprep.subr.bf16.mxu0 0
        %1158 = vmatpush1.bf16.msra.mxu0 0
        %1159 = vmatprep.subr.bf16.mxu0 0
        %1160 = vmatpush1.bf16.msra.mxu0 0
        %1161 = vmatprep.subr.bf16.mxu0 0
        %1162 = vmatpush1.bf16.msra.mxu0 0
        %1163 = vmatprep.subr.bf16.mxu0 0
        %1164 = vmatpush1.bf16.msra.mxu0 0
        %1165 = vmatprep.subr.bf16.mxu0 0
        %1166 = vmatpush1.bf16.msra.mxu0 0
        %1167 = vmatprep.subr.bf16.mxu0 0
        %1168 = vmatpush1.bf16.msra.mxu0 0
        %1169 = vmatprep.subr.bf16.mxu0 0
        %1170 = vmatpush1.bf16.msra.mxu0 0
        %1171 = vmatprep.subr.bf16.mxu0 0
        %1172 = vmatpush1.bf16.msra.mxu0 0
        %1173 = vmatprep.subr.bf16.mxu0 0
        %1174 = vmatpush1.bf16.msra.mxu0 0
        %1175 = vmatprep.subr.bf16.mxu0 0
        %1176 = vmatpush1.bf16.msra.mxu0 0
        %1177 = vmatprep.mubr.bf16.mxu0 0
        %1178 = vmatmul.mubr.bf16.gmra.mrb[0].mxu0 %v892
        %v1179 = vpop.f32.mrb[0].mxu0
        %v1180 = vadd.f32 0.0, %v1179
        %v1181 = vpop.f32.mrb[0].mxu0
        %v1182 = vadd.f32 0.0, %v1181
        %v1183 = vpop.f32.mrb[0].mxu0
        %v1184 = vadd.f32 0.0, %v1183
        %v1185 = vpop.f32.mrb[0].mxu0
        %v1186 = vadd.f32 0.0, %v1185
        %1187 = vmatprep.mubr.bf16.mxu0 0
        %1188 = vmatmul.mubr.bf16.gmra.mrb[0].mxu0 %v895
        %v1189 = vpop.f32.mrb[0].mxu0
        %v1190 = vadd.f32 0.0, %v1189
        %v1191 = vpop.f32.mrb[0].mxu0
        %v1192 = vadd.f32 0.0, %v1191
        %v1193 = vpop.f32.mrb[0].mxu0
        %v1194 = vadd.f32 0.0, %v1193
        %v1195 = vpop.f32.mrb[0].mxu0
        %v1196 = vadd.f32 0.0, %v1195
        %1197 = vmatprep.mubr.bf16.mxu0 0
        %1198 = vmatmul.mubr.bf16.gmra.mrb[0].mxu0 %v898
        %v1199 = vpop.f32.mrb[0].mxu0
        %v1200 = vadd.f32 0.0, %v1199
        %v1201 = vpop.f32.mrb[0].mxu0
        %v1202 = vadd.f32 0.0, %v1201
        %v1203 = vpop.f32.mrb[0].mxu0
        %v1204 = vadd.f32 0.0, %v1203
        %v1205 = vpop.f32.mrb[0].mxu0
        %v1206 = vadd.f32 0.0, %v1205
        %1207 = vmatprep.mubr.bf16.mxu0 0
        %1208 = vmatmul.mubr.bf16.gmra.mrb[0].mxu0 %v901
        %v1209 = vpop.f32.mrb[0].mxu0
        %v1210 = vadd.f32 0.0, %v1209
        %v1211 = vpop.f32.mrb[0].mxu0
        %v1212 = vadd.f32 0.0, %v1211
        %v1213 = vpop.f32.mrb[0].mxu0
        %v1214 = vadd.f32 0.0, %v1213
        %v1215 = vpop.f32.mrb[0].mxu0
        %v1216 = vadd.f32 0.0, %v1215
        %1217 = vmatprep.mubr.bf16.mxu0 0
        %1218 = vmatmul.mubr.bf16.gmra.mrb[0].mxu0 %v904
        %v1219 = vpop.f32.mrb[0].mxu0
        %v1220 = vadd.f32 0.0, %v1219
        %v1221 = vpop.f32.mrb[0].mxu0
        %v1222 = vadd.f32 0.0, %v1221
        %v1223 = vpop.f32.mrb[0].mxu0
        %v1224 = vadd.f32 0.0, %v1223
        %v1225 = vpop.f32.mrb[0].mxu0
        %v1226 = vadd.f32 0.0, %v1225
        %1227 = vmatprep.mubr.bf16.mxu0 0
        %1228 = vmatmul.mubr.bf16.gmra.mrb[0].mxu0 %v907
        %v1229 = vpop.f32.mrb[0].mxu0
        %v1230 = vadd.f32 0.0, %v1229
        %v1231 = vpop.f32.mrb[0].mxu0
        %v1232 = vadd.f32 0.0, %v1231
        %v1233 = vpop.f32.mrb[0].mxu0
        %v1234 = vadd.f32 0.0, %v1233
        %v1235 = vpop.f32.mrb[0].mxu0
        %v1236 = vadd.f32 0.0, %v1235
        %1237 = vmatprep.mubr.bf16.mxu0 0
        %1238 = vmatmul.mubr.bf16.gmra.mrb[0].mxu0 %v910
        %v1239 = vpop.f32.mrb[0].mxu0
        %v1240 = vadd.f32 0.0, %v1239
        %v1241 = vpop.f32.mrb[0].mxu0
        %v1242 = vadd.f32 0.0, %v1241
        %v1243 = vpop.f32.mrb[0].mxu0
        %v1244 = vadd.f32 0.0, %v1243
        %v1245 = vpop.f32.mrb[0].mxu0
        %v1246 = vadd.f32 0.0, %v1245
        %1247 = vmatprep.mubr.bf16.mxu0 0
        %1248 = vmatmul.mubr.bf16.gmra.mrb[0].mxu0 %v913
        %v1249 = vpop.f32.mrb[0].mxu0
        %v1250 = vadd.f32 0.0, %v1249
        %v1251 = vpop.f32.mrb[0].mxu0
        %v1252 = vadd.f32 0.0, %v1251
        %v1253 = vpop.f32.mrb[0].mxu0
        %v1254 = vadd.f32 0.0, %v1253
        %v1255 = vpop.f32.mrb[0].mxu0
        %v1256 = vadd.f32 0.0, %v1255
        %1257 = vmatprep.mubr.bf16.mxu0 0
        %1258 = vmatmul.mubr.bf16.gmra.mrb[0].mxu0 %v916
        %v1259 = vpop.f32.mrb[0].mxu0
        %v1260 = vadd.f32 0.0, %v1259
        %v1261 = vpop.f32.mrb[0].mxu0
        %v1262 = vadd.f32 0.0, %v1261
        %v1263 = vpop.f32.mrb[0].mxu0
        %v1264 = vadd.f32 0.0, %v1263
        %v1265 = vpop.f32.mrb[0].mxu0
        %v1266 = vadd.f32 0.0, %v1265
        %1267 = vmatprep.mubr.bf16.mxu0 0
        %1268 = vmatmul.mubr.bf16.gmra.mrb[0].mxu0 %v919
        %v1269 = vpop.f32.mrb[0].mxu0
        %v1270 = vadd.f32 0.0, %v1269
        %v1271 = vpop.f32.mrb[0].mxu0
        %v1272 = vadd.f32 0.0, %v1271
        %v1273 = vpop.f32.mrb[0].mxu0
        %v1274 = vadd.f32 0.0, %v1273
        %v1275 = vpop.f32.mrb[0].mxu0
        %v1276 = vadd.f32 0.0, %v1275
        %1277 = vmatprep.mubr.bf16.mxu0 0
        %1278 = vmatmul.mubr.bf16.gmra.mrb[0].mxu0 %v922
        %v1279 = vpop.f32.mrb[0].mxu0
        %v1280 = vadd.f32 0.0, %v1279
        %v1281 = vpop.f32.mrb[0].mxu0
        %v1282 = vadd.f32 0.0, %v1281
        %v1283 = vpop.f32.mrb[0].mxu0
        %v1284 = vadd.f32 0.0, %v1283
        %v1285 = vpop.f32.mrb[0].mxu0
        %v1286 = vadd.f32 0.0, %v1285
        %1287 = vmatprep.mubr.bf16.mxu0 0
        %1288 = vmatmul.mubr.bf16.gmra.mrb[0].mxu0 %v925
        %v1289 = vpop.f32.mrb[0].mxu0
        %v1290 = vadd.f32 0.0, %v1289
        %v1291 = vpop.f32.mrb[0].mxu0
        %v1292 = vadd.f32 0.0, %v1291
        %v1293 = vpop.f32.mrb[0].mxu0
        %v1294 = vadd.f32 0.0, %v1293
        %v1295 = vpop.f32.mrb[0].mxu0
        %v1296 = vadd.f32 0.0, %v1295
        %1297 = vmatprep.mubr.bf16.mxu0 0
        %1298 = vmatmul.mubr.bf16.gmra.mrb[0].mxu0 %v928
        %v1299 = vpop.f32.mrb[0].mxu0
        %v1300 = vadd.f32 0.0, %v1299
        %v1301 = vpop.f32.mrb[0].mxu0
        %v1302 = vadd.f32 0.0, %v1301
        %v1303 = vpop.f32.mrb[0].mxu0
        %v1304 = vadd.f32 0.0, %v1303
        %v1305 = vpop.f32.mrb[0].mxu0
        %v1306 = vadd.f32 0.0, %v1305
        %1307 = vmatprep.mubr.bf16.mxu0 0
        %1308 = vmatmul.mubr.bf16.gmra.mrb[0].mxu0 %v931
        %v1309 = vpop.f32.mrb[0].mxu0
        %v1310 = vadd.f32 0.0, %v1309
        %v1311 = vpop.f32.mrb[0].mxu0
        %v1312 = vadd.f32 0.0, %v1311
        %v1313 = vpop.f32.mrb[0].mxu0
        %v1314 = vadd.f32 0.0, %v1313
        %v1315 = vpop.f32.mrb[0].mxu0
        %v1316 = vadd.f32 0.0, %v1315
        %1317 = vmatprep.mubr.bf16.mxu0 0
        %1318 = vmatmul.mubr.bf16.gmra.mrb[0].mxu0 %v934
        %v1319 = vpop.f32.mrb[0].mxu0
        %v1320 = vadd.f32 0.0, %v1319
        %v1321 = vpop.f32.mrb[0].mxu0
        %v1322 = vadd.f32 0.0, %v1321
        %v1323 = vpop.f32.mrb[0].mxu0
        %v1324 = vadd.f32 0.0, %v1323
        %v1325 = vpop.f32.mrb[0].mxu0
        %v1326 = vadd.f32 0.0, %v1325
        %1327 = vmatprep.mubr.bf16.mxu0 0
        %1328 = vmatmul.mubr.bf16.gmra.mrb[0].mxu0 %v937
        %v1329 = vpop.f32.mrb[0].mxu0
        %v1330 = vadd.f32 0.0, %v1329
        %v1331 = vpop.f32.mrb[0].mxu0
        %v1332 = vadd.f32 0.0, %v1331
        %v1333 = vpop.f32.mrb[0].mxu0
        %v1334 = vadd.f32 0.0, %v1333
        %v1335 = vpop.f32.mrb[0].mxu0
        %v1336 = vadd.f32 0.0, %v1335
        %1337 = vdwg.mxu0
        %v1338 = vmax.f32 %v987, %v989
        %1339 = vmax.xlane.f32.xlu0 %v1338
        %v1340 = vpop.xlane.xlu0 %1339
        %v1341 = vmax.f32 %v991, %v993
        %1342 = vmax.xlane.f32.xlu0 %v1341
        %v1343 = vpop.xlane.xlu0 %1342
        %v1344 = vmax.f32 %v997, %v999
        %1345 = vmax.xlane.f32.xlu0 %v1344
        %v1346 = vpop.xlane.xlu0 %1345
        %v1347 = vmax.f32 %v1001, %v1003
        %1348 = vmax.xlane.f32.xlu0 %v1347
        %v1349 = vpop.xlane.xlu0 %1348
        %v1350 = vmax.f32 %v1007, %v1009
        %1351 = vmax.xlane.f32.xlu0 %v1350
        %v1352 = vpop.xlane.xlu0 %1351
        %v1353 = vmax.f32 %v1011, %v1013
        %1354 = vmax.xlane.f32.xlu0 %v1353
        %v1355 = vpop.xlane.xlu0 %1354
        %v1356 = vmax.f32 %v1017, %v1019
        %1357 = vmax.xlane.f32.xlu0 %v1356
        %v1358 = vpop.xlane.xlu0 %1357
        %v1359 = vmax.f32 %v1021, %v1023
        %1360 = vmax.xlane.f32.xlu0 %v1359
        %v1361 = vpop.xlane.xlu0 %1360
        %v1362 = vmax.f32 %v1027, %v1029
        %1363 = vmax.xlane.f32.xlu0 %v1362
        %v1364 = vpop.xlane.xlu0 %1363
        %v1365 = vmax.f32 %v1031, %v1033
        %1366 = vmax.xlane.f32.xlu0 %v1365
        %v1367 = vpop.xlane.xlu0 %1366
        %v1368 = vmax.f32 %v1037, %v1039
        %1369 = vmax.xlane.f32.xlu0 %v1368
        %v1370 = vpop.xlane.xlu0 %1369
        %v1371 = vmax.f32 %v1041, %v1043
        %1372 = vmax.xlane.f32.xlu0 %v1371
        %v1373 = vpop.xlane.xlu0 %1372
        %v1374 = vmax.f32 %v1047, %v1049
        %1375 = vmax.xlane.f32.xlu0 %v1374
        %v1376 = vpop.xlane.xlu0 %1375
        %v1377 = vmax.f32 %v1051, %v1053
        %1378 = vmax.xlane.f32.xlu0 %v1377
        %v1379 = vpop.xlane.xlu0 %1378
        %v1380 = vmax.f32 %v1057, %v1059
        %1381 = vmax.xlane.f32.xlu0 %v1380
        %v1382 = vpop.xlane.xlu0 %1381
        %v1383 = vmax.f32 %v1061, %v1063
        %1384 = vmax.xlane.f32.xlu0 %v1383
        %v1385 = vpop.xlane.xlu0 %1384
        %v1386 = vmax.f32 %v1067, %v1069
        %1387 = vmax.xlane.f32.xlu0 %v1386
        %v1388 = vpop.xlane.xlu0 %1387
        %v1389 = vmax.f32 %v1071, %v1073
        %1390 = vmax.xlane.f32.xlu0 %v1389
        %v1391 = vpop.xlane.xlu0 %1390
        %v1392 = vmax.f32 %v1077, %v1079
        %1393 = vmax.xlane.f32.xlu0 %v1392
        %v1394 = vpop.xlane.xlu0 %1393
        %v1395 = vmax.f32 %v1081, %v1083
        %1396 = vmax.xlane.f32.xlu0 %v1395
        %v1397 = vpop.xlane.xlu0 %1396
        %v1398 = vmax.f32 %v1087, %v1089
        %1399 = vmax.xlane.f32.xlu0 %v1398
        %v1400 = vpop.xlane.xlu0 %1399
        %v1401 = vmax.f32 %v1091, %v1093
        %1402 = vmax.xlane.f32.xlu0 %v1401
        %v1403 = vpop.xlane.xlu0 %1402
        %v1404 = vmax.f32 %v1097, %v1099
        %1405 = vmax.xlane.f32.xlu0 %v1404
        %v1406 = vpop.xlane.xlu0 %1405
        %v1407 = vmax.f32 %v1101, %v1103
        %1408 = vmax.xlane.f32.xlu0 %v1407
        %v1409 = vpop.xlane.xlu0 %1408
        %v1410 = vmax.f32 %v1107, %v1109
        %1411 = vmax.xlane.f32.xlu0 %v1410
        %v1412 = vpop.xlane.xlu0 %1411
        %v1413 = vmax.f32 %v1111, %v1113
        %1414 = vmax.xlane.f32.xlu0 %v1413
        %v1415 = vpop.xlane.xlu0 %1414
        %v1416 = vmax.f32 %v1117, %v1119
        %1417 = vmax.xlane.f32.xlu0 %v1416
        %v1418 = vpop.xlane.xlu0 %1417
        %v1419 = vmax.f32 %v1121, %v1123
        %1420 = vmax.xlane.f32.xlu0 %v1419
        %v1421 = vpop.xlane.xlu0 %1420
        %v1422 = vmax.f32 %v1127, %v1129
        %1423 = vmax.xlane.f32.xlu0 %v1422
        %v1424 = vpop.xlane.xlu0 %1423
        %v1425 = vmax.f32 %v1131, %v1133
        %1426 = vmax.xlane.f32.xlu0 %v1425
        %v1427 = vpop.xlane.xlu0 %1426
        %v1428 = vmax.f32 %v1137, %v1139
        %1429 = vmax.xlane.f32.xlu0 %v1428
        %v1430 = vpop.xlane.xlu0 %1429
        %v1431 = vmax.f32 %v1141, %v1143
        %1432 = vmax.xlane.f32.xlu0 %v1431
        %v1433 = vpop.xlane.xlu0 %1432
        %v1434 = vsub.f32 %v987, %v1340
        %v1435 = vsub.f32 %v989, %v1340
        %v1436 = vsub.f32 %v991, %v1343
        %v1437 = vsub.f32 %v993, %v1343
        %v1438 = vsub.f32 %v997, %v1346
        %v1439 = vsub.f32 %v999, %v1346
        %v1440 = vsub.f32 %v1001, %v1349
        %v1441 = vsub.f32 %v1003, %v1349
        %v1442 = vsub.f32 %v1007, %v1352
        %v1443 = vsub.f32 %v1009, %v1352
        %v1444 = vsub.f32 %v1011, %v1355
        %v1445 = vsub.f32 %v1013, %v1355
        %v1446 = vsub.f32 %v1017, %v1358
        %v1447 = vsub.f32 %v1019, %v1358
        %v1448 = vsub.f32 %v1021, %v1361
        %v1449 = vsub.f32 %v1023, %v1361
        %v1450 = vsub.f32 %v1027, %v1364
        %v1451 = vsub.f32 %v1029, %v1364
        %v1452 = vsub.f32 %v1031, %v1367
        %v1453 = vsub.f32 %v1033, %v1367
        %v1454 = vsub.f32 %v1037, %v1370
        %v1455 = vsub.f32 %v1039, %v1370
        %v1456 = vsub.f32 %v1041, %v1373
        %v1457 = vsub.f32 %v1043, %v1373
        %v1458 = vsub.f32 %v1047, %v1376
        %v1459 = vsub.f32 %v1049, %v1376
        %v1460 = vsub.f32 %v1051, %v1379
        %v1461 = vsub.f32 %v1053, %v1379
        %v1462 = vsub.f32 %v1057, %v1382
        %v1463 = vsub.f32 %v1059, %v1382
        %v1464 = vsub.f32 %v1061, %v1385
        %v1465 = vsub.f32 %v1063, %v1385
        %v1466 = vsub.f32 %v1067, %v1388
        %v1467 = vsub.f32 %v1069, %v1388
        %v1468 = vsub.f32 %v1071, %v1391
        %v1469 = vsub.f32 %v1073, %v1391
        %v1470 = vsub.f32 %v1077, %v1394
        %v1471 = vsub.f32 %v1079, %v1394
        %v1472 = vsub.f32 %v1081, %v1397
        %v1473 = vsub.f32 %v1083, %v1397
        %v1474 = vsub.f32 %v1087, %v1400
        %v1475 = vsub.f32 %v1089, %v1400
        %v1476 = vsub.f32 %v1091, %v1403
        %v1477 = vsub.f32 %v1093, %v1403
        %v1478 = vsub.f32 %v1097, %v1406
        %v1479 = vsub.f32 %v1099, %v1406
        %v1480 = vsub.f32 %v1101, %v1409
        %v1481 = vsub.f32 %v1103, %v1409
        %v1482 = vsub.f32 %v1107, %v1412
        %v1483 = vsub.f32 %v1109, %v1412
        %v1484 = vsub.f32 %v1111, %v1415
        %v1485 = vsub.f32 %v1113, %v1415
        %v1486 = vsub.f32 %v1117, %v1418
        %v1487 = vsub.f32 %v1119, %v1418
        %v1488 = vsub.f32 %v1121, %v1421
        %v1489 = vsub.f32 %v1123, %v1421
        %v1490 = vsub.f32 %v1127, %v1424
        %v1491 = vsub.f32 %v1129, %v1424
        %v1492 = vsub.f32 %v1131, %v1427
        %v1493 = vsub.f32 %v1133, %v1427
        %v1494 = vsub.f32 %v1137, %v1430
        %v1495 = vsub.f32 %v1139, %v1430
        %v1496 = vsub.f32 %v1141, %v1433
        %v1497 = vsub.f32 %v1143, %v1433
        %v1498 = vmul.f32 %v1434, 1.442695
        %v1499 = vpow.pop %v1498
        %v1500 = vmul.f32 %v1435, 1.442695
        %v1501 = vpow.pop %v1500
        %v1502 = vmul.f32 %v1436, 1.442695
        %v1503 = vpow.pop %v1502
        %v1504 = vmul.f32 %v1437, 1.442695
        %v1505 = vpow.pop %v1504
        %v1506 = vmul.f32 %v1438, 1.442695
        %v1507 = vpow.pop %v1506
        %v1508 = vmul.f32 %v1439, 1.442695
        %v1509 = vpow.pop %v1508
        %v1510 = vmul.f32 %v1440, 1.442695
        %v1511 = vpow.pop %v1510
        %v1512 = vmul.f32 %v1441, 1.442695
        %v1513 = vpow.pop %v1512
        %v1514 = vmul.f32 %v1442, 1.442695
        %v1515 = vpow.pop %v1514
        %v1516 = vmul.f32 %v1443, 1.442695
        %v1517 = vpow.pop %v1516
        %v1518 = vmul.f32 %v1444, 1.442695
        %v1519 = vpow.pop %v1518
        %v1520 = vmul.f32 %v1445, 1.442695
        %v1521 = vpow.pop %v1520
        %v1522 = vmul.f32 %v1446, 1.442695
        %v1523 = vpow.pop %v1522
        %v1524 = vmul.f32 %v1447, 1.442695
        %v1525 = vpow.pop %v1524
        %v1526 = vmul.f32 %v1448, 1.442695
        %v1527 = vpow.pop %v1526
        %v1528 = vmul.f32 %v1449, 1.442695
        %v1529 = vpow.pop %v1528
        %v1530 = vmul.f32 %v1450, 1.442695
        %v1531 = vpow.pop %v1530
        %v1532 = vmul.f32 %v1451, 1.442695
        %v1533 = vpow.pop %v1532
        %v1534 = vmul.f32 %v1452, 1.442695
        %v1535 = vpow.pop %v1534
        %v1536 = vmul.f32 %v1453, 1.442695
        %v1537 = vpow.pop %v1536
        %v1538 = vmul.f32 %v1454, 1.442695
        %v1539 = vpow.pop %v1538
        %v1540 = vmul.f32 %v1455, 1.442695
        %v1541 = vpow.pop %v1540
        %v1542 = vmul.f32 %v1456, 1.442695
        %v1543 = vpow.pop %v1542
        %v1544 = vmul.f32 %v1457, 1.442695
        %v1545 = vpow.pop %v1544
        %v1546 = vmul.f32 %v1458, 1.442695
        %v1547 = vpow.pop %v1546
        %v1548 = vmul.f32 %v1459, 1.442695
        %v1549 = vpow.pop %v1548
        %v1550 = vmul.f32 %v1460, 1.442695
        %v1551 = vpow.pop %v1550
        %v1552 = vmul.f32 %v1461, 1.442695
        %v1553 = vpow.pop %v1552
        %v1554 = vmul.f32 %v1462, 1.442695
        %v1555 = vpow.pop %v1554
        %v1556 = vmul.f32 %v1463, 1.442695
        %v1557 = vpow.pop %v1556
        %v1558 = vmul.f32 %v1464, 1.442695
        %v1559 = vpow.pop %v1558
        %v1560 = vmul.f32 %v1465, 1.442695
        %v1561 = vpow.pop %v1560
        %v1562 = vmul.f32 %v1466, 1.442695
        %v1563 = vpow.pop %v1562
        %v1564 = vmul.f32 %v1467, 1.442695
        %v1565 = vpow.pop %v1564
        %v1566 = vmul.f32 %v1468, 1.442695
        %v1567 = vpow.pop %v1566
        %v1568 = vmul.f32 %v1469, 1.442695
        %v1569 = vpow.pop %v1568
        %v1570 = vmul.f32 %v1470, 1.442695
        %v1571 = vpow.pop %v1570
        %v1572 = vmul.f32 %v1471, 1.442695
        %v1573 = vpow.pop %v1572
        %v1574 = vmul.f32 %v1472, 1.442695
        %v1575 = vpow.pop %v1574
        %v1576 = vmul.f32 %v1473, 1.442695
        %v1577 = vpow.pop %v1576
        %v1578 = vmul.f32 %v1474, 1.442695
        %v1579 = vpow.pop %v1578
        %v1580 = vmul.f32 %v1475, 1.442695
        %v1581 = vpow.pop %v1580
        %v1582 = vmul.f32 %v1476, 1.442695
        %v1583 = vpow.pop %v1582
        %v1584 = vmul.f32 %v1477, 1.442695
        %v1585 = vpow.pop %v1584
        %v1586 = vmul.f32 %v1478, 1.442695
        %v1587 = vpow.pop %v1586
        %v1588 = vmul.f32 %v1479, 1.442695
        %v1589 = vpow.pop %v1588
        %v1590 = vmul.f32 %v1480, 1.442695
        %v1591 = vpow.pop %v1590
        %v1592 = vmul.f32 %v1481, 1.442695
        %v1593 = vpow.pop %v1592
        %v1594 = vmul.f32 %v1482, 1.442695
        %v1595 = vpow.pop %v1594
        %v1596 = vmul.f32 %v1483, 1.442695
        %v1597 = vpow.pop %v1596
        %v1598 = vmul.f32 %v1484, 1.442695
        %v1599 = vpow.pop %v1598
        %v1600 = vmul.f32 %v1485, 1.442695
        %v1601 = vpow.pop %v1600
        %v1602 = vmul.f32 %v1486, 1.442695
        %v1603 = vpow.pop %v1602
        %v1604 = vmul.f32 %v1487, 1.442695
        %v1605 = vpow.pop %v1604
        %v1606 = vmul.f32 %v1488, 1.442695
        %v1607 = vpow.pop %v1606
        %v1608 = vmul.f32 %v1489, 1.442695
        %v1609 = vpow.pop %v1608
        %v1610 = vmul.f32 %v1490, 1.442695
        %v1611 = vpow.pop %v1610
        %v1612 = vmul.f32 %v1491, 1.442695
        %v1613 = vpow.pop %v1612
        %v1614 = vmul.f32 %v1492, 1.442695
        %v1615 = vpow.pop %v1614
        %v1616 = vmul.f32 %v1493, 1.442695
        %v1617 = vpow.pop %v1616
        %v1618 = vmul.f32 %v1494, 1.442695
        %v1619 = vpow.pop %v1618
        %v1620 = vmul.f32 %v1495, 1.442695
        %v1621 = vpow.pop %v1620
        %v1622 = vmul.f32 %v1496, 1.442695
        %v1623 = vpow.pop %v1622
        %v1624 = vmul.f32 %v1497, 1.442695
        %v1625 = vpow.pop %v1624
        %v1626 = vadd.f32 %v1499, %v1501
        %1627 = vadd.xlane.f32.xlu0 %v1626
        %v1628 = vpop.xlane.xlu0 %1627
        %v1629 = vadd.f32 %v1503, %v1505
        %1630 = vadd.xlane.f32.xlu0 %v1629
        %v1631 = vpop.xlane.xlu0 %1630
        %v1632 = vadd.f32 %v1507, %v1509
        %1633 = vadd.xlane.f32.xlu0 %v1632
        %v1634 = vpop.xlane.xlu0 %1633
        %v1635 = vadd.f32 %v1511, %v1513
        %1636 = vadd.xlane.f32.xlu0 %v1635
        %v1637 = vpop.xlane.xlu0 %1636
        %v1638 = vadd.f32 %v1515, %v1517
        %1639 = vadd.xlane.f32.xlu0 %v1638
        %v1640 = vpop.xlane.xlu0 %1639
        %v1641 = vadd.f32 %v1519, %v1521
        %1642 = vadd.xlane.f32.xlu0 %v1641
        %v1643 = vpop.xlane.xlu0 %1642
        %v1644 = vadd.f32 %v1523, %v1525
        %1645 = vadd.xlane.f32.xlu0 %v1644
        %v1646 = vpop.xlane.xlu0 %1645
        %v1647 = vadd.f32 %v1527, %v1529
        %1648 = vadd.xlane.f32.xlu0 %v1647
        %v1649 = vpop.xlane.xlu0 %1648
        %v1650 = vadd.f32 %v1531, %v1533
        %1651 = vadd.xlane.f32.xlu0 %v1650
        %v1652 = vpop.xlane.xlu0 %1651
        %v1653 = vadd.f32 %v1535, %v1537
        %1654 = vadd.xlane.f32.xlu0 %v1653
        %v1655 = vpop.xlane.xlu0 %1654
        %v1656 = vadd.f32 %v1539, %v1541
        %1657 = vadd.xlane.f32.xlu0 %v1656
        %v1658 = vpop.xlane.xlu0 %1657
        %v1659 = vadd.f32 %v1543, %v1545
        %1660 = vadd.xlane.f32.xlu0 %v1659
        %v1661 = vpop.xlane.xlu0 %1660
        %v1662 = vadd.f32 %v1547, %v1549
        %1663 = vadd.xlane.f32.xlu0 %v1662
        %v1664 = vpop.xlane.xlu0 %1663
        %v1665 = vadd.f32 %v1551, %v1553
        %1666 = vadd.xlane.f32.xlu0 %v1665
        %v1667 = vpop.xlane.xlu0 %1666
        %v1668 = vadd.f32 %v1555, %v1557
        %1669 = vadd.xlane.f32.xlu0 %v1668
        %v1670 = vpop.xlane.xlu0 %1669
        %v1671 = vadd.f32 %v1559, %v1561
        %1672 = vadd.xlane.f32.xlu0 %v1671
        %v1673 = vpop.xlane.xlu0 %1672
        %v1674 = vadd.f32 %v1563, %v1565
        %1675 = vadd.xlane.f32.xlu0 %v1674
        %v1676 = vpop.xlane.xlu0 %1675
        %v1677 = vadd.f32 %v1567, %v1569
        %1678 = vadd.xlane.f32.xlu0 %v1677
        %v1679 = vpop.xlane.xlu0 %1678
        %v1680 = vadd.f32 %v1571, %v1573
        %1681 = vadd.xlane.f32.xlu0 %v1680
        %v1682 = vpop.xlane.xlu0 %1681
        %v1683 = vadd.f32 %v1575, %v1577
        %1684 = vadd.xlane.f32.xlu0 %v1683
        %v1685 = vpop.xlane.xlu0 %1684
        %v1686 = vadd.f32 %v1579, %v1581
        %1687 = vadd.xlane.f32.xlu0 %v1686
        %v1688 = vpop.xlane.xlu0 %1687
        %v1689 = vadd.f32 %v1583, %v1585
        %1690 = vadd.xlane.f32.xlu0 %v1689
        %v1691 = vpop.xlane.xlu0 %1690
        %v1692 = vadd.f32 %v1587, %v1589
        %1693 = vadd.xlane.f32.xlu0 %v1692
        %v1694 = vpop.xlane.xlu0 %1693
        %v1695 = vadd.f32 %v1591, %v1593
        %1696 = vadd.xlane.f32.xlu0 %v1695
        %v1697 = vpop.xlane.xlu0 %1696
        %v1698 = vadd.f32 %v1595, %v1597
        %1699 = vadd.xlane.f32.xlu0 %v1698
        %v1700 = vpop.xlane.xlu0 %1699
        %v1701 = vadd.f32 %v1599, %v1601
        %1702 = vadd.xlane.f32.xlu0 %v1701
        %v1703 = vpop.xlane.xlu0 %1702
        %v1704 = vadd.f32 %v1603, %v1605
        %1705 = vadd.xlane.f32.xlu0 %v1704
        %v1706 = vpop.xlane.xlu0 %1705
        %v1707 = vadd.f32 %v1607, %v1609
        %1708 = vadd.xlane.f32.xlu0 %v1707
        %v1709 = vpop.xlane.xlu0 %1708
        %v1710 = vadd.f32 %v1611, %v1613
        %1711 = vadd.xlane.f32.xlu0 %v1710
        %v1712 = vpop.xlane.xlu0 %1711
        %v1713 = vadd.f32 %v1615, %v1617
        %1714 = vadd.xlane.f32.xlu0 %v1713
        %v1715 = vpop.xlane.xlu0 %1714
        %v1716 = vadd.f32 %v1619, %v1621
        %1717 = vadd.xlane.f32.xlu0 %v1716
        %v1718 = vpop.xlane.xlu0 %1717
        %v1719 = vadd.f32 %v1623, %v1625
        %1720 = vadd.xlane.f32.xlu0 %v1719
        %v1721 = vpop.xlane.xlu0 %1720
        %v1722 = vrcp.pop %v1628
        %v1723 = vrcp.pop %v1631
        %v1724 = vrcp.pop %v1634
        %v1725 = vrcp.pop %v1637
        %v1726 = vrcp.pop %v1640
        %v1727 = vrcp.pop %v1643
        %v1728 = vrcp.pop %v1646
        %v1729 = vrcp.pop %v1649
        %v1730 = vrcp.pop %v1652
        %v1731 = vrcp.pop %v1655
        %v1732 = vrcp.pop %v1658
        %v1733 = vrcp.pop %v1661
        %v1734 = vrcp.pop %v1664
        %v1735 = vrcp.pop %v1667
        %v1736 = vrcp.pop %v1670
        %v1737 = vrcp.pop %v1673
        %v1738 = vrcp.pop %v1676
        %v1739 = vrcp.pop %v1679
        %v1740 = vrcp.pop %v1682
        %v1741 = vrcp.pop %v1685
        %v1742 = vrcp.pop %v1688
        %v1743 = vrcp.pop %v1691
        %v1744 = vrcp.pop %v1694
        %v1745 = vrcp.pop %v1697
        %v1746 = vrcp.pop %v1700
        %v1747 = vrcp.pop %v1703
        %v1748 = vrcp.pop %v1706
        %v1749 = vrcp.pop %v1709
        %v1750 = vrcp.pop %v1712
        %v1751 = vrcp.pop %v1715
        %v1752 = vrcp.pop %v1718
        %v1753 = vrcp.pop %v1721
        %v1754 = vmul.f32 %v1499, %v1722
        %v1755 = vmul.f32 %v1501, %v1722
        %v1756 = vmul.f32 %v1503, %v1723
        %v1757 = vmul.f32 %v1505, %v1723
        %v1758 = vmul.f32 %v1507, %v1724
        %v1759 = vmul.f32 %v1509, %v1724
        %v1760 = vmul.f32 %v1511, %v1725
        %v1761 = vmul.f32 %v1513, %v1725
        %v1762 = vmul.f32 %v1515, %v1726
        %v1763 = vmul.f32 %v1517, %v1726
        %v1764 = vmul.f32 %v1519, %v1727
        %v1765 = vmul.f32 %v1521, %v1727
        %v1766 = vmul.f32 %v1523, %v1728
        %v1767 = vmul.f32 %v1525, %v1728
        %v1768 = vmul.f32 %v1527, %v1729
        %v1769 = vmul.f32 %v1529, %v1729
        %v1770 = vmul.f32 %v1531, %v1730
        %v1771 = vmul.f32 %v1533, %v1730
        %v1772 = vmul.f32 %v1535, %v1731
        %v1773 = vmul.f32 %v1537, %v1731
        %v1774 = vmul.f32 %v1539, %v1732
        %v1775 = vmul.f32 %v1541, %v1732
        %v1776 = vmul.f32 %v1543, %v1733
        %v1777 = vmul.f32 %v1545, %v1733
        %v1778 = vmul.f32 %v1547, %v1734
        %v1779 = vmul.f32 %v1549, %v1734
        %v1780 = vmul.f32 %v1551, %v1735
        %v1781 = vmul.f32 %v1553, %v1735
        %v1782 = vmul.f32 %v1555, %v1736
        %v1783 = vmul.f32 %v1557, %v1736
        %v1784 = vmul.f32 %v1559, %v1737
        %v1785 = vmul.f32 %v1561, %v1737
        %v1786 = vmul.f32 %v1563, %v1738
        %v1787 = vmul.f32 %v1565, %v1738
        %v1788 = vmul.f32 %v1567, %v1739
        %v1789 = vmul.f32 %v1569, %v1739
        %v1790 = vmul.f32 %v1571, %v1740
        %v1791 = vmul.f32 %v1573, %v1740
        %v1792 = vmul.f32 %v1575, %v1741
        %v1793 = vmul.f32 %v1577, %v1741
        %v1794 = vmul.f32 %v1579, %v1742
        %v1795 = vmul.f32 %v1581, %v1742
        %v1796 = vmul.f32 %v1583, %v1743
        %v1797 = vmul.f32 %v1585, %v1743
        %v1798 = vmul.f32 %v1587, %v1744
        %v1799 = vmul.f32 %v1589, %v1744
        %v1800 = vmul.f32 %v1591, %v1745
        %v1801 = vmul.f32 %v1593, %v1745
        %v1802 = vmul.f32 %v1595, %v1746
        %v1803 = vmul.f32 %v1597, %v1746
        %v1804 = vmul.f32 %v1599, %v1747
        %v1805 = vmul.f32 %v1601, %v1747
        %v1806 = vmul.f32 %v1603, %v1748
        %v1807 = vmul.f32 %v1605, %v1748
        %v1808 = vmul.f32 %v1607, %v1749
        %v1809 = vmul.f32 %v1609, %v1749
        %v1810 = vmul.f32 %v1611, %v1750
        %v1811 = vmul.f32 %v1613, %v1750
        %v1812 = vmul.f32 %v1615, %v1751
        %v1813 = vmul.f32 %v1617, %v1751
        %v1814 = vmul.f32 %v1619, %v1752
        %v1815 = vmul.f32 %v1621, %v1752
        %v1816 = vmul.f32 %v1623, %v1753
        %v1817 = vmul.f32 %v1625, %v1753
        %v1818 = vpack.c.bf16 %v1756, %v1754
        %v1819 = vpack.c.bf16 %v1757, %v1755
        %v1820 = vpack.c.bf16 %v1760, %v1758
        %v1821 = vpack.c.bf16 %v1761, %v1759
        %v1822 = vpack.c.bf16 %v1764, %v1762
        %v1823 = vpack.c.bf16 %v1765, %v1763
        %v1824 = vpack.c.bf16 %v1768, %v1766
        %v1825 = vpack.c.bf16 %v1769, %v1767
        %v1826 = vpack.c.bf16 %v1772, %v1770
        %v1827 = vpack.c.bf16 %v1773, %v1771
        %v1828 = vpack.c.bf16 %v1776, %v1774
        %v1829 = vpack.c.bf16 %v1777, %v1775
        %v1830 = vpack.c.bf16 %v1780, %v1778
        %v1831 = vpack.c.bf16 %v1781, %v1779
        %v1832 = vpack.c.bf16 %v1784, %v1782
        %v1833 = vpack.c.bf16 %v1785, %v1783
        %v1834 = vpack.c.bf16 %v1788, %v1786
        %v1835 = vpack.c.bf16 %v1789, %v1787
        %v1836 = vpack.c.bf16 %v1792, %v1790
        %v1837 = vpack.c.bf16 %v1793, %v1791
        %v1838 = vpack.c.bf16 %v1796, %v1794
        %v1839 = vpack.c.bf16 %v1797, %v1795
        %v1840 = vpack.c.bf16 %v1800, %v1798
        %v1841 = vpack.c.bf16 %v1801, %v1799
        %v1842 = vpack.c.bf16 %v1804, %v1802
        %v1843 = vpack.c.bf16 %v1805, %v1803
        %v1844 = vpack.c.bf16 %v1808, %v1806
        %v1845 = vpack.c.bf16 %v1809, %v1807
        %v1846 = vpack.c.bf16 %v1812, %v1810
        %v1847 = vpack.c.bf16 %v1813, %v1811
        %v1848 = vpack.c.bf16 %v1816, %v1814
        %v1849 = vpack.c.bf16 %v1817, %v1815
        %v1850 = vmax.f32 %v1180, %v1182
        %1851 = vmax.xlane.f32.xlu0 %v1850
        %v1852 = vpop.xlane.xlu0 %1851
        %v1853 = vmax.f32 %v1184, %v1186
        %1854 = vmax.xlane.f32.xlu0 %v1853
        %v1855 = vpop.xlane.xlu0 %1854
        %v1856 = vmax.f32 %v1190, %v1192
        %1857 = vmax.xlane.f32.xlu0 %v1856
        %v1858 = vpop.xlane.xlu0 %1857
        %v1859 = vmax.f32 %v1194, %v1196
        %1860 = vmax.xlane.f32.xlu0 %v1859
        %v1861 = vpop.xlane.xlu0 %1860
        %v1862 = vmax.f32 %v1200, %v1202
        %1863 = vmax.xlane.f32.xlu0 %v1862
        %v1864 = vpop.xlane.xlu0 %1863
        %v1865 = vmax.f32 %v1204, %v1206
        %1866 = vmax.xlane.f32.xlu0 %v1865
        %v1867 = vpop.xlane.xlu0 %1866
        %v1868 = vmax.f32 %v1210, %v1212
        %1869 = vmax.xlane.f32.xlu0 %v1868
        %v1870 = vpop.xlane.xlu0 %1869
        %v1871 = vmax.f32 %v1214, %v1216
        %1872 = vmax.xlane.f32.xlu0 %v1871
        %v1873 = vpop.xlane.xlu0 %1872
        %v1874 = vmax.f32 %v1220, %v1222
        %1875 = vmax.xlane.f32.xlu0 %v1874
        %v1876 = vpop.xlane.xlu0 %1875
        %v1877 = vmax.f32 %v1224, %v1226
        %1878 = vmax.xlane.f32.xlu0 %v1877
        %v1879 = vpop.xlane.xlu0 %1878
        %v1880 = vmax.f32 %v1230, %v1232
        %1881 = vmax.xlane.f32.xlu0 %v1880
        %v1882 = vpop.xlane.xlu0 %1881
        %v1883 = vmax.f32 %v1234, %v1236
        %1884 = vmax.xlane.f32.xlu0 %v1883
        %v1885 = vpop.xlane.xlu0 %1884
        %v1886 = vmax.f32 %v1240, %v1242
        %1887 = vmax.xlane.f32.xlu0 %v1886
        %v1888 = vpop.xlane.xlu0 %1887
        %v1889 = vmax.f32 %v1244, %v1246
        %1890 = vmax.xlane.f32.xlu0 %v1889
        %v1891 = vpop.xlane.xlu0 %1890
        %v1892 = vmax.f32 %v1250, %v1252
        %1893 = vmax.xlane.f32.xlu0 %v1892
        %v1894 = vpop.xlane.xlu0 %1893
        %v1895 = vmax.f32 %v1254, %v1256
        %1896 = vmax.xlane.f32.xlu0 %v1895
        %v1897 = vpop.xlane.xlu0 %1896
        %v1898 = vmax.f32 %v1260, %v1262
        %1899 = vmax.xlane.f32.xlu0 %v1898
        %v1900 = vpop.xlane.xlu0 %1899
        %v1901 = vmax.f32 %v1264, %v1266
        %1902 = vmax.xlane.f32.xlu0 %v1901
        %v1903 = vpop.xlane.xlu0 %1902
        %v1904 = vmax.f32 %v1270, %v1272
        %1905 = vmax.xlane.f32.xlu0 %v1904
        %v1906 = vpop.xlane.xlu0 %1905
        %v1907 = vmax.f32 %v1274, %v1276
        %1908 = vmax.xlane.f32.xlu0 %v1907
        %v1909 = vpop.xlane.xlu0 %1908
        %v1910 = vmax.f32 %v1280, %v1282
        %1911 = vmax.xlane.f32.xlu0 %v1910
        %v1912 = vpop.xlane.xlu0 %1911
        %v1913 = vmax.f32 %v1284, %v1286
        %1914 = vmax.xlane.f32.xlu0 %v1913
        %v1915 = vpop.xlane.xlu0 %1914
        %v1916 = vmax.f32 %v1290, %v1292
        %1917 = vmax.xlane.f32.xlu0 %v1916
        %v1918 = vpop.xlane.xlu0 %1917
        %v1919 = vmax.f32 %v1294, %v1296
        %1920 = vmax.xlane.f32.xlu0 %v1919
        %v1921 = vpop.xlane.xlu0 %1920
        %v1922 = vmax.f32 %v1300, %v1302
        %1923 = vmax.xlane.f32.xlu0 %v1922
        %v1924 = vpop.xlane.xlu0 %1923
        %v1925 = vmax.f32 %v1304, %v1306
        %1926 = vmax.xlane.f32.xlu0 %v1925
        %v1927 = vpop.xlane.xlu0 %1926
        %v1928 = vmax.f32 %v1310, %v1312
        %1929 = vmax.xlane.f32.xlu0 %v1928
        %v1930 = vpop.xlane.xlu0 %1929
        %v1931 = vmax.f32 %v1314, %v1316
        %1932 = vmax.xlane.f32.xlu0 %v1931
        %v1933 = vpop.xlane.xlu0 %1932
        %v1934 = vmax.f32 %v1320, %v1322
        %1935 = vmax.xlane.f32.xlu0 %v1934
        %v1936 = vpop.xlane.xlu0 %1935
        %v1937 = vmax.f32 %v1324, %v1326
        %1938 = vmax.xlane.f32.xlu0 %v1937
        %v1939 = vpop.xlane.xlu0 %1938
        %v1940 = vmax.f32 %v1330, %v1332
        %1941 = vmax.xlane.f32.xlu0 %v1940
        %v1942 = vpop.xlane.xlu0 %1941
        %v1943 = vmax.f32 %v1334, %v1336
        %1944 = vmax.xlane.f32.xlu0 %v1943
        %v1945 = vpop.xlane.xlu0 %1944
        %v1946 = vsub.f32 %v1180, %v1852
        %v1947 = vsub.f32 %v1182, %v1852
        %v1948 = vsub.f32 %v1184, %v1855
        %v1949 = vsub.f32 %v1186, %v1855
        %v1950 = vsub.f32 %v1190, %v1858
        %v1951 = vsub.f32 %v1192, %v1858
        %v1952 = vsub.f32 %v1194, %v1861
        %v1953 = vsub.f32 %v1196, %v1861
        %v1954 = vsub.f32 %v1200, %v1864
        %v1955 = vsub.f32 %v1202, %v1864
        %v1956 = vsub.f32 %v1204, %v1867
        %v1957 = vsub.f32 %v1206, %v1867
        %v1958 = vsub.f32 %v1210, %v1870
        %v1959 = vsub.f32 %v1212, %v1870
        %v1960 = vsub.f32 %v1214, %v1873
        %v1961 = vsub.f32 %v1216, %v1873
        %v1962 = vsub.f32 %v1220, %v1876
        %v1963 = vsub.f32 %v1222, %v1876
        %v1964 = vsub.f32 %v1224, %v1879
        %v1965 = vsub.f32 %v1226, %v1879
        %v1966 = vsub.f32 %v1230, %v1882
        %v1967 = vsub.f32 %v1232, %v1882
        %v1968 = vsub.f32 %v1234, %v1885
        %v1969 = vsub.f32 %v1236, %v1885
        %v1970 = vsub.f32 %v1240, %v1888
        %v1971 = vsub.f32 %v1242, %v1888
        %v1972 = vsub.f32 %v1244, %v1891
        %v1973 = vsub.f32 %v1246, %v1891
        %v1974 = vsub.f32 %v1250, %v1894
        %v1975 = vsub.f32 %v1252, %v1894
        %v1976 = vsub.f32 %v1254, %v1897
        %v1977 = vsub.f32 %v1256, %v1897
        %v1978 = vsub.f32 %v1260, %v1900
        %v1979 = vsub.f32 %v1262, %v1900
        %v1980 = vsub.f32 %v1264, %v1903
        %v1981 = vsub.f32 %v1266, %v1903
        %v1982 = vsub.f32 %v1270, %v1906
        %v1983 = vsub.f32 %v1272, %v1906
        %v1984 = vsub.f32 %v1274, %v1909
        %v1985 = vsub.f32 %v1276, %v1909
        %v1986 = vsub.f32 %v1280, %v1912
        %v1987 = vsub.f32 %v1282, %v1912
        %v1988 = vsub.f32 %v1284, %v1915
        %v1989 = vsub.f32 %v1286, %v1915
        %v1990 = vsub.f32 %v1290, %v1918
        %v1991 = vsub.f32 %v1292, %v1918
        %v1992 = vsub.f32 %v1294, %v1921
        %v1993 = vsub.f32 %v1296, %v1921
        %v1994 = vsub.f32 %v1300, %v1924
        %v1995 = vsub.f32 %v1302, %v1924
        %v1996 = vsub.f32 %v1304, %v1927
        %v1997 = vsub.f32 %v1306, %v1927
        %v1998 = vsub.f32 %v1310, %v1930
        %v1999 = vsub.f32 %v1312, %v1930
        %v2000 = vsub.f32 %v1314, %v1933
        %v2001 = vsub.f32 %v1316, %v1933
        %v2002 = vsub.f32 %v1320, %v1936
        %v2003 = vsub.f32 %v1322, %v1936
        %v2004 = vsub.f32 %v1324, %v1939
        %v2005 = vsub.f32 %v1326, %v1939
        %v2006 = vsub.f32 %v1330, %v1942
        %v2007 = vsub.f32 %v1332, %v1942
        %v2008 = vsub.f32 %v1334, %v1945
        %v2009 = vsub.f32 %v1336, %v1945
        %v2010 = vmul.f32 %v1946, 1.442695
        %v2011 = vpow.pop %v2010
        %v2012 = vmul.f32 %v1947, 1.442695
        %v2013 = vpow.pop %v2012
        %v2014 = vmul.f32 %v1948, 1.442695
        %v2015 = vpow.pop %v2014
        %v2016 = vmul.f32 %v1949, 1.442695
        %v2017 = vpow.pop %v2016
        %v2018 = vmul.f32 %v1950, 1.442695
        %v2019 = vpow.pop %v2018
        %v2020 = vmul.f32 %v1951, 1.442695
        %v2021 = vpow.pop %v2020
        %v2022 = vmul.f32 %v1952, 1.442695
        %v2023 = vpow.pop %v2022
        %v2024 = vmul.f32 %v1953, 1.442695
        %v2025 = vpow.pop %v2024
        %v2026 = vmul.f32 %v1954, 1.442695
        %v2027 = vpow.pop %v2026
        %v2028 = vmul.f32 %v1955, 1.442695
        %v2029 = vpow.pop %v2028
        %v2030 = vmul.f32 %v1956, 1.442695
        %v2031 = vpow.pop %v2030
        %v2032 = vmul.f32 %v1957, 1.442695
        %v2033 = vpow.pop %v2032
        %v2034 = vmul.f32 %v1958, 1.442695
        %v2035 = vpow.pop %v2034
        %v2036 = vmul.f32 %v1959, 1.442695
        %v2037 = vpow.pop %v2036
        %v2038 = vmul.f32 %v1960, 1.442695
        %v2039 = vpow.pop %v2038
        %v2040 = vmul.f32 %v1961, 1.442695
        %v2041 = vpow.pop %v2040
        %v2042 = vmul.f32 %v1962, 1.442695
        %v2043 = vpow.pop %v2042
        %v2044 = vmul.f32 %v1963, 1.442695
        %v2045 = vpow.pop %v2044
        %v2046 = vmul.f32 %v1964, 1.442695
        %v2047 = vpow.pop %v2046
        %v2048 = vmul.f32 %v1965, 1.442695
        %v2049 = vpow.pop %v2048
        %v2050 = vmul.f32 %v1966, 1.442695
        %v2051 = vpow.pop %v2050
        %v2052 = vmul.f32 %v1967, 1.442695
        %v2053 = vpow.pop %v2052
        %v2054 = vmul.f32 %v1968, 1.442695
        %v2055 = vpow.pop %v2054
        %v2056 = vmul.f32 %v1969, 1.442695
        %v2057 = vpow.pop %v2056
        %v2058 = vmul.f32 %v1970, 1.442695
        %v2059 = vpow.pop %v2058
        %v2060 = vmul.f32 %v1971, 1.442695
        %v2061 = vpow.pop %v2060
        %v2062 = vmul.f32 %v1972, 1.442695
        %v2063 = vpow.pop %v2062
        %v2064 = vmul.f32 %v1973, 1.442695
        %v2065 = vpow.pop %v2064
        %v2066 = vmul.f32 %v1974, 1.442695
        %v2067 = vpow.pop %v2066
        %v2068 = vmul.f32 %v1975, 1.442695
        %v2069 = vpow.pop %v2068
        %v2070 = vmul.f32 %v1976, 1.442695
        %v2071 = vpow.pop %v2070
        %v2072 = vmul.f32 %v1977, 1.442695
        %v2073 = vpow.pop %v2072
        %v2074 = vmul.f32 %v1978, 1.442695
        %v2075 = vpow.pop %v2074
        %v2076 = vmul.f32 %v1979, 1.442695
        %v2077 = vpow.pop %v2076
        %v2078 = vmul.f32 %v1980, 1.442695
        %v2079 = vpow.pop %v2078
        %v2080 = vmul.f32 %v1981, 1.442695
        %v2081 = vpow.pop %v2080
        %v2082 = vmul.f32 %v1982, 1.442695
        %v2083 = vpow.pop %v2082
        %v2084 = vmul.f32 %v1983, 1.442695
        %v2085 = vpow.pop %v2084
        %v2086 = vmul.f32 %v1984, 1.442695
        %v2087 = vpow.pop %v2086
        %v2088 = vmul.f32 %v1985, 1.442695
        %v2089 = vpow.pop %v2088
        %v2090 = vmul.f32 %v1986, 1.442695
        %v2091 = vpow.pop %v2090
        %v2092 = vmul.f32 %v1987, 1.442695
        %v2093 = vpow.pop %v2092
        %v2094 = vmul.f32 %v1988, 1.442695
        %v2095 = vpow.pop %v2094
        %v2096 = vmul.f32 %v1989, 1.442695
        %v2097 = vpow.pop %v2096
        %v2098 = vmul.f32 %v1990, 1.442695
        %v2099 = vpow.pop %v2098
        %v2100 = vmul.f32 %v1991, 1.442695
        %v2101 = vpow.pop %v2100
        %v2102 = vmul.f32 %v1992, 1.442695
        %v2103 = vpow.pop %v2102
        %v2104 = vmul.f32 %v1993, 1.442695
        %v2105 = vpow.pop %v2104
        %v2106 = vmul.f32 %v1994, 1.442695
        %v2107 = vpow.pop %v2106
        %v2108 = vmul.f32 %v1995, 1.442695
        %v2109 = vpow.pop %v2108
        %v2110 = vmul.f32 %v1996, 1.442695
        %v2111 = vpow.pop %v2110
        %v2112 = vmul.f32 %v1997, 1.442695
        %v2113 = vpow.pop %v2112
        %v2114 = vmul.f32 %v1998, 1.442695
        %v2115 = vpow.pop %v2114
        %v2116 = vmul.f32 %v1999, 1.442695
        %v2117 = vpow.pop %v2116
        %v2118 = vmul.f32 %v2000, 1.442695
        %v2119 = vpow.pop %v2118
        %v2120 = vmul.f32 %v2001, 1.442695
        %v2121 = vpow.pop %v2120
        %v2122 = vmul.f32 %v2002, 1.442695
        %v2123 = vpow.pop %v2122
        %v2124 = vmul.f32 %v2003, 1.442695
        %v2125 = vpow.pop %v2124
        %v2126 = vmul.f32 %v2004, 1.442695
        %v2127 = vpow.pop %v2126
        %v2128 = vmul.f32 %v2005, 1.442695
        %v2129 = vpow.pop %v2128
        %v2130 = vmul.f32 %v2006, 1.442695
        %v2131 = vpow.pop %v2130
        %v2132 = vmul.f32 %v2007, 1.442695
        %v2133 = vpow.pop %v2132
        %v2134 = vmul.f32 %v2008, 1.442695
        %v2135 = vpow.pop %v2134
        %v2136 = vmul.f32 %v2009, 1.442695
        %v2137 = vpow.pop %v2136
        %v2138 = vadd.f32 %v2011, %v2013
        %2139 = vadd.xlane.f32.xlu0 %v2138
        %v2140 = vpop.xlane.xlu0 %2139
        %v2141 = vadd.f32 %v2015, %v2017
        %2142 = vadd.xlane.f32.xlu0 %v2141
        %v2143 = vpop.xlane.xlu0 %2142
        %v2144 = vadd.f32 %v2019, %v2021
        %2145 = vadd.xlane.f32.xlu0 %v2144
        %v2146 = vpop.xlane.xlu0 %2145
        %v2147 = vadd.f32 %v2023, %v2025
        %2148 = vadd.xlane.f32.xlu0 %v2147
        %v2149 = vpop.xlane.xlu0 %2148
        %v2150 = vadd.f32 %v2027, %v2029
        %2151 = vadd.xlane.f32.xlu0 %v2150
        %v2152 = vpop.xlane.xlu0 %2151
        %v2153 = vadd.f32 %v2031, %v2033
        %2154 = vadd.xlane.f32.xlu0 %v2153
        %v2155 = vpop.xlane.xlu0 %2154
        %v2156 = vadd.f32 %v2035, %v2037
        %2157 = vadd.xlane.f32.xlu0 %v2156
        %v2158 = vpop.xlane.xlu0 %2157
        %v2159 = vadd.f32 %v2039, %v2041
        %2160 = vadd.xlane.f32.xlu0 %v2159
        %v2161 = vpop.xlane.xlu0 %2160
        %v2162 = vadd.f32 %v2043, %v2045
        %2163 = vadd.xlane.f32.xlu0 %v2162
        %v2164 = vpop.xlane.xlu0 %2163
        %v2165 = vadd.f32 %v2047, %v2049
        %2166 = vadd.xlane.f32.xlu0 %v2165
        %v2167 = vpop.xlane.xlu0 %2166
        %v2168 = vadd.f32 %v2051, %v2053
        %2169 = vadd.xlane.f32.xlu0 %v2168
        %v2170 = vpop.xlane.xlu0 %2169
        %v2171 = vadd.f32 %v2055, %v2057
        %2172 = vadd.xlane.f32.xlu0 %v2171
        %v2173 = vpop.xlane.xlu0 %2172
        %v2174 = vadd.f32 %v2059, %v2061
        %2175 = vadd.xlane.f32.xlu0 %v2174
        %v2176 = vpop.xlane.xlu0 %2175
        %v2177 = vadd.f32 %v2063, %v2065
        %2178 = vadd.xlane.f32.xlu0 %v2177
        %v2179 = vpop.xlane.xlu0 %2178
        %v2180 = vadd.f32 %v2067, %v2069
        %2181 = vadd.xlane.f32.xlu0 %v2180
        %v2182 = vpop.xlane.xlu0 %2181
        %v2183 = vadd.f32 %v2071, %v2073
        %2184 = vadd.xlane.f32.xlu0 %v2183
        %v2185 = vpop.xlane.xlu0 %2184
        %v2186 = vadd.f32 %v2075, %v2077
        %2187 = vadd.xlane.f32.xlu0 %v2186
        %v2188 = vpop.xlane.xlu0 %2187
        %v2189 = vadd.f32 %v2079, %v2081
        %2190 = vadd.xlane.f32.xlu0 %v2189
        %v2191 = vpop.xlane.xlu0 %2190
        %v2192 = vadd.f32 %v2083, %v2085
        %2193 = vadd.xlane.f32.xlu0 %v2192
        %v2194 = vpop.xlane.xlu0 %2193
        %v2195 = vadd.f32 %v2087, %v2089
        %2196 = vadd.xlane.f32.xlu0 %v2195
        %v2197 = vpop.xlane.xlu0 %2196
        %v2198 = vadd.f32 %v2091, %v2093
        %2199 = vadd.xlane.f32.xlu0 %v2198
        %v2200 = vpop.xlane.xlu0 %2199
        %v2201 = vadd.f32 %v2095, %v2097
        %2202 = vadd.xlane.f32.xlu0 %v2201
        %v2203 = vpop.xlane.xlu0 %2202
        %v2204 = vadd.f32 %v2099, %v2101
        %2205 = vadd.xlane.f32.xlu0 %v2204
        %v2206 = vpop.xlane.xlu0 %2205
        %v2207 = vadd.f32 %v2103, %v2105
        %2208 = vadd.xlane.f32.xlu0 %v2207
        %v2209 = vpop.xlane.xlu0 %2208
        %v2210 = vadd.f32 %v2107, %v2109
        %2211 = vadd.xlane.f32.xlu0 %v2210
        %v2212 = vpop.xlane.xlu0 %2211
        %v2213 = vadd.f32 %v2111, %v2113
        %2214 = vadd.xlane.f32.xlu0 %v2213
        %v2215 = vpop.xlane.xlu0 %2214
        %v2216 = vadd.f32 %v2115, %v2117
        %2217 = vadd.xlane.f32.xlu0 %v2216
        %v2218 = vpop.xlane.xlu0 %2217
        %v2219 = vadd.f32 %v2119, %v2121
        %2220 = vadd.xlane.f32.xlu0 %v2219
        %v2221 = vpop.xlane.xlu0 %2220
        %v2222 = vadd.f32 %v2123, %v2125
        %2223 = vadd.xlane.f32.xlu0 %v2222
        %v2224 = vpop.xlane.xlu0 %2223
        %v2225 = vadd.f32 %v2127, %v2129
        %2226 = vadd.xlane.f32.xlu0 %v2225
        %v2227 = vpop.xlane.xlu0 %2226
        %v2228 = vadd.f32 %v2131, %v2133
        %2229 = vadd.xlane.f32.xlu0 %v2228
        %v2230 = vpop.xlane.xlu0 %2229
        %v2231 = vadd.f32 %v2135, %v2137
        %2232 = vadd.xlane.f32.xlu0 %v2231
        %v2233 = vpop.xlane.xlu0 %2232
        %v2234 = vrcp.pop %v2140
        %v2235 = vrcp.pop %v2143
        %v2236 = vrcp.pop %v2146
        %v2237 = vrcp.pop %v2149
        %v2238 = vrcp.pop %v2152
        %v2239 = vrcp.pop %v2155
        %v2240 = vrcp.pop %v2158
        %v2241 = vrcp.pop %v2161
        %v2242 = vrcp.pop %v2164
        %v2243 = vrcp.pop %v2167
        %v2244 = vrcp.pop %v2170
        %v2245 = vrcp.pop %v2173
        %v2246 = vrcp.pop %v2176
        %v2247 = vrcp.pop %v2179
        %v2248 = vrcp.pop %v2182
        %v2249 = vrcp.pop %v2185
        %v2250 = vrcp.pop %v2188
        %v2251 = vrcp.pop %v2191
        %v2252 = vrcp.pop %v2194
        %v2253 = vrcp.pop %v2197
        %v2254 = vrcp.pop %v2200
        %v2255 = vrcp.pop %v2203
        %v2256 = vrcp.pop %v2206
        %v2257 = vrcp.pop %v2209
        %v2258 = vrcp.pop %v2212
        %v2259 = vrcp.pop %v2215
        %v2260 = vrcp.pop %v2218
        %v2261 = vrcp.pop %v2221
        %v2262 = vrcp.pop %v2224
        %v2263 = vrcp.pop %v2227
        %v2264 = vrcp.pop %v2230
        %v2265 = vrcp.pop %v2233
        %v2266 = vmul.f32 %v2011, %v2234
        %v2267 = vmul.f32 %v2013, %v2234
        %v2268 = vmul.f32 %v2015, %v2235
        %v2269 = vmul.f32 %v2017, %v2235
        %v2270 = vmul.f32 %v2019, %v2236
        %v2271 = vmul.f32 %v2021, %v2236
        %v2272 = vmul.f32 %v2023, %v2237
        %v2273 = vmul.f32 %v2025, %v2237
        %v2274 = vmul.f32 %v2027, %v2238
        %v2275 = vmul.f32 %v2029, %v2238
        %v2276 = vmul.f32 %v2031, %v2239
        %v2277 = vmul.f32 %v2033, %v2239
        %v2278 = vmul.f32 %v2035, %v2240
        %v2279 = vmul.f32 %v2037, %v2240
        %v2280 = vmul.f32 %v2039, %v2241
        %v2281 = vmul.f32 %v2041, %v2241
        %v2282 = vmul.f32 %v2043, %v2242
        %v2283 = vmul.f32 %v2045, %v2242
        %v2284 = vmul.f32 %v2047, %v2243
        %v2285 = vmul.f32 %v2049, %v2243
        %v2286 = vmul.f32 %v2051, %v2244
        %v2287 = vmul.f32 %v2053, %v2244
        %v2288 = vmul.f32 %v2055, %v2245
        %v2289 = vmul.f32 %v2057, %v2245
        %v2290 = vmul.f32 %v2059, %v2246
        %v2291 = vmul.f32 %v2061, %v2246
        %v2292 = vmul.f32 %v2063, %v2247
        %v2293 = vmul.f32 %v2065, %v2247
        %v2294 = vmul.f32 %v2067, %v2248
        %v2295 = vmul.f32 %v2069, %v2248
        %v2296 = vmul.f32 %v2071, %v2249
        %v2297 = vmul.f32 %v2073, %v2249
        %v2298 = vmul.f32 %v2075, %v2250
        %v2299 = vmul.f32 %v2077, %v2250
        %v2300 = vmul.f32 %v2079, %v2251
        %v2301 = vmul.f32 %v2081, %v2251
        %v2302 = vmul.f32 %v2083, %v2252
        %v2303 = vmul.f32 %v2085, %v2252
        %v2304 = vmul.f32 %v2087, %v2253
        %v2305 = vmul.f32 %v2089, %v2253
        %v2306 = vmul.f32 %v2091, %v2254
        %v2307 = vmul.f32 %v2093, %v2254
        %v2308 = vmul.f32 %v2095, %v2255
        %v2309 = vmul.f32 %v2097, %v2255
        %v2310 = vmul.f32 %v2099, %v2256
        %v2311 = vmul.f32 %v2101, %v2256
        %v2312 = vmul.f32 %v2103, %v2257
        %v2313 = vmul.f32 %v2105, %v2257
        %v2314 = vmul.f32 %v2107, %v2258
        %v2315 = vmul.f32 %v2109, %v2258
        %v2316 = vmul.f32 %v2111, %v2259
        %v2317 = vmul.f32 %v2113, %v2259
        %v2318 = vmul.f32 %v2115, %v2260
        %v2319 = vmul.f32 %v2117, %v2260
        %v2320 = vmul.f32 %v2119, %v2261
        %v2321 = vmul.f32 %v2121, %v2261
        %v2322 = vmul.f32 %v2123, %v2262
        %v2323 = vmul.f32 %v2125, %v2262
        %v2324 = vmul.f32 %v2127, %v2263
        %v2325 = vmul.f32 %v2129, %v2263
        %v2326 = vmul.f32 %v2131, %v2264
        %v2327 = vmul.f32 %v2133, %v2264
        %v2328 = vmul.f32 %v2135, %v2265
        %v2329 = vmul.f32 %v2137, %v2265
        %v2330 = vpack.c.bf16 %v2268, %v2266
        %v2331 = vpack.c.bf16 %v2269, %v2267
        %v2332 = vpack.c.bf16 %v2272, %v2270
        %v2333 = vpack.c.bf16 %v2273, %v2271
        %v2334 = vpack.c.bf16 %v2276, %v2274
        %v2335 = vpack.c.bf16 %v2277, %v2275
        %v2336 = vpack.c.bf16 %v2280, %v2278
        %v2337 = vpack.c.bf16 %v2281, %v2279
        %v2338 = vpack.c.bf16 %v2284, %v2282
        %v2339 = vpack.c.bf16 %v2285, %v2283
        %v2340 = vpack.c.bf16 %v2288, %v2286
        %v2341 = vpack.c.bf16 %v2289, %v2287
        %v2342 = vpack.c.bf16 %v2292, %v2290
        %v2343 = vpack.c.bf16 %v2293, %v2291
        %v2344 = vpack.c.bf16 %v2296, %v2294
        %v2345 = vpack.c.bf16 %v2297, %v2295
        %v2346 = vpack.c.bf16 %v2300, %v2298
        %v2347 = vpack.c.bf16 %v2301, %v2299
        %v2348 = vpack.c.bf16 %v2304, %v2302
        %v2349 = vpack.c.bf16 %v2305, %v2303
        %v2350 = vpack.c.bf16 %v2308, %v2306
        %v2351 = vpack.c.bf16 %v2309, %v2307
        %v2352 = vpack.c.bf16 %v2312, %v2310
        %v2353 = vpack.c.bf16 %v2313, %v2311
        %v2354 = vpack.c.bf16 %v2316, %v2314
        %v2355 = vpack.c.bf16 %v2317, %v2315
        %v2356 = vpack.c.bf16 %v2320, %v2318
        %v2357 = vpack.c.bf16 %v2321, %v2319
        %v2358 = vpack.c.bf16 %v2324, %v2322
        %v2359 = vpack.c.bf16 %v2325, %v2323
        %v2360 = vpack.c.bf16 %v2328, %v2326
        %v2361 = vpack.c.bf16 %v2329, %v2327
        %v2362 = vpack.c.bf16 %v762, %v758
        %v2363 = vpack.c.bf16 %v764, %v760
        %2364 = vmatprep.subr.bf16.mxu0 %v1819
        %2365 = vmatpush1.bf16.xpose.msra.mxu0 %v1818
        %2366 = vmatprep.subr.bf16.mxu0 %v1821
        %2367 = vmatpush1.bf16.xpose.msra.mxu0 %v1820
        %2368 = vmatprep.subr.bf16.mxu0 %v1823
        %2369 = vmatpush1.bf16.xpose.msra.mxu0 %v1822
        %2370 = vmatprep.subr.bf16.mxu0 %v1825
        %2371 = vmatpush1.bf16.xpose.msra.mxu0 %v1824
        %2372 = vmatprep.subr.bf16.mxu0 %v1827
        %2373 = vmatpush1.bf16.xpose.msra.mxu0 %v1826
        %2374 = vmatprep.subr.bf16.mxu0 %v1829
        %2375 = vmatpush1.bf16.xpose.msra.mxu0 %v1828
        %2376 = vmatprep.subr.bf16.mxu0 %v1831
        %2377 = vmatpush1.bf16.xpose.msra.mxu0 %v1830
        %2378 = vmatprep.subr.bf16.mxu0 %v1833
        %2379 = vmatpush1.bf16.xpose.msra.mxu0 %v1832
        %2380 = vmatprep.subr.bf16.mxu0 %v1835
        %2381 = vmatpush1.bf16.xpose.msra.mxu0 %v1834
        %2382 = vmatprep.subr.bf16.mxu0 %v1837
        %2383 = vmatpush1.bf16.xpose.msra.mxu0 %v1836
        %2384 = vmatprep.subr.bf16.mxu0 %v1839
        %2385 = vmatpush1.bf16.xpose.msra.mxu0 %v1838
        %2386 = vmatprep.subr.bf16.mxu0 %v1841
        %2387 = vmatpush1.bf16.xpose.msra.mxu0 %v1840
        %2388 = vmatprep.subr.bf16.mxu0 %v1843
        %2389 = vmatpush1.bf16.xpose.msra.mxu0 %v1842
        %2390 = vmatprep.subr.bf16.mxu0 %v1845
        %2391 = vmatpush1.bf16.xpose.msra.mxu0 %v1844
        %2392 = vmatprep.subr.bf16.mxu0 %v1847
        %2393 = vmatpush1.bf16.xpose.msra.mxu0 %v1846
        %2394 = vmatprep.subr.bf16.mxu0 %v1849
        %2395 = vmatpush1.bf16.xpose.msra.mxu0 %v1848
        %2396 = vmatprep.mubr.bf16.mxu0 %v2363
        %2397 = vmatmul.mubr.bf16.gmra.mrb[0].mxu0 %v2362
        %v2398 = vpop.f32.mrb[0].mxu0
        %v2399 = vadd.f32 0.0, %v2398
        %v2400 = vpop.f32.mrb[0].mxu0
        %v2401 = vadd.f32 0.0, %v2400
        %v2402 = vpop.f32.mrb[0].mxu0
        %v2403 = vadd.f32 0.0, %v2402
        %v2404 = vpop.f32.mrb[0].mxu0
        %v2405 = vadd.f32 0.0, %v2404
        %2406 = vdwg.mxu0
        %v2407 = vpack.c.bf16 %v846, %v840
        %v2408 = vpack.c.bf16 %v848, %v842
        %2409 = vmatprep.subr.bf16.mxu0 %v2331
        %2410 = vmatpush1.bf16.xpose.msra.mxu0 %v2330
        %2411 = vmatprep.subr.bf16.mxu0 %v2333
        %2412 = vmatpush1.bf16.xpose.msra.mxu0 %v2332
        %2413 = vmatprep.subr.bf16.mxu0 %v2335
        %2414 = vmatpush1.bf16.xpose.msra.mxu0 %v2334
        %2415 = vmatprep.subr.bf16.mxu0 %v2337
        %2416 = vmatpush1.bf16.xpose.msra.mxu0 %v2336
        %2417 = vmatprep.subr.bf16.mxu0 %v2339
        %2418 = vmatpush1.bf16.xpose.msra.mxu0 %v2338
        %2419 = vmatprep.subr.bf16.mxu0 %v2341
        %2420 = vmatpush1.bf16.xpose.msra.mxu0 %v2340
        %2421 = vmatprep.subr.bf16.mxu0 %v2343
        %2422 = vmatpush1.bf16.xpose.msra.mxu0 %v2342
        %2423 = vmatprep.subr.bf16.mxu0 %v2345
        %2424 = vmatpush1.bf16.xpose.msra.mxu0 %v2344
        %2425 = vmatprep.subr.bf16.mxu0 %v2347
        %2426 = vmatpush1.bf16.xpose.msra.mxu0 %v2346
        %2427 = vmatprep.subr.bf16.mxu0 %v2349
        %2428 = vmatpush1.bf16.xpose.msra.mxu0 %v2348
        %2429 = vmatprep.subr.bf16.mxu0 %v2351
        %2430 = vmatpush1.bf16.xpose.msra.mxu0 %v2350
        %2431 = vmatprep.subr.bf16.mxu0 %v2353
        %2432 = vmatpush1.bf16.xpose.msra.mxu0 %v2352
        %2433 = vmatprep.subr.bf16.mxu0 %v2355
        %2434 = vmatpush1.bf16.xpose.msra.mxu0 %v2354
        %2435 = vmatprep.subr.bf16.mxu0 %v2357
        %2436 = vmatpush1.bf16.xpose.msra.mxu0 %v2356
        %2437 = vmatprep.subr.bf16.mxu0 %v2359
        %2438 = vmatpush1.bf16.xpose.msra.mxu0 %v2358
        %2439 = vmatprep.subr.bf16.mxu0 %v2361
        %2440 = vmatpush1.bf16.xpose.msra.mxu0 %v2360
        %2441 = vmatprep.mubr.bf16.mxu0 %v2408
        %2442 = vmatmul.mubr.bf16.gmra.mrb[0].mxu0 %v2407
        %v2443 = vpop.f32.mrb[0].mxu0
        %v2444 = vadd.f32 0.0, %v2443
        %v2445 = vpop.f32.mrb[0].mxu0
        %v2446 = vadd.f32 0.0, %v2445
        %v2447 = vpop.f32.mrb[0].mxu0
        %v2448 = vadd.f32 0.0, %v2447
        %v2449 = vpop.f32.mrb[0].mxu0
        %v2450 = vadd.f32 0.0, %v2449
        %2451 = vdwg.mxu0
        %v2452 = vld [vmem:[#allocation13] sm:$0xf]
        %v2453 = vld [vmem:[#allocation13 + $0x4] sm:$0xf]
        %v2454 = vld [vmem:[#allocation13 + $0x8] sm:$0xf]
        %v2455 = vld [vmem:[#allocation13 + $0xc] sm:$0xf]
        %v2456 = vpack.c.bf16 %v2403, %v2399
        %v2457 = vpack.c.bf16 %v2405, %v2401
        %v2458 = vld [vmem:[#allocation14] sm:$0xf]
        %v2459 = vld [vmem:[#allocation14 + $0x4] sm:$0xf]
        %v2460 = vld [vmem:[#allocation14 + $0x8] sm:$0xf]
        %v2461 = vld [vmem:[#allocation14 + $0xc] sm:$0xf]
        %v2462 = vpack.c.bf16 %v2448, %v2444
        %v2463 = vpack.c.bf16 %v2450, %v2446
        %v2468 = vunpack.c.l.b16 %v2458
        %v2469 = vunpack.c.l.b16 %v2459
        %v2470 = vunpack.c.l.b16 %v2460
        %v2471 = vunpack.c.l.b16 %v2461
        %v2472 = vpack.c.b16 %v2469, %v2468
        %v2473 = vpack.c.b16 %v2471, %v2470
        %v2475 = vsel %vm706, %v2472, 0
        %v2478 = vsel %vm706, %v2473, 0
        %2480 = vmatprep.subr.bf16.mxu0 %v2463
        %2481 = vmatpush1.bf16.msra.mxu0 %v2462
        %2482 = vmatprep.subr.bf16.mxu0 0
        %2483 = vmatpush1.bf16.msra.mxu0 0
        %2484 = vmatprep.subr.bf16.mxu0 0
        %2485 = vmatpush1.bf16.msra.mxu0 0
        %2486 = vmatprep.subr.bf16.mxu0 0
        %2487 = vmatpush1.bf16.msra.mxu0 0
        %2488 = vmatprep.subr.bf16.mxu0 0
        %2489 = vmatpush1.bf16.msra.mxu0 0
        %2490 = vmatprep.subr.bf16.mxu0 0
        %2491 = vmatpush1.bf16.msra.mxu0 0
        %2492 = vmatprep.subr.bf16.mxu0 0
        %2493 = vmatpush1.bf16.msra.mxu0 0
        %2494 = vmatprep.subr.bf16.mxu0 0
        %2495 = vmatpush1.bf16.msra.mxu0 0
        %2496 = vmatprep.subr.bf16.mxu0 0
        %2497 = vmatpush1.bf16.msra.mxu0 0
        %2498 = vmatprep.subr.bf16.mxu0 0
        %2499 = vmatpush1.bf16.msra.mxu0 0
        %2500 = vmatprep.subr.bf16.mxu0 0
        %2501 = vmatpush1.bf16.msra.mxu0 0
        %2502 = vmatprep.subr.bf16.mxu0 0
        %2503 = vmatpush1.bf16.msra.mxu0 0
        %2504 = vmatprep.subr.bf16.mxu0 0
        %2505 = vmatpush1.bf16.msra.mxu0 0
        %2506 = vmatprep.subr.bf16.mxu0 0
        %2507 = vmatpush1.bf16.msra.mxu0 0
        %2508 = vmatprep.subr.bf16.mxu0 0
        %2509 = vmatpush1.bf16.msra.mxu0 0
        %2510 = vmatprep.subr.bf16.mxu0 0
        %2511 = vmatpush1.bf16.msra.mxu0 0
        %2512 = vmatprep.mubr.bf16.mxu0 0
        %2513 = vmatmul.mubr.bf16.gmra.mrb[0].mxu0 %v2475
        %v2514 = vpop.f32.mrb[0].mxu0
        %v2515 = vadd.f32 0.0, %v2514
        %v2516 = vpop.f32.mrb[0].mxu0
        %v2517 = vadd.f32 0.0, %v2516
        %v2518 = vpop.f32.mrb[0].mxu0
        %v2519 = vadd.f32 0.0, %v2518
        %v2520 = vpop.f32.mrb[0].mxu0
        %v2521 = vadd.f32 0.0, %v2520
        %2522 = vmatprep.mubr.bf16.mxu0 0
        %2523 = vmatmul.mubr.bf16.gmra.mrb[0].mxu0 %v2478
        %v2524 = vpop.f32.mrb[0].mxu0
        %v2525 = vadd.f32 0.0, %v2524
        %v2526 = vpop.f32.mrb[0].mxu0
        %v2527 = vadd.f32 0.0, %v2526
        %v2528 = vpop.f32.mrb[0].mxu0
        %v2529 = vadd.f32 0.0, %v2528
        %v2530 = vpop.f32.mrb[0].mxu0
        %v2531 = vadd.f32 0.0, %v2530
        %2532 = vdwg.mxu0
        %v2537 = vunpack.c.l.b16 %v2452
        %v2538 = vunpack.c.l.b16 %v2453
        %v2539 = vunpack.c.l.b16 %v2454
        %v2540 = vunpack.c.l.b16 %v2455
        %v2541 = vpack.c.b16 %v2538, %v2537
        %v2542 = vpack.c.b16 %v2540, %v2539
        %v2544 = vsel %vm706, %v2541, 0
        %v2547 = vsel %vm706, %v2542, 0
        %2549 = vmatprep.subr.bf16.mxu0 %v2457
        %2550 = vmatpush1.bf16.msra.mxu0 %v2456
        %2551 = vmatprep.subr.bf16.mxu0 0
        %2552 = vmatpush1.bf16.msra.mxu0 0
        %2553 = vmatprep.subr.bf16.mxu0 0
        %2554 = vmatpush1.bf16.msra.mxu0 0
        %2555 = vmatprep.subr.bf16.mxu0 0
        %2556 = vmatpush1.bf16.msra.mxu0 0
        %2557 = vmatprep.subr.bf16.mxu0 0
        %2558 = vmatpush1.bf16.msra.mxu0 0
        %2559 = vmatprep.subr.bf16.mxu0 0
        %2560 = vmatpush1.bf16.msra.mxu0 0
        %2561 = vmatprep.subr.bf16.mxu0 0
        %2562 = vmatpush1.bf16.msra.mxu0 0
        %2563 = vmatprep.subr.bf16.mxu0 0
        %2564 = vmatpush1.bf16.msra.mxu0 0
        %2565 = vmatprep.subr.bf16.mxu0 0
        %2566 = vmatpush1.bf16.msra.mxu0 0
        %2567 = vmatprep.subr.bf16.mxu0 0
        %2568 = vmatpush1.bf16.msra.mxu0 0
        %2569 = vmatprep.subr.bf16.mxu0 0
        %2570 = vmatpush1.bf16.msra.mxu0 0
        %2571 = vmatprep.subr.bf16.mxu0 0
        %2572 = vmatpush1.bf16.msra.mxu0 0
        %2573 = vmatprep.subr.bf16.mxu0 0
        %2574 = vmatpush1.bf16.msra.mxu0 0
        %2575 = vmatprep.subr.bf16.mxu0 0
        %2576 = vmatpush1.bf16.msra.mxu0 0
        %2577 = vmatprep.subr.bf16.mxu0 0
        %2578 = vmatpush1.bf16.msra.mxu0 0
        %2579 = vmatprep.subr.bf16.mxu0 0
        %2580 = vmatpush1.bf16.msra.mxu0 0
        %2581 = vmatprep.mubr.bf16.mxu0 0
        %2582 = vmatmul.mubr.bf16.gmra.mrb[0].mxu0 %v2544
        %v2583 = vpop.f32.mrb[0].mxu0
        %v2584 = vadd.f32 %v2515, %v2583
        %v2585 = vpop.f32.mrb[0].mxu0
        %v2586 = vadd.f32 %v2517, %v2585
        %v2587 = vpop.f32.mrb[0].mxu0
        %v2588 = vadd.f32 %v2519, %v2587
        %v2589 = vpop.f32.mrb[0].mxu0
        %v2590 = vadd.f32 %v2521, %v2589
        %2591 = vmatprep.mubr.bf16.mxu0 0
        %2592 = vmatmul.mubr.bf16.gmra.mrb[0].mxu0 %v2547
        %v2593 = vpop.f32.mrb[0].mxu0
        %v2594 = vadd.f32 %v2525, %v2593
        %v2595 = vpop.f32.mrb[0].mxu0
        %v2596 = vadd.f32 %v2527, %v2595
        %v2597 = vpop.f32.mrb[0].mxu0
        %v2598 = vadd.f32 %v2529, %v2597
        %v2599 = vpop.f32.mrb[0].mxu0
        %v2600 = vadd.f32 %v2531, %v2599
        %2601 = vdwg.mxu0
        %v2602 = vld [vmem:[#allocation16] sm:$0xff]
        %v2603 = vld [vmem:[#allocation16 + $0x8] sm:$0xff]
        %v2604 = vld [vmem:[#allocation16 + $0x10] sm:$0xff]
        %v2605 = vld [vmem:[#allocation16 + $0x18] sm:$0xff]
        %2607 = vset.pattern.permute.xlu0 0
        %2608 = vperm.xlu0 %2607, %v2602
        %v2609 = vpop.permute.xlu0 %2608
        %2612 = vset.pattern.permute.xlu0 0
        %2613 = vperm.xlu0 %2612, %v2603
        %v2614 = vpop.permute.xlu0 %2613
        %2617 = vset.pattern.permute.xlu0 0
        %2618 = vperm.xlu0 %2617, %v2604
        %v2619 = vpop.permute.xlu0 %2618
        %2622 = vset.pattern.permute.xlu0 0
        %2623 = vperm.xlu0 %2622, %v2605
        %v2624 = vpop.permute.xlu0 %2623
        %v2626 = vadd.f32 %v2584, %v2609
        %v2627 = vadd.f32 %v2586, %v2609
        %v2628 = vadd.f32 %v2588, %v2614
        %v2629 = vadd.f32 %v2590, %v2614
        %v2630 = vadd.f32 %v2594, %v2619
        %v2631 = vadd.f32 %v2596, %v2619
        %v2632 = vadd.f32 %v2598, %v2624
        %v2633 = vadd.f32 %v2600, %v2624
        %v2634 = vld [vmem:[#allocation17] sm:$0xf]
        %v2635 = vld [vmem:[#allocation17 + $0x4] sm:$0xf]
        %v2636 = vld [vmem:[#allocation17 + $0x8] sm:$0xf]
        %v2637 = vld [vmem:[#allocation17 + $0xc] sm:$0xf]
        %v2638 = vld [vmem:[#allocation17 + $0x10] sm:$0xf]
        %v2639 = vld [vmem:[#allocation17 + $0x14] sm:$0xf]
        %v2640 = vpack.c.bf16 %v2628, %v2626
        %v2641 = vpack.c.bf16 %v2629, %v2627
        %v2642 = vpack.c.bf16 %v2632, %v2630
        %v2643 = vpack.c.bf16 %v2633, %v2631
        %v2644 = vld [vmem:[#allocation19] sm:$0xf]
        %v2645 = vld [vmem:[#allocation19 + $0x4] sm:$0xf]
        %v2646 = vld [vmem:[#allocation19 + $0x8] sm:$0xf]
        %v2647 = vld [vmem:[#allocation19 + $0xc] sm:$0xf]
        %v2648 = vld [vmem:[#allocation19 + $0x10] sm:$0xf]
        %v2649 = vld [vmem:[#allocation19 + $0x14] sm:$0xf]
        %v2656 = vunpack.c.l.b16 %v2644
        %v2657 = vunpack.c.l.b16 %v2645
        %v2658 = vunpack.c.l.b16 %v2646
        %v2659 = vunpack.c.l.b16 %v2647
        %v2660 = vunpack.c.l.b16 %v2648
        %v2661 = vunpack.c.l.b16 %v2649
        %v2662 = vpack.c.b16 %v2657, %v2656
        %v2663 = vpack.c.b16 %v2659, %v2658
        %v2664 = vpack.c.b16 %v2661, %v2660
        %v2666 = vsel %vm706, %v2662, 0
        %v2669 = vsel %vm706, %v2663, 0
        %v2672 = vsel %vm706, %v2664, 0
        %2674 = vmatprep.subr.bf16.mxu0 %v665
        %2675 = vmatpush1.bf16.msra.mxu0 %v664
        %2676 = vmatprep.subr.bf16.mxu0 0
        %2677 = vmatpush1.bf16.msra.mxu0 0
        %2678 = vmatprep.subr.bf16.mxu0 0
        %2679 = vmatpush1.bf16.msra.mxu0 0
        %2680 = vmatprep.subr.bf16.mxu0 0
        %2681 = vmatpush1.bf16.msra.mxu0 0
        %2682 = vmatprep.subr.bf16.mxu0 0
        %2683 = vmatpush1.bf16.msra.mxu0 0
        %2684 = vmatprep.subr.bf16.mxu0 0
        %2685 = vmatpush1.bf16.msra.mxu0 0
        %2686 = vmatprep.subr.bf16.mxu0 0
        %2687 = vmatpush1.bf16.msra.mxu0 0
        %2688 = vmatprep.subr.bf16.mxu0 0
        %2689 = vmatpush1.bf16.msra.mxu0 0
        %2690 = vmatprep.subr.bf16.mxu0 0
        %2691 = vmatpush1.bf16.msra.mxu0 0
        %2692 = vmatprep.subr.bf16.mxu0 0
        %2693 = vmatpush1.bf16.msra.mxu0 0
        %2694 = vmatprep.subr.bf16.mxu0 0
        %2695 = vmatpush1.bf16.msra.mxu0 0
        %2696 = vmatprep.subr.bf16.mxu0 0
        %2697 = vmatpush1.bf16.msra.mxu0 0
        %2698 = vmatprep.subr.bf16.mxu0 0
        %2699 = vmatpush1.bf16.msra.mxu0 0
        %2700 = vmatprep.subr.bf16.mxu0 0
        %2701 = vmatpush1.bf16.msra.mxu0 0
        %2702 = vmatprep.subr.bf16.mxu0 0
        %2703 = vmatpush1.bf16.msra.mxu0 0
        %2704 = vmatprep.subr.bf16.mxu0 0
        %2705 = vmatpush1.bf16.msra.mxu0 0
        %2706 = vmatprep.mubr.bf16.mxu0 0
        %2707 = vmatmul.mubr.bf16.gmra.mrb[0].mxu0 %v2666
        %v2708 = vpop.f32.mrb[0].mxu0
        %v2709 = vadd.f32 0.0, %v2708
        %v2710 = vpop.f32.mrb[0].mxu0
        %v2711 = vadd.f32 0.0, %v2710
        %v2712 = vpop.f32.mrb[0].mxu0
        %v2713 = vadd.f32 0.0, %v2712
        %v2714 = vpop.f32.mrb[0].mxu0
        %v2715 = vadd.f32 0.0, %v2714
        %2716 = vmatprep.mubr.bf16.mxu0 0
        %2717 = vmatmul.mubr.bf16.gmra.mrb[0].mxu0 %v2669
        %v2718 = vpop.f32.mrb[0].mxu0
        %v2719 = vadd.f32 0.0, %v2718
        %v2720 = vpop.f32.mrb[0].mxu0
        %v2721 = vadd.f32 0.0, %v2720
        %v2722 = vpop.f32.mrb[0].mxu0
        %v2723 = vadd.f32 0.0, %v2722
        %v2724 = vpop.f32.mrb[0].mxu0
        %v2725 = vadd.f32 0.0, %v2724
        %2726 = vmatprep.mubr.bf16.mxu0 0
        %2727 = vmatmul.mubr.bf16.gmra.mrb[0].mxu0 %v2672
        %v2728 = vpop.f32.mrb[0].mxu0
        %v2729 = vadd.f32 0.0, %v2728
        %v2730 = vpop.f32.mrb[0].mxu0
        %v2731 = vadd.f32 0.0, %v2730
        %v2732 = vpop.f32.mrb[0].mxu0
        %v2733 = vadd.f32 0.0, %v2732
        %v2734 = vpop.f32.mrb[0].mxu0
        %v2735 = vadd.f32 0.0, %v2734
        %2736 = vdwg.mxu0
        %v2743 = vunpack.c.l.b16 %v2634
        %v2744 = vunpack.c.l.b16 %v2635
        %v2745 = vunpack.c.l.b16 %v2636
        %v2746 = vunpack.c.l.b16 %v2637
        %v2747 = vunpack.c.l.b16 %v2638
        %v2748 = vunpack.c.l.b16 %v2639
        %v2749 = vpack.c.b16 %v2744, %v2743
        %v2750 = vpack.c.b16 %v2746, %v2745
        %v2751 = vpack.c.b16 %v2748, %v2747
        %vm2752 = vcmask 261120
        %v2754 = vsel %vm2752, %v2749, 0
        %v2757 = vsel %vm2752, %v2750, 0
        %v2760 = vsel %vm2752, %v2751, 0
        %2762 = vmatprep.subr.bf16.mxu0 %v2641
        %2763 = vmatpush1.bf16.msra.mxu0 %v2640
        %2764 = vmatprep.subr.bf16.mxu0 %v2643
        %2765 = vmatpush1.bf16.msra.mxu0 %v2642
        %2766 = vmatprep.subr.bf16.mxu0 0
        %2767 = vmatpush1.bf16.msra.mxu0 0
        %2768 = vmatprep.subr.bf16.mxu0 0
        %2769 = vmatpush1.bf16.msra.mxu0 0
        %2770 = vmatprep.subr.bf16.mxu0 0
        %2771 = vmatpush1.bf16.msra.mxu0 0
        %2772 = vmatprep.subr.bf16.mxu0 0
        %2773 = vmatpush1.bf16.msra.mxu0 0
        %2774 = vmatprep.subr.bf16.mxu0 0
        %2775 = vmatpush1.bf16.msra.mxu0 0
        %2776 = vmatprep.subr.bf16.mxu0 0
        %2777 = vmatpush1.bf16.msra.mxu0 0
        %2778 = vmatprep.subr.bf16.mxu0 0
        %2779 = vmatpush1.bf16.msra.mxu0 0
        %2780 = vmatprep.subr.bf16.mxu0 0
        %2781 = vmatpush1.bf16.msra.mxu0 0
        %2782 = vmatprep.subr.bf16.mxu0 0
        %2783 = vmatpush1.bf16.msra.mxu0 0
        %2784 = vmatprep.subr.bf16.mxu0 0
        %2785 = vmatpush1.bf16.msra.mxu0 0
        %2786 = vmatprep.subr.bf16.mxu0 0
        %2787 = vmatpush1.bf16.msra.mxu0 0
        %2788 = vmatprep.subr.bf16.mxu0 0
        %2789 = vmatpush1.bf16.msra.mxu0 0
        %2790 = vmatprep.subr.bf16.mxu0 0
        %2791 = vmatpush1.bf16.msra.mxu0 0
        %2792 = vmatprep.subr.bf16.mxu0 0
        %2793 = vmatpush1.bf16.msra.mxu0 0
        %2794 = vmatprep.mubr.bf16.mxu0 0
        %2795 = vmatmul.mubr.bf16.gmra.mrb[0].mxu0 %v2754
        %v2796 = vpop.f32.mrb[0].mxu0
        %v2797 = vadd.f32 %v2709, %v2796
        %v2798 = vpop.f32.mrb[0].mxu0
        %v2799 = vadd.f32 %v2711, %v2798
        %v2800 = vpop.f32.mrb[0].mxu0
        %v2801 = vadd.f32 %v2713, %v2800
        %v2802 = vpop.f32.mrb[0].mxu0
        %v2803 = vadd.f32 %v2715, %v2802
        %2804 = vmatprep.mubr.bf16.mxu0 0
        %2805 = vmatmul.mubr.bf16.gmra.mrb[0].mxu0 %v2757
        %v2806 = vpop.f32.mrb[0].mxu0
        %v2807 = vadd.f32 %v2719, %v2806
        %v2808 = vpop.f32.mrb[0].mxu0
        %v2809 = vadd.f32 %v2721, %v2808
        %v2810 = vpop.f32.mrb[0].mxu0
        %v2811 = vadd.f32 %v2723, %v2810
        %v2812 = vpop.f32.mrb[0].mxu0
        %v2813 = vadd.f32 %v2725, %v2812
        %2814 = vmatprep.mubr.bf16.mxu0 0
        %2815 = vmatmul.mubr.bf16.gmra.mrb[0].mxu0 %v2760
        %v2816 = vpop.f32.mrb[0].mxu0
        %v2817 = vadd.f32 %v2729, %v2816
        %v2818 = vpop.f32.mrb[0].mxu0
        %v2819 = vadd.f32 %v2731, %v2818
        %v2820 = vpop.f32.mrb[0].mxu0
        %v2821 = vadd.f32 %v2733, %v2820
        %v2822 = vpop.f32.mrb[0].mxu0
        %v2823 = vadd.f32 %v2735, %v2822
        %2824 = vdwg.mxu0
        %v2825 = vld [vmem:[#allocation20] sm:$0xff]
        %v2826 = vld [vmem:[#allocation20 + $0x8] sm:$0xff]
        %v2827 = vld [vmem:[#allocation20 + $0x10] sm:$0xff]
        %v2828 = vld [vmem:[#allocation20 + $0x18] sm:$0xff]
        %v2829 = vld [vmem:[#allocation20 + $0x20] sm:$0xff]
        %v2830 = vld [vmem:[#allocation20 + $0x28] sm:$0xff]
        %2832 = vset.pattern.permute.xlu0 0
        %2833 = vperm.xlu0 %2832, %v2825
        %v2834 = vpop.permute.xlu0 %2833
        %2837 = vset.pattern.permute.xlu0 0
        %2838 = vperm.xlu0 %2837, %v2826
        %v2839 = vpop.permute.xlu0 %2838
        %2842 = vset.pattern.permute.xlu0 0
        %2843 = vperm.xlu0 %2842, %v2827
        %v2844 = vpop.permute.xlu0 %2843
        %2847 = vset.pattern.permute.xlu0 0
        %2848 = vperm.xlu0 %2847, %v2828
        %v2849 = vpop.permute.xlu0 %2848
        %2852 = vset.pattern.permute.xlu0 0
        %2853 = vperm.xlu0 %2852, %v2829
        %v2854 = vpop.permute.xlu0 %2853
        %2857 = vset.pattern.permute.xlu0 0
        %2858 = vperm.xlu0 %2857, %v2830
        %v2859 = vpop.permute.xlu0 %2858
        %v2861 = vadd.f32 %v2797, %v2834
        %v2862 = vadd.f32 %v2799, %v2834
        %v2863 = vadd.f32 %v2801, %v2839
        %v2864 = vadd.f32 %v2803, %v2839
        %v2865 = vadd.f32 %v2807, %v2844
        %v2866 = vadd.f32 %v2809, %v2844
        %v2867 = vadd.f32 %v2811, %v2849
        %v2868 = vadd.f32 %v2813, %v2849
        %v2869 = vadd.f32 %v2817, %v2854
        %v2870 = vadd.f32 %v2819, %v2854
        %v2871 = vadd.f32 %v2821, %v2859
        %v2872 = vadd.f32 %v2823, %v2859
        %v2873 = vxor.u32 %v2869, 2147483648
        %v2874 = vxor.u32 %v2870, 2147483648
        %v2875 = vxor.u32 %v2871, 2147483648
        %v2876 = vxor.u32 %v2872, 2147483648
        %v2877 = vmul.f32 %v2873, 1.442695
        %v2878 = vpow.pop %v2877
        %v2879 = vmul.f32 %v2874, 1.442695
        %v2880 = vpow.pop %v2879
        %v2881 = vmul.f32 %v2875, 1.442695
        %v2882 = vpow.pop %v2881
        %v2883 = vmul.f32 %v2876, 1.442695
        %v2884 = vpow.pop %v2883
        %v2885 = vadd.f32 %v2878, 1.0
        %v2886 = vadd.f32 %v2880, 1.0
        %v2887 = vadd.f32 %v2882, 1.0
        %v2888 = vadd.f32 %v2884, 1.0
        %v2889 = vrcp.pop %v2885
        %v2890 = vmul.f32 1.0, %v2889
        %v2891 = vrcp.pop %v2886
        %v2892 = vmul.f32 1.0, %v2891
        %v2893 = vrcp.pop %v2887
        %v2894 = vmul.f32 1.0, %v2893
        %v2895 = vrcp.pop %v2888
        %v2896 = vmul.f32 1.0, %v2895
        %v2897 = vsub.f32 1.0, %v2890
        %v2898 = vsub.f32 1.0, %v2892
        %v2899 = vsub.f32 1.0, %v2894
        %v2900 = vsub.f32 1.0, %v2896
        %v2901 = vmul.f32 %v2897, %v660
        %v2902 = vmul.f32 %v2898, %v661
        %v2903 = vmul.f32 %v2899, %v662
        %v2904 = vmul.f32 %v2900, %v663
        %v2905 = vtanh.pop %v2865
        %v2906 = vtanh.pop %v2866
        %v2907 = vtanh.pop %v2867
        %v2908 = vtanh.pop %v2868
        %v2909 = vmul.f32 %v2890, %v2905
        %v2910 = vmul.f32 %v2892, %v2906
        %v2911 = vmul.f32 %v2894, %v2907
        %v2912 = vmul.f32 %v2896, %v2908
        %v2913 = vadd.f32 %v2901, %v2909
        %v2914 = vadd.f32 %v2902, %v2910
        %v2915 = vadd.f32 %v2903, %v2911
        %v2916 = vadd.f32 %v2904, %v2912
        %v2917 = vxor.u32 %v2861, 2147483648
        %v2918 = vxor.u32 %v2862, 2147483648
        %v2919 = vxor.u32 %v2863, 2147483648
        %v2920 = vxor.u32 %v2864, 2147483648
        %v2921 = vmul.f32 %v2917, 1.442695
        %v2922 = vpow.pop %v2921
        %v2923 = vmul.f32 %v2918, 1.442695
        %v2924 = vpow.pop %v2923
        %v2925 = vmul.f32 %v2919, 1.442695
        %v2926 = vpow.pop %v2925
        %v2927 = vmul.f32 %v2920, 1.442695
        %v2928 = vpow.pop %v2927
        %v2929 = vadd.f32 %v2922, 1.0
        %v2930 = vadd.f32 %v2924, 1.0
        %v2931 = vadd.f32 %v2926, 1.0
        %v2932 = vadd.f32 %v2928, 1.0
        %v2933 = vrcp.pop %v2929
        %v2934 = vmul.f32 1.0, %v2933
        %v2935 = vrcp.pop %v2930
        %v2936 = vmul.f32 1.0, %v2935
        %v2937 = vrcp.pop %v2931
        %v2938 = vmul.f32 1.0, %v2937
        %v2939 = vrcp.pop %v2932
        %v2940 = vmul.f32 1.0, %v2939
        %v2941 = vmul.f32 %v2934, %v2913
        %v2942 = vmul.f32 %v2936, %v2914
        %v2943 = vmul.f32 %v2938, %v2915
        %v2944 = vmul.f32 %v2940, %v2916
        %2945 = vst [vmem:[%s654] sm:$0xff] %v2913
        %2946 = vst [vmem:[%s654 + $0x8] sm:$0xff] %v2914
        %2947 = vst [vmem:[%s654 + $0x10] sm:$0xff] %v2915
        %2948 = vst [vmem:[%s654 + $0x18] sm:$0xff] %v2916
        %2949 = vst [vmem:[%s647] sm:$0xff] %v2941
        %2950 = vst [vmem:[%s647 + $0x8] sm:$0xff] %v2942
        %2951 = vst [vmem:[%s647 + $0x10] sm:$0xff] %v2943
        %2952 = vst [vmem:[%s647 + $0x18] sm:$0xff] %v2944
        %s2953 = sand.u32 %s312, 1
        %s2954 = scalar_lea.sflag [#allocation4], %s2953
        %s2955 = sand.u32 %s312, 1
        %s2956 = smul.addr %s2955, 32
        %s2957 = scalar_lea.vmem [#allocation22], %s2956
        %s2958 = sand.u32 %s338, 1
        %s2959 = scalar_lea.sflag [#allocation24], %s2958
        %s2960 = sand.u32 %s338, 1
        %s2961 = smul.addr %s2960, 32
        %s2962 = scalar_lea.vmem [#allocation23], %s2961
        // Predicated region
        $region117: #{tpu_custom_call.1} parent=67 // pred_check
          %p2963 = pneg %p322
        $region118: #{tpu_custom_call.1} parent=67 // pred_check_branch
          %2965 = sbr.rel (%p2963) target = $region120
        $region119: #{tpu_custom_call.1} parent=67 // pred_region
          %s2967 = ssub.s32 512, 512
          %2968 = vsyncadd %s2954, %s2967
          %s2969 = smul.addr %s42, 4
          %s2970 = smul.addr %s2969, 128
          %s2971 = scalar_lea.hbm %s12, %s2970
          %s2972 = sshll.u32 %s2957, 4
          %s2973 = int_to_ptr.vmem [resolvable:$true] %s2972
          %2978 = dma.vmem_to_hbm [thread:$0]  %s2973, 512, %s2971, %s2954, 256, 256, 16
        $region120: #{tpu_custom_call.1} parent=67 // pred_fallthru
          _
        // Predicated region
        $region121: #{tpu_custom_call.1} parent=67 // pred_check
          %p2979 = pneg %p348
        $region122: #{tpu_custom_call.1} parent=67 // pred_check_branch
          %2981 = sbr.rel (%p2979) target = $region124
        $region123: #{tpu_custom_call.1} parent=67 // pred_region
          %s2983 = ssub.s32 512, 512
          %2984 = vsyncadd %s2959, %s2983
          %s2985 = smul.addr %s42, 4
          %s2986 = smul.addr %s2985, 128
          %s2987 = scalar_lea.hbm %s13, %s2986
          %s2988 = sshll.u32 %s2962, 4
          %s2989 = int_to_ptr.vmem [resolvable:$true] %s2988
          %2994 = dma.vmem_to_hbm [thread:$0]  %s2989, 512, %s2987, %s2959, 256, 256, 16
        $region124: #{tpu_custom_call.1} parent=67 // pred_fallthru
          _
      $region68: #{tpu_custom_call.1} parent=5 // pred_fallthru
        _
      %p2995 = scmp.le.s32.totalorder 2, %s37
      // Predicated region
      $region125: #{tpu_custom_call.1} parent=5 // pred_check
        %p2996 = pneg %p2995
      $region126: #{tpu_custom_call.1} parent=5 // pred_check_branch
        %2998 = sbr.rel (%p2996) target = $region128
      $region127: #{tpu_custom_call.1} parent=5 // pred_region
        %s2999 = ssub.s32 %s37, 2
        // Predicated region
        $region129: #{tpu_custom_call.1} parent=127 // pred_check
          %p3000 = pneg %p328
        $region130: #{tpu_custom_call.1} parent=127 // pred_check_branch
          %3002 = sbr.rel (%p3000) target = $region132
        $region131: #{tpu_custom_call.1} parent=127 // pred_region
          %s3003 = sand.u32 %s313, 1
          %s3004 = scalar_lea.sflag [#allocation4], %s3003
          %s3005 = sand.u32 %s313, 1
          %s3006 = smul.addr %s3005, 32
          %s3007 = scalar_lea.vmem [#allocation22], %s3006
          %3008 = dma.done %s3004, 512
        $region132: #{tpu_custom_call.1} parent=127 // pred_fallthru
          _
        // Predicated region
        $region133: #{tpu_custom_call.1} parent=127 // pred_check
          %p3009 = pneg %p354
        $region134: #{tpu_custom_call.1} parent=127 // pred_check_branch
          %3011 = sbr.rel (%p3009) target = $region136
        $region135: #{tpu_custom_call.1} parent=127 // pred_region
          %s3012 = sand.u32 %s339, 1
          %s3013 = scalar_lea.sflag [#allocation24], %s3012
          %s3014 = sand.u32 %s339, 1
          %s3015 = smul.addr %s3014, 32
          %s3016 = scalar_lea.vmem [#allocation23], %s3015
          %3017 = dma.done %s3013, 512
        $region136: #{tpu_custom_call.1} parent=127 // pred_fallthru
          _
      $region128: #{tpu_custom_call.1} parent=5 // pred_fallthru
        _
    $region6: #{tpu_custom_call.1} parent=1 // loop_footer
      %s41 = sadd.s32 1, %s37
    $region7: #{tpu_custom_call.1} parent=1 // loop_footer_branch
      %36 = sbr.rel target = $region3
    $region8: #{tpu_custom_call.1} parent=1 // loop_exit
      _
    %3018 = vsyncpa [#allocation3], 1
    %s3019 = scalar_lea.sflag [#allocation3], 1
    %3020 = vsyncpa %s3019, 1
    %3021 = vsyncpa [#allocation6], 1
    %s3022 = scalar_lea.sflag [#allocation6], 1
    %3023 = vsyncpa %s3022, 1
    %3024 = vsyncpa [#allocation9], 1
    %3025 = vsyncpa [#allocation12], 1
    %3026 = vsyncpa [#allocation15], 1
    %3027 = vsyncpa [#allocation18], 1
    %3028 = vsyncpa [#allocation21], 1
    %3029 = vsyncpa [#allocation4], 1
    %s3030 = scalar_lea.sflag [#allocation4], 1
    %3031 = vsyncpa %s3030, 1
    %3032 = vsyncpa [#allocation24], 1
    %s3033 = scalar_lea.sflag [#allocation24], 1
    %3034 = vsyncpa %s3033, 1

</llo_original>
